<compile_context>
chip_gen: v7x
topology: tpu7x:2x2x1
jax: 0.10.0
libtpu: 0.0.40
codegen_flags: <defaults>
</compile_context>

<pallas_src>
import functools

import jax
import jax.numpy as jnp
import numpy as np
from jax import lax
from jax.experimental import pallas as pl
from jax.experimental.pallas import tpu as pltpu


def _round_up(x, m):
    return ((x + m - 1) // m) * m


def _vmem_limit_bytes():
    """Per-generation scoped-VMEM limit (v5e/v6e: 128 MiB physical, v7x: 64 MiB)."""
    try:
        cap = int(pltpu.get_tpu_info().vmem_capacity_bytes)
    except Exception:
        cap = 64 * 1024 * 1024          # conservative fallback (v7x-sized)
    return int(cap * 0.70)


def _pick_row_tile(hout, wout, cout_pad, max_tile_bytes=8 << 20):
    """Largest divisor of hout whose f32 output tile stays within max_tile_bytes."""
    max_rows = max(1, max_tile_bytes // (wout * cout_pad * 4))
    if hout <= max_rows:
        return hout
    for th in range(int(min(hout, max_rows)), 0, -1):
        if hout % th == 0:
            return th
    return hout


def _cnnblock_kernel(x_ref, w_ref, bias_ref, o_ref, *,
                     kh, kw, stride, th, wout, cin, cout_pad):
    """Fused direct conv (single im2col-in-VMEM matmul) + eval-BN + LeakyReLU.

    x_ref:    (1, s, s, Hh, Wh*Cin)   bf16  stride-phase-decomposed padded input (lane-dense minor)
    w_ref:    (KH*KW*Cin, Cout_pad)   bf16  BN-scale-folded weight matrix (Cout zero-padded to 128)
    bias_ref: (1, Cout_pad)           f32   folded BatchNorm bias
    o_ref:    (1, th, Wout, Cout_pad) out   lane-dense output tile (th output rows)
    """
    row0 = pl.program_id(1) * th                 # first output row of this tile
    if th % 8 == 0:
        row0 = pl.multiple_of(row0, 8)
    nrows = th + (kh - 1) // stride              # input rows (per phase) needed for th output rows

    planes = {}                                  # one resident slice per stride phase
    cols = []
    for t in range(kh * kw):                     # static unroll: build the patch slab in VMEM
        di, dj = t // kw, t % kw
        pi, qi = di % stride, di // stride
        pj, qj = dj % stride, dj // stride
        if (pi, pj) not in planes:
            # bf16 slice straight off the resident block -- no f32 widen, no extra copy pass.
            planes[(pi, pj)] = x_ref[0, pi, pj, pl.ds(row0, nrows), :]      # (nrows, Wh*Cin)
        chunk = planes[(pi, pj)][qi:qi + th, qj * cin:(qj + wout) * cin]    # (th, Wout*Cin) bf16
        cols.append(chunk.reshape(th, wout, cin))

    slab = jnp.concatenate(cols, axis=-1).reshape(th * wout, kh * kw * cin)  # im2col slab (VMEM only)

    # One bf16 MXU matmul with K = kh*kw*Cin; f32 result stays in registers (no VMEM RMW).
    acc = jnp.dot(slab, w_ref[...], preferred_element_type=jnp.float32)      # (th*Wout, Cout_pad)

    y = acc + bias_ref[...]                      # BN scale already folded into the weights
    y = jnp.maximum(y, 0.1 * y)                  # LeakyReLU(0.1)
    o_ref[...] = y.reshape(1, th, wout, cout_pad).astype(o_ref.dtype)


@functools.partial(jax.jit, static_argnames=("stride", "padding",
                                             "in_layout", "out_layout", "out_dtype"))
def cnn_block_forward(x, weight_oihw, gamma, beta, running_mean, running_var, *,
                      stride=1, padding=1, eps=1e-5,
                      in_layout="NCHW", out_layout="NCHW", out_dtype=jnp.float32):
    cout, cin, kh, kw = weight_oihw.shape
    if in_layout == "NCHW":
        x = jnp.transpose(x, (0, 2, 3, 1))                      # -> NHWC
    n, h, w, cin_x = x.shape
    assert cin_x == cin

    hout = (h + 2 * padding - kh) // stride + 1
    wout = (w + 2 * padding - kw) // stride + 1
    cout_pad = _round_up(cout, 128)              # lane-dense stores + full MXU columns
    th = _pick_row_tile(hout, wout, cout_pad)    # output-row tile (divisor of hout)

    # ---- input: pad -> stride-phase decompose -> flatten W*Cin as lane-dense minor dim ----
    x = x.astype(jnp.bfloat16)                                   # halve HBM traffic for A
    hp, wp = h + 2 * padding, w + 2 * padding
    hp2, wp2 = _round_up(hp, stride), _round_up(wp, stride)
    x = jnp.pad(x, ((0, 0),
                    (padding, padding + hp2 - hp),
                    (padding, padding + wp2 - wp),
                    (0, 0)))
    hh, wh = hp2 // stride, wp2 // stride
    x = x.reshape(n, hh, stride, wh, stride, cin)
    x = jnp.transpose(x, (0, 2, 4, 1, 3, 5))                     # (N, s, s, Hh, Wh, Cin)
    x = x.reshape(n, stride, stride, hh, wh * cin)               # minor dim = Wh*Cin (lane-dense)

    # ---- weights: fold BN scale (f32), reshape to (KH*KW*Cin, Cout_pad), cast bf16 ----
    scale = gamma / jnp.sqrt(running_var + eps)                  # f32 per-output-channel scale
    bias = beta - running_mean * scale                           # f32 per-output-channel bias
    wmat = jnp.transpose(weight_oihw, (2, 3, 1, 0)) * scale      # (kh, kw, cin, cout), scale folded
    wmat = wmat.reshape(kh * kw * cin, cout)
    wmat = jnp.pad(wmat, ((0, 0), (0, cout_pad - cout))).astype(jnp.bfloat16)
    bias = jnp.pad(bias, (0, cout_pad - cout)).reshape(1, cout_pad).astype(jnp.float32)

    kernel = functools.partial(
        _cnnblock_kernel, kh=kh, kw=kw, stride=stride,
        th=th, wout=wout, cin=cin, cout_pad=cout_pad)

    out = pl.pallas_call(
        kernel,
        out_shape=jax.ShapeDtypeStruct((n, hout, wout, cout_pad), out_dtype),
        grid_spec=pltpu.PrefetchScalarGridSpec(
            num_scalar_prefetch=0,
            grid=(n, hout // th),                                # (image, output-row tile)
            in_specs=[
                pl.BlockSpec((1, stride, stride, hh, wh * cin),
                             lambda i, j: (i, 0, 0, 0, 0)),      # full padded image resident
                pl.BlockSpec((kh * kw * cin, cout_pad), lambda i, j: (0, 0)),
                pl.BlockSpec((1, cout_pad), lambda i, j: (0, 0)),
            ],
            out_specs=pl.BlockSpec((1, th, wout, cout_pad),
                                   lambda i, j: (i, j, 0, 0)),
        ),
        compiler_params=pltpu.CompilerParams(
            dimension_semantics=("parallel", "arbitrary"),       # images across v7x TCs
            vmem_limit_bytes=_vmem_limit_bytes(),
        ),
    )(x, wmat, bias)

    out = out[..., :cout]                                        # drop Cout padding
    if out_layout == "NCHW":                                     # match the PyTorch module
        out = jnp.transpose(out, (0, 3, 1, 2))
    return out


def _reference(x, w, gamma, beta, mean, var, stride, padding, eps=1e-5):
    y = lax.conv_general_dilated(
        x, w, window_strides=(stride, stride),
        padding=((padding, padding), (padding, padding)),
        dimension_numbers=("NCHW", "OIHW", "NCHW"))
    inv = gamma / jnp.sqrt(var + eps)
    y = y * inv[None, :, None, None] + (beta - mean * inv)[None, :, None, None]
    return jnp.where(y > 0, y, 0.1 * y)


if __name__ == "__main__":
    # CNNBlock(in_channels=4, out_channels=8, kernel_size=3, stride=1, padding=1)
    N, CIN, COUT, H, W = 2, 4, 8, 16, 16
    KH = KW = 3
    STRIDE, PAD = 1, 1

    key = jax.random.PRNGKey(0)
    kx, kw_, kg, kb, km, kv = jax.random.split(key, 6)

    x = jax.random.normal(kx, (N, CIN, H, W), dtype=jnp.float32)
    weight = jax.random.normal(kw_, (COUT, CIN, KH, KW), dtype=jnp.float32) * 0.1
    gamma = 1.0 + 0.1 * jax.random.normal(kg, (COUT,), dtype=jnp.float32)
    beta = 0.1 * jax.random.normal(kb, (COUT,), dtype=jnp.float32)
    running_mean = 0.1 * jax.random.normal(km, (COUT,), dtype=jnp.float32)
    running_var = jnp.abs(1.0 + 0.1 * jax.random.normal(kv, (COUT,), dtype=jnp.float32))

    out = cnn_block_forward(x, weight, gamma, beta, running_mean, running_var,
                            stride=STRIDE, padding=PAD)
    out = jax.block_until_ready(out)

    ref = _reference(x, weight, gamma, beta, running_mean, running_var, STRIDE, PAD)
    # bf16 MXU operands (intentional inference-precision trade-off) -> loose tolerance.
    np.testing.assert_allclose(np.asarray(out), np.asarray(ref), rtol=2e-2, atol=2e-2)
    print("KERNEL_OK")
</pallas_src>

<mosaic_0001>
module attributes {stable_mosaic.version = 11 : i64} {
  func.func @_cnnblock_kernel(%arg0: i32, %arg1: i32, %arg2: memref<1x1x1x18x72xbf16, #tpu.memory_space<vmem>>, %arg3: memref<36x128xbf16, #tpu.memory_space<vmem>>, %arg4: memref<1x128xf32, #tpu.memory_space<vmem>>, %arg5: memref<1x16x16x128xf32, #tpu.memory_space<vmem>>) attributes {dimension_semantics = [#tpu.dimension_semantics<parallel>, #tpu.dimension_semantics<arbitrary>], iteration_bounds = array<i64: 2, 1>, scalar_prefetch = 0 : i64, scratch_operands = 0 : i64, tpu.core_type = #tpu.core_type<tc>, window_params = [{transform_indices = @transform_0, window_bounds = array<i64: 1, 1, 1, 18, 72>}, {pipeline_mode = #tpu.pipeline_mode<synchronous>, transform_indices = @transform_1, window_bounds = array<i64: 36, 128>}, {pipeline_mode = #tpu.pipeline_mode<synchronous>, transform_indices = @transform_2, window_bounds = array<i64: 1, 128>}, {transform_indices = @transform_3, window_bounds = array<i64: 1, 16, 16, 128>}]} {
    %c16_i32 = arith.constant 16 : i32
    %0 = arith.muli %arg1, %c16_i32 : i32
    %1 = tpu.assume_multiple %0, 8 : i32
    %c0 = arith.constant 0 : index
    %c0_0 = arith.constant 0 : index
    %c0_1 = arith.constant 0 : index
    %2 = arith.index_cast %1 : i32 to index
    %c0_2 = arith.constant 0 : index
    %3 = vector.load %arg2[%c0, %c0_0, %c0_1, %2, %c0_2] : memref<1x1x1x18x72xbf16, #tpu.memory_space<vmem>>, vector<1x1x1x18x72xbf16>
    %4 = vector.shape_cast %3 : vector<1x1x1x18x72xbf16> to vector<18x72xbf16>
    %5 = vector.extract_strided_slice %4 {offsets = [0, 0], sizes = [16, 64], strides = [1, 1]} : vector<18x72xbf16> to vector<16x64xbf16>
    %6 = vector.shape_cast %5 : vector<16x64xbf16> to vector<16x16x4xbf16>
    %7 = vector.extract_strided_slice %4 {offsets = [0, 4], sizes = [16, 64], strides = [1, 1]} : vector<18x72xbf16> to vector<16x64xbf16>
    %8 = vector.shape_cast %7 : vector<16x64xbf16> to vector<16x16x4xbf16>
    %9 = vector.extract_strided_slice %4 {offsets = [0, 8], sizes = [16, 64], strides = [1, 1]} : vector<18x72xbf16> to vector<16x64xbf16>
    %10 = vector.shape_cast %9 : vector<16x64xbf16> to vector<16x16x4xbf16>
    %11 = vector.extract_strided_slice %4 {offsets = [1, 0], sizes = [16, 64], strides = [1, 1]} : vector<18x72xbf16> to vector<16x64xbf16>
    %12 = vector.shape_cast %11 : vector<16x64xbf16> to vector<16x16x4xbf16>
    %13 = vector.extract_strided_slice %4 {offsets = [1, 4], sizes = [16, 64], strides = [1, 1]} : vector<18x72xbf16> to vector<16x64xbf16>
    %14 = vector.shape_cast %13 : vector<16x64xbf16> to vector<16x16x4xbf16>
    %15 = vector.extract_strided_slice %4 {offsets = [1, 8], sizes = [16, 64], strides = [1, 1]} : vector<18x72xbf16> to vector<16x64xbf16>
    %16 = vector.shape_cast %15 : vector<16x64xbf16> to vector<16x16x4xbf16>
    %17 = vector.extract_strided_slice %4 {offsets = [2, 0], sizes = [16, 64], strides = [1, 1]} : vector<18x72xbf16> to vector<16x64xbf16>
    %18 = vector.shape_cast %17 : vector<16x64xbf16> to vector<16x16x4xbf16>
    %19 = vector.extract_strided_slice %4 {offsets = [2, 4], sizes = [16, 64], strides = [1, 1]} : vector<18x72xbf16> to vector<16x64xbf16>
    %20 = vector.shape_cast %19 : vector<16x64xbf16> to vector<16x16x4xbf16>
    %21 = vector.extract_strided_slice %4 {offsets = [2, 8], sizes = [16, 64], strides = [1, 1]} : vector<18x72xbf16> to vector<16x64xbf16>
    %22 = vector.shape_cast %21 : vector<16x64xbf16> to vector<16x16x4xbf16>
    %23 = tpu.concatenate %6, %8, %10, %12, %14, %16, %18, %20, %22 in 2 : vector<16x16x4xbf16>, vector<16x16x4xbf16>, vector<16x16x4xbf16>, vector<16x16x4xbf16>, vector<16x16x4xbf16>, vector<16x16x4xbf16>, vector<16x16x4xbf16>, vector<16x16x4xbf16>, vector<16x16x4xbf16> -> vector<16x16x36xbf16>
    %24 = vector.shape_cast %23 : vector<16x16x36xbf16> to vector<256x36xbf16>
    %c0_3 = arith.constant 0 : index
    %c0_4 = arith.constant 0 : index
    %25 = vector.load %arg3[%c0_3, %c0_4] : memref<36x128xbf16, #tpu.memory_space<vmem>>, vector<36x128xbf16>
    %cst = arith.constant dense<0.000000e+00> : vector<256x128xf32>
    %26 = tpu.matmul %24, %25, %cst {dimension_numbers = #tpu.dot_dimension_numbers<[1], [0], [0], [1], [0, 0, 1, 1], [], []>} : vector<256x36xbf16>, vector<36x128xbf16>, vector<256x128xf32> -> vector<256x128xf32>
    %c0_5 = arith.constant 0 : index
    %c0_6 = arith.constant 0 : index
    %27 = vector.load %arg4[%c0_5, %c0_6] : memref<1x128xf32, #tpu.memory_space<vmem>>, vector<1x128xf32>
    %28 = vector.broadcast %27 : vector<1x128xf32> to vector<256x128xf32>
    %29 = arith.addf %26, %28 : vector<256x128xf32>
    %cst_7 = arith.constant 1.000000e-01 : f32
    %30 = vector.broadcast %cst_7 : f32 to vector<256x128xf32>
    %31 = arith.mulf %30, %29 : vector<256x128xf32>
    %32 = arith.maximumf %29, %31 : vector<256x128xf32>
    %33 = vector.shape_cast %32 : vector<256x128xf32> to vector<1x16x16x128xf32>
    %c0_8 = arith.constant 0 : index
    %c0_9 = arith.constant 0 : index
    %c0_10 = arith.constant 0 : index
    %c0_11 = arith.constant 0 : index
    %34 = vector.load %arg5[%c0_8, %c0_9, %c0_10, %c0_11] : memref<1x16x16x128xf32, #tpu.memory_space<vmem>>, vector<1x16x16x128xf32>
    tpu.vector_store %arg5[%c0_8, %c0_9, %c0_10, %c0_11], %33 {strides = array<i32>} : memref<1x16x16x128xf32, #tpu.memory_space<vmem>>, vector<1x16x16x128xf32>,
    return
  }
  func.func @transform_0(%arg0: i32, %arg1: i32) -> (i32, i32, i32, i32, i32) {
    %c0_i32 = arith.constant 0 : i32
    %c0_i32_0 = arith.constant 0 : i32
    %c0_i32_1 = arith.constant 0 : i32
    %c0_i32_2 = arith.constant 0 : i32
    %c0_i32_3 = arith.constant 0 : i32
    return %arg0, %c0_i32, %c0_i32_0, %c0_i32_1, %c0_i32_2 : i32, i32, i32, i32, i32
  }
  func.func @transform_1(%arg0: i32, %arg1: i32) -> (i32, i32) {
    %c0_i32 = arith.constant 0 : i32
    %c0_i32_0 = arith.constant 0 : i32
    %c0_i32_1 = arith.constant 0 : i32
    return %c0_i32, %c0_i32_0 : i32, i32
  }
  func.func @transform_2(%arg0: i32, %arg1: i32) -> (i32, i32) {
    %c0_i32 = arith.constant 0 : i32
    %c0_i32_0 = arith.constant 0 : i32
    %c0_i32_1 = arith.constant 0 : i32
    return %c0_i32, %c0_i32_0 : i32, i32
  }
  func.func @transform_3(%arg0: i32, %arg1: i32) -> (i32, i32, i32, i32) {
    %c0_i32 = arith.constant 0 : i32
    %c0_i32_0 = arith.constant 0 : i32
    %c0_i32_1 = arith.constant 0 : i32
    return %arg0, %arg1, %c0_i32, %c0_i32_0 : i32, i32, i32, i32
  }
}

</mosaic_0001>

<llo_original>
// kernel: cnn_block_forward.1
$region0: #{cnn_block_forward.1}
  #allocation0 [shape = 'u32[]', space=smem, size = 0x4, offset = 0x4, fixed_abs, tag = 'smem constant byte address 0x4 - core index']
  #allocation1 [shape = 'u32[144,128]{1,0:T(1,128)}', space=vmem, size = 0x12000, scoped, tag = 'internal scratch']
  %s0 = inlined_call_operand.vmem [shape: bf16[2,1,1,18,72], index: 0, kind: input, shape index: {}]
  %s1 = inlined_call_operand.vmem [shape: bf16[36,128], index: 1, kind: input, shape index: {}]
  %s2 = inlined_call_operand.vmem [shape: f32[1,128], index: 2, kind: input, shape index: {}]
  %s3 = inlined_call_operand.vmem [shape: f32[2,16,16,128], index: 3, kind: output, shape index: {}]
  %s4 = sld [smem:[#allocation0]]
  $region45: #{cnn_block_forward.1} parent=0
    _
  %s6 = ssub.s32 1, %s4
  %s7 = scalar_select 0, %s6, %s4
  loop: start=0, step=1, limit=4
  $region2: #{cnn_block_forward.1} parent=0 // loop_pre_header
    _
  $region3: #{cnn_block_forward.1} parent=0 // loop_header
    %s9 = sphi 0, %s13
    %p10 = scmp.ge.s32.totalorder %s9, 4
    %s16 = sphi 0, %s28
    %s17 = sphi 0, %s24
    %s18 = sphi 0, %s16
    %s19 = sphi 0, %s17
    %s20 = sphi 0, %s18
    %s21 = sphi 0, %s19
    %s31 = sphi 0, %s33
    %s34 = sphi 0, %s31
    %s35 = sphi 0, %s34
    %s51 = sphi 0, %s35
    %s55 = sphi 0, %s55
    %s57 = sphi 0, %s55
    %s58 = sphi 0, %s57
    %s72 = sphi 0, %s58
    %s76 = sphi 0, %s76
    %s78 = sphi 0, %s76
    %s79 = sphi 0, %s78
    %s93 = sphi 0, %s79
    %s101 = sphi 0, %s103
    %s104 = sphi 0, %s101
    %s105 = sphi 0, %s104
    %s121 = sphi 0, %s105
  $region4: #{cnn_block_forward.1} parent=0 // loop_header_branch
    %12 = sbr.rel (%p10) target = $region8
  $region5: #{cnn_block_forward.1} parent=0 // loop_body
    %s14 = ssub.s32 %s9, 1
    %s15 = ssub.s32 %s9, 2
    %s22 = sadd.s32 1, %s17
    %p23 = scmp.ge.s32.totalorder %s22, 1
    %s24 = scalar_select %p23, 0, %s22
    %s25 = sadd.s32 1, %s16
    %s26 = scalar_select %p23, %s25, %s16
    %p27 = scmp.ge.s32.totalorder %s26, 2
    %s28 = scalar_select %p27, 0, %s26
    %s29 = ssub.s32 %s16, %s28
    %p30 = scmp.eq.s32.totalorder %s29, 0
    %s32 = sadd.s32 %s31, 1
    %s33 = scalar_select %p30, %s31, %s32
    %p36 = pneg %p30
    %p37 = scmp.eq.s32.totalorder %s9, 1
    %p38 = por %p36, %p37
    %p39 = scmp.ne.s32.totalorder %s31, %s34
    %p40 = scmp.eq.s32.totalorder %s9, 0
    %p41 = por %p39, %p40
    %p42 = scmp.ne.s32.totalorder %s31, %s34
    %p43 = scmp.eq.s32.totalorder %s14, 1
    %p44 = por %p42, %p43
    %p45 = scmp.ne.s32.totalorder %s34, %s35
    %p46 = scmp.eq.s32.totalorder %s14, 0
    %p47 = por %p45, %p46
    %p48 = scmp.ne.s32.totalorder %s34, %s35
    %p49 = scmp.eq.s32.totalorder %s15, 1
    %p50 = por %p48, %p49
    %p52 = scmp.ne.s32.totalorder %s35, %s51
    %p53 = scmp.eq.s32.totalorder %s15, 0
    %p54 = por %p52, %p53
    %s56 = sadd.s32 %s55, 1
    %p59 = scmp.eq.s32.totalorder %s9, 1
    %p60 = scmp.ne.s32.totalorder %s55, %s57
    %p61 = scmp.eq.s32.totalorder %s9, 0
    %p62 = por %p60, %p61
    %p63 = scmp.ne.s32.totalorder %s55, %s57
    %p64 = scmp.eq.s32.totalorder %s14, 1
    %p65 = por %p63, %p64
    %p66 = scmp.ne.s32.totalorder %s57, %s58
    %p67 = scmp.eq.s32.totalorder %s14, 0
    %p68 = por %p66, %p67
    %p69 = scmp.ne.s32.totalorder %s57, %s58
    %p70 = scmp.eq.s32.totalorder %s15, 1
    %p71 = por %p69, %p70
    %p73 = scmp.ne.s32.totalorder %s58, %s72
    %p74 = scmp.eq.s32.totalorder %s15, 0
    %p75 = por %p73, %p74
    %s77 = sadd.s32 %s76, 1
    %p80 = scmp.eq.s32.totalorder %s9, 1
    %p81 = scmp.ne.s32.totalorder %s76, %s78
    %p82 = scmp.eq.s32.totalorder %s9, 0
    %p83 = por %p81, %p82
    %p84 = scmp.ne.s32.totalorder %s76, %s78
    %p85 = scmp.eq.s32.totalorder %s14, 1
    %p86 = por %p84, %p85
    %p87 = scmp.ne.s32.totalorder %s78, %s79
    %p88 = scmp.eq.s32.totalorder %s14, 0
    %p89 = por %p87, %p88
    %p90 = scmp.ne.s32.totalorder %s78, %s79
    %p91 = scmp.eq.s32.totalorder %s15, 1
    %p92 = por %p90, %p91
    %p94 = scmp.ne.s32.totalorder %s79, %s93
    %p95 = scmp.eq.s32.totalorder %s15, 0
    %p96 = por %p94, %p95
    %s97 = ssub.s32 %s16, %s28
    %s98 = ssub.s32 %s17, %s24
    %s99 = sor.u32 %s97, %s98
    %p100 = scmp.eq.s32.totalorder %s99, 0
    %s102 = sadd.s32 %s101, 1
    %s103 = scalar_select %p100, %s101, %s102
    %p106 = pneg %p100
    %p107 = scmp.eq.s32.totalorder %s9, 1
    %p108 = por %p106, %p107
    %p109 = scmp.ne.s32.totalorder %s101, %s104
    %p110 = scmp.eq.s32.totalorder %s9, 0
    %p111 = por %p109, %p110
    %p112 = scmp.ne.s32.totalorder %s101, %s104
    %p113 = scmp.eq.s32.totalorder %s14, 1
    %p114 = por %p112, %p113
    %p115 = scmp.ne.s32.totalorder %s104, %s105
    %p116 = scmp.eq.s32.totalorder %s14, 0
    %p117 = por %p115, %p116
    %p118 = scmp.ne.s32.totalorder %s104, %s105
    %p119 = scmp.eq.s32.totalorder %s15, 1
    %p120 = por %p118, %p119
    %p122 = scmp.ne.s32.totalorder %s105, %s121
    %p123 = scmp.eq.s32.totalorder %s15, 0
    %p124 = por %p122, %p123
    %p125 = scmp.le.s32.totalorder 1, %s9
    %p126 = scmp.lt.s32.totalorder %s9, 3
    %p127 = pnand %p125, %p126
    %p128 = pneg %p127
    // Predicated region
    $region9: #{cnn_block_forward.1} parent=5 // pred_check
      _
    $region10: #{cnn_block_forward.1} parent=5 // pred_check_branch
      %130 = sbr.rel (%p127) target = $region12
    $region11: #{cnn_block_forward.1} parent=5 // pred_region
      %s131 = ssub.s32 %s9, 1
      // Predicated region
      $region13: #{cnn_block_forward.1} parent=11 // pred_check
        %p132 = pneg %p68
      $region14: #{cnn_block_forward.1} parent=11 // pred_check_branch
        %134 = sbr.rel (%p132) target = $region16
      $region15: #{cnn_block_forward.1} parent=11 // pred_region
        _
      $region16: #{cnn_block_forward.1} parent=11 // pred_fallthru
        _
      // Predicated region
      $region17: #{cnn_block_forward.1} parent=11 // pred_check
        %p135 = pneg %p89
      $region18: #{cnn_block_forward.1} parent=11 // pred_check_branch
        %137 = sbr.rel (%p135) target = $region20
      $region19: #{cnn_block_forward.1} parent=11 // pred_region
        _
      $region20: #{cnn_block_forward.1} parent=11 // pred_fallthru
        _
    $region12: #{cnn_block_forward.1} parent=5 // pred_fallthru
      _
    %p138 = scmp.lt.s32.totalorder %s9, 2
    // Predicated region
    $region21: #{cnn_block_forward.1} parent=5 // pred_check
      %p139 = pneg %p138
    $region22: #{cnn_block_forward.1} parent=5 // pred_check_branch
      %141 = sbr.rel (%p139) target = $region24
    $region23: #{cnn_block_forward.1} parent=5 // pred_region
      // Predicated region
      $region25: #{cnn_block_forward.1} parent=23 // pred_check
        %p142 = pneg %p41
      $region26: #{cnn_block_forward.1} parent=23 // pred_check_branch
        %144 = sbr.rel (%p142) target = $region28
      $region27: #{cnn_block_forward.1} parent=23 // pred_region
        %p145 = scmp.lt.s32.totalorder %s16, 1
        %s146 = scalar_select %p145, %s16, 1
        %s147 = smul.addr %s146, 3
        %s148 = smul.addr %s147, 4
        %s149 = scalar_lea.vmem %s0, %s148
      $region28: #{cnn_block_forward.1} parent=23 // pred_fallthru
        _
    $region24: #{cnn_block_forward.1} parent=5 // pred_fallthru
      _
    %p150 = scmp.le.s32.totalorder 1, %s9
    %p151 = scmp.lt.s32.totalorder %s9, 3
    %p152 = pnand %p150, %p151
    %p153 = pneg %p152
    // Predicated region
    $region29: #{cnn_block_forward.1} parent=5 // pred_check
      _
    $region30: #{cnn_block_forward.1} parent=5 // pred_check_branch
      %155 = sbr.rel (%p152) target = $region32
    $region31: #{cnn_block_forward.1} parent=5 // pred_region
      %s156 = ssub.s32 %s9, 1
      %p157 = scmp.lt.s32.totalorder %s18, 1
      %s158 = scalar_select %p157, %s18, 1
      %s159 = smul.addr %s158, 3
      %s160 = smul.addr %s159, 4
      %s161 = scalar_lea.vmem %s0, %s160
      %p162 = pneg %p47
      %p163 = pneg %p44
      %p164 = pneg %p68
      %p165 = pneg %p65
      %p166 = pneg %p89
      %p167 = pneg %p86
      %p168 = pneg %p117
      %p169 = pneg %p114
      %s170 = smul.u32 16, %s19
      %p171 = scmp.lt.s32.totalorder %s18, 1
      %s172 = scalar_select %p171, %s18, 1
      %p173 = scmp.lt.s32.totalorder %s170, 15
      %s174 = scalar_select %p173, %s170, 15
      %s175 = smul.addr %s174, 2
      %s176 = smul.addr %s172, 32
      %s177 = sadd.s32 %s175, %s176
      %s178 = smul.addr %s177, 8
      %s179 = scalar_lea.vmem %s3, %s178
      %p180 = scmp.lt.s32.totalorder %s18, 1
      %s181 = scalar_select %p180, %s18, 1
      %s182 = smul.addr %s181, 3
      %s183 = smul.addr %s182, 4
      %s184 = scalar_lea.vmem %s0, %s183
      %s185 = smul.u32 16, %s19
      %p186 = scmp.lt.s32.totalorder %s18, 1
      %s187 = scalar_select %p186, %s18, 1
      %p188 = scmp.lt.s32.totalorder %s185, 15
      %s189 = scalar_select %p188, %s185, 15
      %s190 = smul.addr %s189, 2
      %s191 = smul.addr %s187, 32
      %s192 = sadd.s32 %s190, %s191
      %s193 = smul.addr %s192, 8
      %s194 = scalar_lea.vmem %s3, %s193
      %s195 = smul.u32 16, %s19
      %s197 = smul.u32 %s19, 16
      %s198 = sshra.s32 %s197, 3
      %s199 = sand.u32 %s197, 7
      %s200 = smul.addr %s198, 4
      %s201 = scalar_lea.vmem %s184, %s200
      %v202 = vld [vmem:[%s201] sm:$0xf]
      %v203 = vld [vmem:[%s201 + $0x4] sm:$0xf]
      %v204 = vld [vmem:[%s201 + $0x8] sm:$0x1]
      %207 = vrot.lane.b32.xlu0 %v202, 124
      %v208 = vpop.permute.xlu0 %207
      %209 = vrot.lane.b32.xlu0 %v203, 124
      %v210 = vpop.permute.xlu0 %209
      %213 = vrot.lane.b32.xlu0 %v202, 120
      %v214 = vpop.permute.xlu0 %213
      %215 = vrot.lane.b32.xlu0 %v203, 120
      %v216 = vpop.permute.xlu0 %215
      %219 = vrot.lane.b32.xlu0 %v202, 116
      %v220 = vpop.permute.xlu0 %219
      %221 = vrot.lane.b32.xlu0 %v203, 116
      %v222 = vpop.permute.xlu0 %221
      %225 = vrot.lane.b32.xlu0 %v202, 112
      %v226 = vpop.permute.xlu0 %225
      %227 = vrot.lane.b32.xlu0 %v203, 112
      %v228 = vpop.permute.xlu0 %227
      %231 = vrot.lane.b32.xlu0 %v202, 108
      %v232 = vpop.permute.xlu0 %231
      %233 = vrot.lane.b32.xlu0 %v203, 108
      %v234 = vpop.permute.xlu0 %233
      %237 = vrot.lane.b32.xlu0 %v202, 104
      %v238 = vpop.permute.xlu0 %237
      %239 = vrot.lane.b32.xlu0 %v203, 104
      %v240 = vpop.permute.xlu0 %239
      %243 = vrot.lane.b32.xlu0 %v202, 100
      %v244 = vpop.permute.xlu0 %243
      %245 = vrot.lane.b32.xlu0 %v203, 100
      %v246 = vpop.permute.xlu0 %245
      %249 = vrot.lane.b32.xlu0 %v202, 96
      %v250 = vpop.permute.xlu0 %249
      %251 = vrot.lane.b32.xlu0 %v203, 96
      %v252 = vpop.permute.xlu0 %251
      %255 = vrot.lane.b32.xlu0 %v202, 92
      %v256 = vpop.permute.xlu0 %255
      %257 = vrot.lane.b32.xlu0 %v203, 92
      %v258 = vpop.permute.xlu0 %257
      %261 = vrot.lane.b32.xlu0 %v202, 88
      %v262 = vpop.permute.xlu0 %261
      %263 = vrot.lane.b32.xlu0 %v203, 88
      %v264 = vpop.permute.xlu0 %263
      %267 = vrot.lane.b32.xlu0 %v202, 84
      %v268 = vpop.permute.xlu0 %267
      %269 = vrot.lane.b32.xlu0 %v203, 84
      %v270 = vpop.permute.xlu0 %269
      %273 = vrot.lane.b32.xlu0 %v202, 80
      %v274 = vpop.permute.xlu0 %273
      %275 = vrot.lane.b32.xlu0 %v203, 80
      %v276 = vpop.permute.xlu0 %275
      %279 = vrot.lane.b32.xlu0 %v202, 76
      %v280 = vpop.permute.xlu0 %279
      %281 = vrot.lane.b32.xlu0 %v203, 76
      %v282 = vpop.permute.xlu0 %281
      %285 = vrot.lane.b32.xlu0 %v202, 72
      %v286 = vpop.permute.xlu0 %285
      %287 = vrot.lane.b32.xlu0 %v203, 72
      %v288 = vpop.permute.xlu0 %287
      %291 = vrot.lane.b32.xlu0 %v202, 68
      %v292 = vpop.permute.xlu0 %291
      %293 = vrot.lane.b32.xlu0 %v203, 68
      %v294 = vpop.permute.xlu0 %293
      %v297 = vcombine.low %v202, %v226
      %v299 = vunpack.c.l.s4 1983009808
      %v300 = vunpack.c.0.s8 %v299
      %v301 = vlaneseq
      %v302 = vshrl.u32 %v301, 7
      %v303 = vsub.s32 %v300, %v302
      %v304 = vrot.slane %v297, %v303
      %v305 = vcombine.low %v214, %v238
      %v307 = vunpack.c.l.s4 1983009808
      %v308 = vunpack.c.0.s8 %v307
      %v309 = vlaneseq
      %v310 = vshrl.u32 %v309, 7
      %v311 = vsub.s32 %v308, %v310
      %v312 = vrot.slane %v305, %v311
      %v313 = vcombine.low %v304, %v312
      %v314 = vcombine.high %v304, %v312
      %v316 = vunpack.c.l.s4 1934713408
      %v317 = vunpack.c.0.s8 %v316
      %v318 = vlaneseq
      %v319 = vshrl.u32 %v318, 7
      %v320 = vsub.s32 %v317, %v319
      %v321 = vrot.slane %v313, %v320
      %v323 = vunpack.c.l.s4 1934713408
      %v324 = vunpack.c.0.s8 %v323
      %v325 = vlaneseq
      %v326 = vshrl.u32 %v325, 7
      %v327 = vsub.s32 %v324, %v326
      %v328 = vrot.slane %v314, %v327
      %v329 = vcombine.high %v321, 0
      %v330 = vcombine.high %v328, 0
      %v331 = vcombine.low %v208, %v232
      %v333 = vunpack.c.l.s4 1983009808
      %v334 = vunpack.c.0.s8 %v333
      %v335 = vlaneseq
      %v336 = vshrl.u32 %v335, 7
      %v337 = vsub.s32 %v334, %v336
      %v338 = vrot.slane %v331, %v337
      %v339 = vcombine.low %v220, %v244
      %v341 = vunpack.c.l.s4 1983009808
      %v342 = vunpack.c.0.s8 %v341
      %v343 = vlaneseq
      %v344 = vshrl.u32 %v343, 7
      %v345 = vsub.s32 %v342, %v344
      %v346 = vrot.slane %v339, %v345
      %v347 = vcombine.low %v338, %v346
      %v348 = vcombine.high %v338, %v346
      %v350 = vunpack.c.l.s4 1934713408
      %v351 = vunpack.c.0.s8 %v350
      %v352 = vlaneseq
      %v353 = vshrl.u32 %v352, 7
      %v354 = vsub.s32 %v351, %v353
      %v355 = vrot.slane %v347, %v354
      %v357 = vunpack.c.l.s4 1934713408
      %v358 = vunpack.c.0.s8 %v357
      %v359 = vlaneseq
      %v360 = vshrl.u32 %v359, 7
      %v361 = vsub.s32 %v358, %v360
      %v362 = vrot.slane %v348, %v361
      %v363 = vcombine.high %v355, 0
      %v364 = vcombine.high %v362, 0
      %v365 = vcombine.low %v250, %v274
      %v367 = vunpack.c.l.s4 1983009808
      %v368 = vunpack.c.0.s8 %v367
      %v369 = vlaneseq
      %v370 = vshrl.u32 %v369, 7
      %v371 = vsub.s32 %v368, %v370
      %v372 = vrot.slane %v365, %v371
      %v373 = vcombine.low %v262, %v286
      %v375 = vunpack.c.l.s4 1983009808
      %v376 = vunpack.c.0.s8 %v375
      %v377 = vlaneseq
      %v378 = vshrl.u32 %v377, 7
      %v379 = vsub.s32 %v376, %v378
      %v380 = vrot.slane %v373, %v379
      %v381 = vcombine.low %v372, %v380
      %v382 = vcombine.high %v372, %v380
      %v384 = vunpack.c.l.s4 1934713408
      %v385 = vunpack.c.0.s8 %v384
      %v386 = vlaneseq
      %v387 = vshrl.u32 %v386, 7
      %v388 = vsub.s32 %v385, %v387
      %v389 = vrot.slane %v381, %v388
      %v391 = vunpack.c.l.s4 1934713408
      %v392 = vunpack.c.0.s8 %v391
      %v393 = vlaneseq
      %v394 = vshrl.u32 %v393, 7
      %v395 = vsub.s32 %v392, %v394
      %v396 = vrot.slane %v382, %v395
      %v397 = vcombine.high %v389, 0
      %v398 = vcombine.high %v396, 0
      %v399 = vcombine.low %v256, %v280
      %v401 = vunpack.c.l.s4 1983009808
      %v402 = vunpack.c.0.s8 %v401
      %v403 = vlaneseq
      %v404 = vshrl.u32 %v403, 7
      %v405 = vsub.s32 %v402, %v404
      %v406 = vrot.slane %v399, %v405
      %v407 = vcombine.low %v268, %v292
      %v409 = vunpack.c.l.s4 1983009808
      %v410 = vunpack.c.0.s8 %v409
      %v411 = vlaneseq
      %v412 = vshrl.u32 %v411, 7
      %v413 = vsub.s32 %v410, %v412
      %v414 = vrot.slane %v407, %v413
      %v415 = vcombine.low %v406, %v414
      %v416 = vcombine.high %v406, %v414
      %v418 = vunpack.c.l.s4 1934713408
      %v419 = vunpack.c.0.s8 %v418
      %v420 = vlaneseq
      %v421 = vshrl.u32 %v420, 7
      %v422 = vsub.s32 %v419, %v421
      %v423 = vrot.slane %v415, %v422
      %v425 = vunpack.c.l.s4 1934713408
      %v426 = vunpack.c.0.s8 %v425
      %v427 = vlaneseq
      %v428 = vshrl.u32 %v427, 7
      %v429 = vsub.s32 %v426, %v428
      %v430 = vrot.slane %v416, %v429
      %v431 = vcombine.high %v423, 0
      %v432 = vcombine.high %v430, 0
      %v433 = vcombine.low %v203, %v228
      %v435 = vunpack.c.l.s4 1983009808
      %v436 = vunpack.c.0.s8 %v435
      %v437 = vlaneseq
      %v438 = vshrl.u32 %v437, 7
      %v439 = vsub.s32 %v436, %v438
      %v440 = vrot.slane %v433, %v439
      %v441 = vcombine.low %v216, %v240
      %v443 = vunpack.c.l.s4 1983009808
      %v444 = vunpack.c.0.s8 %v443
      %v445 = vlaneseq
      %v446 = vshrl.u32 %v445, 7
      %v447 = vsub.s32 %v444, %v446
      %v448 = vrot.slane %v441, %v447
      %v449 = vcombine.low %v440, %v448
      %v450 = vcombine.high %v440, %v448
      %v452 = vunpack.c.l.s4 1934713408
      %v453 = vunpack.c.0.s8 %v452
      %v454 = vlaneseq
      %v455 = vshrl.u32 %v454, 7
      %v456 = vsub.s32 %v453, %v455
      %v457 = vrot.slane %v449, %v456
      %v459 = vunpack.c.l.s4 1934713408
      %v460 = vunpack.c.0.s8 %v459
      %v461 = vlaneseq
      %v462 = vshrl.u32 %v461, 7
      %v463 = vsub.s32 %v460, %v462
      %v464 = vrot.slane %v450, %v463
      %v465 = vcombine.high %v457, 0
      %v466 = vcombine.high %v464, 0
      %v467 = vcombine.low %v210, %v234
      %v469 = vunpack.c.l.s4 1983009808
      %v470 = vunpack.c.0.s8 %v469
      %v471 = vlaneseq
      %v472 = vshrl.u32 %v471, 7
      %v473 = vsub.s32 %v470, %v472
      %v474 = vrot.slane %v467, %v473
      %v475 = vcombine.low %v222, %v246
      %v477 = vunpack.c.l.s4 1983009808
      %v478 = vunpack.c.0.s8 %v477
      %v479 = vlaneseq
      %v480 = vshrl.u32 %v479, 7
      %v481 = vsub.s32 %v478, %v480
      %v482 = vrot.slane %v475, %v481
      %v483 = vcombine.low %v474, %v482
      %v484 = vcombine.high %v474, %v482
      %v486 = vunpack.c.l.s4 1934713408
      %v487 = vunpack.c.0.s8 %v486
      %v488 = vlaneseq
      %v489 = vshrl.u32 %v488, 7
      %v490 = vsub.s32 %v487, %v489
      %v491 = vrot.slane %v483, %v490
      %v493 = vunpack.c.l.s4 1934713408
      %v494 = vunpack.c.0.s8 %v493
      %v495 = vlaneseq
      %v496 = vshrl.u32 %v495, 7
      %v497 = vsub.s32 %v494, %v496
      %v498 = vrot.slane %v484, %v497
      %v499 = vcombine.high %v491, 0
      %v500 = vcombine.high %v498, 0
      %v501 = vcombine.low %v252, %v276
      %v503 = vunpack.c.l.s4 1983009808
      %v504 = vunpack.c.0.s8 %v503
      %v505 = vlaneseq
      %v506 = vshrl.u32 %v505, 7
      %v507 = vsub.s32 %v504, %v506
      %v508 = vrot.slane %v501, %v507
      %v509 = vcombine.low %v264, %v288
      %v511 = vunpack.c.l.s4 1983009808
      %v512 = vunpack.c.0.s8 %v511
      %v513 = vlaneseq
      %v514 = vshrl.u32 %v513, 7
      %v515 = vsub.s32 %v512, %v514
      %v516 = vrot.slane %v509, %v515
      %v517 = vcombine.low %v508, %v516
      %v518 = vcombine.high %v508, %v516
      %v520 = vunpack.c.l.s4 1934713408
      %v521 = vunpack.c.0.s8 %v520
      %v522 = vlaneseq
      %v523 = vshrl.u32 %v522, 7
      %v524 = vsub.s32 %v521, %v523
      %v525 = vrot.slane %v517, %v524
      %v527 = vunpack.c.l.s4 1934713408
      %v528 = vunpack.c.0.s8 %v527
      %v529 = vlaneseq
      %v530 = vshrl.u32 %v529, 7
      %v531 = vsub.s32 %v528, %v530
      %v532 = vrot.slane %v518, %v531
      %v533 = vcombine.high %v525, 0
      %v534 = vcombine.high %v532, 0
      %v535 = vcombine.low %v258, %v282
      %v537 = vunpack.c.l.s4 1983009808
      %v538 = vunpack.c.0.s8 %v537
      %v539 = vlaneseq
      %v540 = vshrl.u32 %v539, 7
      %v541 = vsub.s32 %v538, %v540
      %v542 = vrot.slane %v535, %v541
      %v543 = vcombine.low %v270, %v294
      %v545 = vunpack.c.l.s4 1983009808
      %v546 = vunpack.c.0.s8 %v545
      %v547 = vlaneseq
      %v548 = vshrl.u32 %v547, 7
      %v549 = vsub.s32 %v546, %v548
      %v550 = vrot.slane %v543, %v549
      %v551 = vcombine.low %v542, %v550
      %v552 = vcombine.high %v542, %v550
      %v554 = vunpack.c.l.s4 1934713408
      %v555 = vunpack.c.0.s8 %v554
      %v556 = vlaneseq
      %v557 = vshrl.u32 %v556, 7
      %v558 = vsub.s32 %v555, %v557
      %v559 = vrot.slane %v551, %v558
      %v561 = vunpack.c.l.s4 1934713408
      %v562 = vunpack.c.0.s8 %v561
      %v563 = vlaneseq
      %v564 = vshrl.u32 %v563, 7
      %v565 = vsub.s32 %v562, %v564
      %v566 = vrot.slane %v552, %v565
      %v567 = vcombine.high %v559, 0
      %v568 = vcombine.high %v566, 0
      %v571 = vpack.i.b16 %v355, %v321
      %v572 = vshrl.u32 %v321, 16
      %v573 = vshrl.u32 %v355, 16
      %v574 = vpack.i.b16 %v573, %v572
      %v577 = vpack.i.b16 %v363, %v329
      %v578 = vshrl.u32 %v329, 16
      %v579 = vshrl.u32 %v363, 16
      %v580 = vpack.i.b16 %v579, %v578
      %v583 = vpack.i.b16 %v362, %v328
      %v584 = vshrl.u32 %v328, 16
      %v585 = vshrl.u32 %v362, 16
      %v586 = vpack.i.b16 %v585, %v584
      %v589 = vpack.i.b16 %v364, %v330
      %v590 = vshrl.u32 %v330, 16
      %v591 = vshrl.u32 %v364, 16
      %v592 = vpack.i.b16 %v591, %v590
      %v595 = vpack.i.b16 %v491, %v457
      %v596 = vshrl.u32 %v457, 16
      %v597 = vshrl.u32 %v491, 16
      %v598 = vpack.i.b16 %v597, %v596
      %v601 = vpack.i.b16 %v499, %v465
      %v602 = vshrl.u32 %v465, 16
      %v603 = vshrl.u32 %v499, 16
      %v604 = vpack.i.b16 %v603, %v602
      %v607 = vpack.i.b16 %v498, %v464
      %v608 = vshrl.u32 %v464, 16
      %v609 = vshrl.u32 %v498, 16
      %v610 = vpack.i.b16 %v609, %v608
      %v613 = vpack.i.b16 %v500, %v466
      %v614 = vshrl.u32 %v466, 16
      %v615 = vshrl.u32 %v500, 16
      %v616 = vpack.i.b16 %v615, %v614
      %v619 = vpack.i.b16 %v423, %v389
      %v620 = vshrl.u32 %v389, 16
      %v621 = vshrl.u32 %v423, 16
      %v622 = vpack.i.b16 %v621, %v620
      %v625 = vpack.i.b16 %v431, %v397
      %v626 = vshrl.u32 %v397, 16
      %v627 = vshrl.u32 %v431, 16
      %v628 = vpack.i.b16 %v627, %v626
      %v631 = vpack.i.b16 %v430, %v396
      %v632 = vshrl.u32 %v396, 16
      %v633 = vshrl.u32 %v430, 16
      %v634 = vpack.i.b16 %v633, %v632
      %v637 = vpack.i.b16 %v432, %v398
      %v638 = vshrl.u32 %v398, 16
      %v639 = vshrl.u32 %v432, 16
      %v640 = vpack.i.b16 %v639, %v638
      %v643 = vpack.i.b16 %v559, %v525
      %v644 = vshrl.u32 %v525, 16
      %v645 = vshrl.u32 %v559, 16
      %v646 = vpack.i.b16 %v645, %v644
      %v649 = vpack.i.b16 %v567, %v533
      %v650 = vshrl.u32 %v533, 16
      %v651 = vshrl.u32 %v567, 16
      %v652 = vpack.i.b16 %v651, %v650
      %v655 = vpack.i.b16 %v566, %v532
      %v656 = vshrl.u32 %v532, 16
      %v657 = vshrl.u32 %v566, 16
      %v658 = vpack.i.b16 %v657, %v656
      %v661 = vpack.i.b16 %v568, %v534
      %v662 = vshrl.u32 %v534, 16
      %v663 = vshrl.u32 %v568, 16
      %v664 = vpack.i.b16 %v663, %v662
      %665 = vrot.lane.b32.xlu0 %v208, 124
      %v666 = vpop.permute.xlu0 %665
      %667 = vrot.lane.b32.xlu0 %v210, 124
      %v668 = vpop.permute.xlu0 %667
      %669 = vrot.lane.b32.xlu0 %v214, 124
      %v670 = vpop.permute.xlu0 %669
      %671 = vrot.lane.b32.xlu0 %v216, 124
      %v672 = vpop.permute.xlu0 %671
      %673 = vrot.lane.b32.xlu0 %v220, 124
      %v674 = vpop.permute.xlu0 %673
      %675 = vrot.lane.b32.xlu0 %v222, 124
      %v676 = vpop.permute.xlu0 %675
      %677 = vrot.lane.b32.xlu0 %v226, 124
      %v678 = vpop.permute.xlu0 %677
      %679 = vrot.lane.b32.xlu0 %v228, 124
      %v680 = vpop.permute.xlu0 %679
      %681 = vrot.lane.b32.xlu0 %v232, 124
      %v682 = vpop.permute.xlu0 %681
      %683 = vrot.lane.b32.xlu0 %v234, 124
      %v684 = vpop.permute.xlu0 %683
      %685 = vrot.lane.b32.xlu0 %v238, 124
      %v686 = vpop.permute.xlu0 %685
      %687 = vrot.lane.b32.xlu0 %v240, 124
      %v688 = vpop.permute.xlu0 %687
      %689 = vrot.lane.b32.xlu0 %v244, 124
      %v690 = vpop.permute.xlu0 %689
      %691 = vrot.lane.b32.xlu0 %v246, 124
      %v692 = vpop.permute.xlu0 %691
      %693 = vrot.lane.b32.xlu0 %v250, 124
      %v694 = vpop.permute.xlu0 %693
      %695 = vrot.lane.b32.xlu0 %v252, 124
      %v696 = vpop.permute.xlu0 %695
      %697 = vrot.lane.b32.xlu0 %v256, 124
      %v698 = vpop.permute.xlu0 %697
      %699 = vrot.lane.b32.xlu0 %v258, 124
      %v700 = vpop.permute.xlu0 %699
      %701 = vrot.lane.b32.xlu0 %v262, 124
      %v702 = vpop.permute.xlu0 %701
      %703 = vrot.lane.b32.xlu0 %v264, 124
      %v704 = vpop.permute.xlu0 %703
      %705 = vrot.lane.b32.xlu0 %v268, 124
      %v706 = vpop.permute.xlu0 %705
      %707 = vrot.lane.b32.xlu0 %v270, 124
      %v708 = vpop.permute.xlu0 %707
      %709 = vrot.lane.b32.xlu0 %v274, 124
      %v710 = vpop.permute.xlu0 %709
      %711 = vrot.lane.b32.xlu0 %v276, 124
      %v712 = vpop.permute.xlu0 %711
      %713 = vrot.lane.b32.xlu0 %v280, 124
      %v714 = vpop.permute.xlu0 %713
      %715 = vrot.lane.b32.xlu0 %v282, 124
      %v716 = vpop.permute.xlu0 %715
      %717 = vrot.lane.b32.xlu0 %v286, 124
      %v718 = vpop.permute.xlu0 %717
      %719 = vrot.lane.b32.xlu0 %v288, 124
      %v720 = vpop.permute.xlu0 %719
      %721 = vrot.lane.b32.xlu0 %v292, 124
      %v722 = vpop.permute.xlu0 %721
      %723 = vrot.lane.b32.xlu0 %v294, 124
      %v724 = vpop.permute.xlu0 %723
      %v755 = vcombine.low %v208, %v678
      %v757 = vunpack.c.l.s4 1983009808
      %v758 = vunpack.c.0.s8 %v757
      %v759 = vlaneseq
      %v760 = vshrl.u32 %v759, 7
      %v761 = vsub.s32 %v758, %v760
      %v762 = vrot.slane %v755, %v761
      %v763 = vcombine.low %v670, %v686
      %v765 = vunpack.c.l.s4 1983009808
      %v766 = vunpack.c.0.s8 %v765
      %v767 = vlaneseq
      %v768 = vshrl.u32 %v767, 7
      %v769 = vsub.s32 %v766, %v768
      %v770 = vrot.slane %v763, %v769
      %v771 = vcombine.low %v762, %v770
      %v772 = vcombine.high %v762, %v770
      %v774 = vunpack.c.l.s4 1934713408
      %v775 = vunpack.c.0.s8 %v774
      %v776 = vlaneseq
      %v777 = vshrl.u32 %v776, 7
      %v778 = vsub.s32 %v775, %v777
      %v779 = vrot.slane %v771, %v778
      %v781 = vunpack.c.l.s4 1934713408
      %v782 = vunpack.c.0.s8 %v781
      %v783 = vlaneseq
      %v784 = vshrl.u32 %v783, 7
      %v785 = vsub.s32 %v782, %v784
      %v786 = vrot.slane %v772, %v785
      %v787 = vcombine.high %v779, 0
      %v788 = vcombine.high %v786, 0
      %v789 = vcombine.low %v666, %v682
      %v791 = vunpack.c.l.s4 1983009808
      %v792 = vunpack.c.0.s8 %v791
      %v793 = vlaneseq
      %v794 = vshrl.u32 %v793, 7
      %v795 = vsub.s32 %v792, %v794
      %v796 = vrot.slane %v789, %v795
      %v797 = vcombine.low %v674, %v690
      %v799 = vunpack.c.l.s4 1983009808
      %v800 = vunpack.c.0.s8 %v799
      %v801 = vlaneseq
      %v802 = vshrl.u32 %v801, 7
      %v803 = vsub.s32 %v800, %v802
      %v804 = vrot.slane %v797, %v803
      %v805 = vcombine.low %v796, %v804
      %v806 = vcombine.high %v796, %v804
      %v808 = vunpack.c.l.s4 1934713408
      %v809 = vunpack.c.0.s8 %v808
      %v810 = vlaneseq
      %v811 = vshrl.u32 %v810, 7
      %v812 = vsub.s32 %v809, %v811
      %v813 = vrot.slane %v805, %v812
      %v815 = vunpack.c.l.s4 1934713408
      %v816 = vunpack.c.0.s8 %v815
      %v817 = vlaneseq
      %v818 = vshrl.u32 %v817, 7
      %v819 = vsub.s32 %v816, %v818
      %v820 = vrot.slane %v806, %v819
      %v821 = vcombine.high %v813, 0
      %v822 = vcombine.high %v820, 0
      %v823 = vcombine.low %v694, %v710
      %v825 = vunpack.c.l.s4 1983009808
      %v826 = vunpack.c.0.s8 %v825
      %v827 = vlaneseq
      %v828 = vshrl.u32 %v827, 7
      %v829 = vsub.s32 %v826, %v828
      %v830 = vrot.slane %v823, %v829
      %v831 = vcombine.low %v702, %v718
      %v833 = vunpack.c.l.s4 1983009808
      %v834 = vunpack.c.0.s8 %v833
      %v835 = vlaneseq
      %v836 = vshrl.u32 %v835, 7
      %v837 = vsub.s32 %v834, %v836
      %v838 = vrot.slane %v831, %v837
      %v839 = vcombine.low %v830, %v838
      %v840 = vcombine.high %v830, %v838
      %v842 = vunpack.c.l.s4 1934713408
      %v843 = vunpack.c.0.s8 %v842
      %v844 = vlaneseq
      %v845 = vshrl.u32 %v844, 7
      %v846 = vsub.s32 %v843, %v845
      %v847 = vrot.slane %v839, %v846
      %v849 = vunpack.c.l.s4 1934713408
      %v850 = vunpack.c.0.s8 %v849
      %v851 = vlaneseq
      %v852 = vshrl.u32 %v851, 7
      %v853 = vsub.s32 %v850, %v852
      %v854 = vrot.slane %v840, %v853
      %v855 = vcombine.high %v847, 0
      %v856 = vcombine.high %v854, 0
      %v857 = vcombine.low %v698, %v714
      %v859 = vunpack.c.l.s4 1983009808
      %v860 = vunpack.c.0.s8 %v859
      %v861 = vlaneseq
      %v862 = vshrl.u32 %v861, 7
      %v863 = vsub.s32 %v860, %v862
      %v864 = vrot.slane %v857, %v863
      %v865 = vcombine.low %v706, %v722
      %v867 = vunpack.c.l.s4 1983009808
      %v868 = vunpack.c.0.s8 %v867
      %v869 = vlaneseq
      %v870 = vshrl.u32 %v869, 7
      %v871 = vsub.s32 %v868, %v870
      %v872 = vrot.slane %v865, %v871
      %v873 = vcombine.low %v864, %v872
      %v874 = vcombine.high %v864, %v872
      %v876 = vunpack.c.l.s4 1934713408
      %v877 = vunpack.c.0.s8 %v876
      %v878 = vlaneseq
      %v879 = vshrl.u32 %v878, 7
      %v880 = vsub.s32 %v877, %v879
      %v881 = vrot.slane %v873, %v880
      %v883 = vunpack.c.l.s4 1934713408
      %v884 = vunpack.c.0.s8 %v883
      %v885 = vlaneseq
      %v886 = vshrl.u32 %v885, 7
      %v887 = vsub.s32 %v884, %v886
      %v888 = vrot.slane %v874, %v887
      %v889 = vcombine.high %v881, 0
      %v890 = vcombine.high %v888, 0
      %v891 = vcombine.low %v210, %v680
      %v893 = vunpack.c.l.s4 1983009808
      %v894 = vunpack.c.0.s8 %v893
      %v895 = vlaneseq
      %v896 = vshrl.u32 %v895, 7
      %v897 = vsub.s32 %v894, %v896
      %v898 = vrot.slane %v891, %v897
      %v899 = vcombine.low %v672, %v688
      %v901 = vunpack.c.l.s4 1983009808
      %v902 = vunpack.c.0.s8 %v901
      %v903 = vlaneseq
      %v904 = vshrl.u32 %v903, 7
      %v905 = vsub.s32 %v902, %v904
      %v906 = vrot.slane %v899, %v905
      %v907 = vcombine.low %v898, %v906
      %v908 = vcombine.high %v898, %v906
      %v910 = vunpack.c.l.s4 1934713408
      %v911 = vunpack.c.0.s8 %v910
      %v912 = vlaneseq
      %v913 = vshrl.u32 %v912, 7
      %v914 = vsub.s32 %v911, %v913
      %v915 = vrot.slane %v907, %v914
      %v917 = vunpack.c.l.s4 1934713408
      %v918 = vunpack.c.0.s8 %v917
      %v919 = vlaneseq
      %v920 = vshrl.u32 %v919, 7
      %v921 = vsub.s32 %v918, %v920
      %v922 = vrot.slane %v908, %v921
      %v923 = vcombine.high %v915, 0
      %v924 = vcombine.high %v922, 0
      %v925 = vcombine.low %v668, %v684
      %v927 = vunpack.c.l.s4 1983009808
      %v928 = vunpack.c.0.s8 %v927
      %v929 = vlaneseq
      %v930 = vshrl.u32 %v929, 7
      %v931 = vsub.s32 %v928, %v930
      %v932 = vrot.slane %v925, %v931
      %v933 = vcombine.low %v676, %v692
      %v935 = vunpack.c.l.s4 1983009808
      %v936 = vunpack.c.0.s8 %v935
      %v937 = vlaneseq
      %v938 = vshrl.u32 %v937, 7
      %v939 = vsub.s32 %v936, %v938
      %v940 = vrot.slane %v933, %v939
      %v941 = vcombine.low %v932, %v940
      %v942 = vcombine.high %v932, %v940
      %v944 = vunpack.c.l.s4 1934713408
      %v945 = vunpack.c.0.s8 %v944
      %v946 = vlaneseq
      %v947 = vshrl.u32 %v946, 7
      %v948 = vsub.s32 %v945, %v947
      %v949 = vrot.slane %v941, %v948
      %v951 = vunpack.c.l.s4 1934713408
      %v952 = vunpack.c.0.s8 %v951
      %v953 = vlaneseq
      %v954 = vshrl.u32 %v953, 7
      %v955 = vsub.s32 %v952, %v954
      %v956 = vrot.slane %v942, %v955
      %v957 = vcombine.high %v949, 0
      %v958 = vcombine.high %v956, 0
      %v959 = vcombine.low %v696, %v712
      %v961 = vunpack.c.l.s4 1983009808
      %v962 = vunpack.c.0.s8 %v961
      %v963 = vlaneseq
      %v964 = vshrl.u32 %v963, 7
      %v965 = vsub.s32 %v962, %v964
      %v966 = vrot.slane %v959, %v965
      %v967 = vcombine.low %v704, %v720
      %v969 = vunpack.c.l.s4 1983009808
      %v970 = vunpack.c.0.s8 %v969
      %v971 = vlaneseq
      %v972 = vshrl.u32 %v971, 7
      %v973 = vsub.s32 %v970, %v972
      %v974 = vrot.slane %v967, %v973
      %v975 = vcombine.low %v966, %v974
      %v976 = vcombine.high %v966, %v974
      %v978 = vunpack.c.l.s4 1934713408
      %v979 = vunpack.c.0.s8 %v978
      %v980 = vlaneseq
      %v981 = vshrl.u32 %v980, 7
      %v982 = vsub.s32 %v979, %v981
      %v983 = vrot.slane %v975, %v982
      %v985 = vunpack.c.l.s4 1934713408
      %v986 = vunpack.c.0.s8 %v985
      %v987 = vlaneseq
      %v988 = vshrl.u32 %v987, 7
      %v989 = vsub.s32 %v986, %v988
      %v990 = vrot.slane %v976, %v989
      %v991 = vcombine.high %v983, 0
      %v992 = vcombine.high %v990, 0
      %v993 = vcombine.low %v700, %v716
      %v995 = vunpack.c.l.s4 1983009808
      %v996 = vunpack.c.0.s8 %v995
      %v997 = vlaneseq
      %v998 = vshrl.u32 %v997, 7
      %v999 = vsub.s32 %v996, %v998
      %v1000 = vrot.slane %v993, %v999
      %v1001 = vcombine.low %v708, %v724
      %v1003 = vunpack.c.l.s4 1983009808
      %v1004 = vunpack.c.0.s8 %v1003
      %v1005 = vlaneseq
      %v1006 = vshrl.u32 %v1005, 7
      %v1007 = vsub.s32 %v1004, %v1006
      %v1008 = vrot.slane %v1001, %v1007
      %v1009 = vcombine.low %v1000, %v1008
      %v1010 = vcombine.high %v1000, %v1008
      %v1012 = vunpack.c.l.s4 1934713408
      %v1013 = vunpack.c.0.s8 %v1012
      %v1014 = vlaneseq
      %v1015 = vshrl.u32 %v1014, 7
      %v1016 = vsub.s32 %v1013, %v1015
      %v1017 = vrot.slane %v1009, %v1016
      %v1019 = vunpack.c.l.s4 1934713408
      %v1020 = vunpack.c.0.s8 %v1019
      %v1021 = vlaneseq
      %v1022 = vshrl.u32 %v1021, 7
      %v1023 = vsub.s32 %v1020, %v1022
      %v1024 = vrot.slane %v1010, %v1023
      %v1025 = vcombine.high %v1017, 0
      %v1026 = vcombine.high %v1024, 0
      %v1029 = vpack.i.b16 %v813, %v779
      %v1030 = vshrl.u32 %v779, 16
      %v1031 = vshrl.u32 %v813, 16
      %v1032 = vpack.i.b16 %v1031, %v1030
      %v1035 = vpack.i.b16 %v821, %v787
      %v1036 = vshrl.u32 %v787, 16
      %v1037 = vshrl.u32 %v821, 16
      %v1038 = vpack.i.b16 %v1037, %v1036
      %v1041 = vpack.i.b16 %v820, %v786
      %v1042 = vshrl.u32 %v786, 16
      %v1043 = vshrl.u32 %v820, 16
      %v1044 = vpack.i.b16 %v1043, %v1042
      %v1047 = vpack.i.b16 %v822, %v788
      %v1048 = vshrl.u32 %v788, 16
      %v1049 = vshrl.u32 %v822, 16
      %v1050 = vpack.i.b16 %v1049, %v1048
      %v1053 = vpack.i.b16 %v949, %v915
      %v1054 = vshrl.u32 %v915, 16
      %v1055 = vshrl.u32 %v949, 16
      %v1056 = vpack.i.b16 %v1055, %v1054
      %v1059 = vpack.i.b16 %v957, %v923
      %v1060 = vshrl.u32 %v923, 16
      %v1061 = vshrl.u32 %v957, 16
      %v1062 = vpack.i.b16 %v1061, %v1060
      %v1065 = vpack.i.b16 %v956, %v922
      %v1066 = vshrl.u32 %v922, 16
      %v1067 = vshrl.u32 %v956, 16
      %v1068 = vpack.i.b16 %v1067, %v1066
      %v1071 = vpack.i.b16 %v958, %v924
      %v1072 = vshrl.u32 %v924, 16
      %v1073 = vshrl.u32 %v958, 16
      %v1074 = vpack.i.b16 %v1073, %v1072
      %v1077 = vpack.i.b16 %v881, %v847
      %v1078 = vshrl.u32 %v847, 16
      %v1079 = vshrl.u32 %v881, 16
      %v1080 = vpack.i.b16 %v1079, %v1078
      %v1083 = vpack.i.b16 %v889, %v855
      %v1084 = vshrl.u32 %v855, 16
      %v1085 = vshrl.u32 %v889, 16
      %v1086 = vpack.i.b16 %v1085, %v1084
      %v1089 = vpack.i.b16 %v888, %v854
      %v1090 = vshrl.u32 %v854, 16
      %v1091 = vshrl.u32 %v888, 16
      %v1092 = vpack.i.b16 %v1091, %v1090
      %v1095 = vpack.i.b16 %v890, %v856
      %v1096 = vshrl.u32 %v856, 16
      %v1097 = vshrl.u32 %v890, 16
      %v1098 = vpack.i.b16 %v1097, %v1096
      %v1101 = vpack.i.b16 %v1017, %v983
      %v1102 = vshrl.u32 %v983, 16
      %v1103 = vshrl.u32 %v1017, 16
      %v1104 = vpack.i.b16 %v1103, %v1102
      %v1107 = vpack.i.b16 %v1025, %v991
      %v1108 = vshrl.u32 %v991, 16
      %v1109 = vshrl.u32 %v1025, 16
      %v1110 = vpack.i.b16 %v1109, %v1108
      %v1113 = vpack.i.b16 %v1024, %v990
      %v1114 = vshrl.u32 %v990, 16
      %v1115 = vshrl.u32 %v1024, 16
      %v1116 = vpack.i.b16 %v1115, %v1114
      %v1119 = vpack.i.b16 %v1026, %v992
      %v1120 = vshrl.u32 %v992, 16
      %v1121 = vshrl.u32 %v1026, 16
      %v1122 = vpack.i.b16 %v1121, %v1120
      %1123 = vrot.lane.b32.xlu0 %v208, 120
      %v1124 = vpop.permute.xlu0 %1123
      %1125 = vrot.lane.b32.xlu0 %v210, 120
      %v1126 = vpop.permute.xlu0 %1125
      %1127 = vrot.lane.b32.xlu0 %v214, 120
      %v1128 = vpop.permute.xlu0 %1127
      %1129 = vrot.lane.b32.xlu0 %v216, 120
      %v1130 = vpop.permute.xlu0 %1129
      %1131 = vrot.lane.b32.xlu0 %v220, 120
      %v1132 = vpop.permute.xlu0 %1131
      %1133 = vrot.lane.b32.xlu0 %v222, 120
      %v1134 = vpop.permute.xlu0 %1133
      %1135 = vrot.lane.b32.xlu0 %v226, 120
      %v1136 = vpop.permute.xlu0 %1135
      %1137 = vrot.lane.b32.xlu0 %v228, 120
      %v1138 = vpop.permute.xlu0 %1137
      %1139 = vrot.lane.b32.xlu0 %v232, 120
      %v1140 = vpop.permute.xlu0 %1139
      %1141 = vrot.lane.b32.xlu0 %v234, 120
      %v1142 = vpop.permute.xlu0 %1141
      %1143 = vrot.lane.b32.xlu0 %v238, 120
      %v1144 = vpop.permute.xlu0 %1143
      %1145 = vrot.lane.b32.xlu0 %v240, 120
      %v1146 = vpop.permute.xlu0 %1145
      %1147 = vrot.lane.b32.xlu0 %v244, 120
      %v1148 = vpop.permute.xlu0 %1147
      %1149 = vrot.lane.b32.xlu0 %v246, 120
      %v1150 = vpop.permute.xlu0 %1149
      %1151 = vrot.lane.b32.xlu0 %v250, 120
      %v1152 = vpop.permute.xlu0 %1151
      %1153 = vrot.lane.b32.xlu0 %v252, 120
      %v1154 = vpop.permute.xlu0 %1153
      %1155 = vrot.lane.b32.xlu0 %v256, 120
      %v1156 = vpop.permute.xlu0 %1155
      %1157 = vrot.lane.b32.xlu0 %v258, 120
      %v1158 = vpop.permute.xlu0 %1157
      %1159 = vrot.lane.b32.xlu0 %v262, 120
      %v1160 = vpop.permute.xlu0 %1159
      %1161 = vrot.lane.b32.xlu0 %v264, 120
      %v1162 = vpop.permute.xlu0 %1161
      %1163 = vrot.lane.b32.xlu0 %v268, 120
      %v1164 = vpop.permute.xlu0 %1163
      %1165 = vrot.lane.b32.xlu0 %v270, 120
      %v1166 = vpop.permute.xlu0 %1165
      %1167 = vrot.lane.b32.xlu0 %v274, 120
      %v1168 = vpop.permute.xlu0 %1167
      %1169 = vrot.lane.b32.xlu0 %v276, 120
      %v1170 = vpop.permute.xlu0 %1169
      %1171 = vrot.lane.b32.xlu0 %v280, 120
      %v1172 = vpop.permute.xlu0 %1171
      %1173 = vrot.lane.b32.xlu0 %v282, 120
      %v1174 = vpop.permute.xlu0 %1173
      %1175 = vrot.lane.b32.xlu0 %v286, 120
      %v1176 = vpop.permute.xlu0 %1175
      %1177 = vrot.lane.b32.xlu0 %v288, 120
      %v1178 = vpop.permute.xlu0 %1177
      %1179 = vrot.lane.b32.xlu0 %v292, 120
      %v1180 = vpop.permute.xlu0 %1179
      %1181 = vrot.lane.b32.xlu0 %v294, 120
      %v1182 = vpop.permute.xlu0 %1181
      %v1213 = vcombine.low %v214, %v1136
      %v1215 = vunpack.c.l.s4 1983009808
      %v1216 = vunpack.c.0.s8 %v1215
      %v1217 = vlaneseq
      %v1218 = vshrl.u32 %v1217, 7
      %v1219 = vsub.s32 %v1216, %v1218
      %v1220 = vrot.slane %v1213, %v1219
      %v1221 = vcombine.low %v1128, %v1144
      %v1223 = vunpack.c.l.s4 1983009808
      %v1224 = vunpack.c.0.s8 %v1223
      %v1225 = vlaneseq
      %v1226 = vshrl.u32 %v1225, 7
      %v1227 = vsub.s32 %v1224, %v1226
      %v1228 = vrot.slane %v1221, %v1227
      %v1229 = vcombine.low %v1220, %v1228
      %v1230 = vcombine.high %v1220, %v1228
      %v1232 = vunpack.c.l.s4 1934713408
      %v1233 = vunpack.c.0.s8 %v1232
      %v1234 = vlaneseq
      %v1235 = vshrl.u32 %v1234, 7
      %v1236 = vsub.s32 %v1233, %v1235
      %v1237 = vrot.slane %v1229, %v1236
      %v1239 = vunpack.c.l.s4 1934713408
      %v1240 = vunpack.c.0.s8 %v1239
      %v1241 = vlaneseq
      %v1242 = vshrl.u32 %v1241, 7
      %v1243 = vsub.s32 %v1240, %v1242
      %v1244 = vrot.slane %v1230, %v1243
      %v1245 = vcombine.high %v1237, 0
      %v1246 = vcombine.high %v1244, 0
      %v1247 = vcombine.low %v1124, %v1140
      %v1249 = vunpack.c.l.s4 1983009808
      %v1250 = vunpack.c.0.s8 %v1249
      %v1251 = vlaneseq
      %v1252 = vshrl.u32 %v1251, 7
      %v1253 = vsub.s32 %v1250, %v1252
      %v1254 = vrot.slane %v1247, %v1253
      %v1255 = vcombine.low %v1132, %v1148
      %v1257 = vunpack.c.l.s4 1983009808
      %v1258 = vunpack.c.0.s8 %v1257
      %v1259 = vlaneseq
      %v1260 = vshrl.u32 %v1259, 7
      %v1261 = vsub.s32 %v1258, %v1260
      %v1262 = vrot.slane %v1255, %v1261
      %v1263 = vcombine.low %v1254, %v1262
      %v1264 = vcombine.high %v1254, %v1262
      %v1266 = vunpack.c.l.s4 1934713408
      %v1267 = vunpack.c.0.s8 %v1266
      %v1268 = vlaneseq
      %v1269 = vshrl.u32 %v1268, 7
      %v1270 = vsub.s32 %v1267, %v1269
      %v1271 = vrot.slane %v1263, %v1270
      %v1273 = vunpack.c.l.s4 1934713408
      %v1274 = vunpack.c.0.s8 %v1273
      %v1275 = vlaneseq
      %v1276 = vshrl.u32 %v1275, 7
      %v1277 = vsub.s32 %v1274, %v1276
      %v1278 = vrot.slane %v1264, %v1277
      %v1279 = vcombine.high %v1271, 0
      %v1280 = vcombine.high %v1278, 0
      %v1281 = vcombine.low %v1152, %v1168
      %v1283 = vunpack.c.l.s4 1983009808
      %v1284 = vunpack.c.0.s8 %v1283
      %v1285 = vlaneseq
      %v1286 = vshrl.u32 %v1285, 7
      %v1287 = vsub.s32 %v1284, %v1286
      %v1288 = vrot.slane %v1281, %v1287
      %v1289 = vcombine.low %v1160, %v1176
      %v1291 = vunpack.c.l.s4 1983009808
      %v1292 = vunpack.c.0.s8 %v1291
      %v1293 = vlaneseq
      %v1294 = vshrl.u32 %v1293, 7
      %v1295 = vsub.s32 %v1292, %v1294
      %v1296 = vrot.slane %v1289, %v1295
      %v1297 = vcombine.low %v1288, %v1296
      %v1298 = vcombine.high %v1288, %v1296
      %v1300 = vunpack.c.l.s4 1934713408
      %v1301 = vunpack.c.0.s8 %v1300
      %v1302 = vlaneseq
      %v1303 = vshrl.u32 %v1302, 7
      %v1304 = vsub.s32 %v1301, %v1303
      %v1305 = vrot.slane %v1297, %v1304
      %v1307 = vunpack.c.l.s4 1934713408
      %v1308 = vunpack.c.0.s8 %v1307
      %v1309 = vlaneseq
      %v1310 = vshrl.u32 %v1309, 7
      %v1311 = vsub.s32 %v1308, %v1310
      %v1312 = vrot.slane %v1298, %v1311
      %v1313 = vcombine.high %v1305, 0
      %v1314 = vcombine.high %v1312, 0
      %v1315 = vcombine.low %v1156, %v1172
      %v1317 = vunpack.c.l.s4 1983009808
      %v1318 = vunpack.c.0.s8 %v1317
      %v1319 = vlaneseq
      %v1320 = vshrl.u32 %v1319, 7
      %v1321 = vsub.s32 %v1318, %v1320
      %v1322 = vrot.slane %v1315, %v1321
      %v1323 = vcombine.low %v1164, %v1180
      %v1325 = vunpack.c.l.s4 1983009808
      %v1326 = vunpack.c.0.s8 %v1325
      %v1327 = vlaneseq
      %v1328 = vshrl.u32 %v1327, 7
      %v1329 = vsub.s32 %v1326, %v1328
      %v1330 = vrot.slane %v1323, %v1329
      %v1331 = vcombine.low %v1322, %v1330
      %v1332 = vcombine.high %v1322, %v1330
      %v1334 = vunpack.c.l.s4 1934713408
      %v1335 = vunpack.c.0.s8 %v1334
      %v1336 = vlaneseq
      %v1337 = vshrl.u32 %v1336, 7
      %v1338 = vsub.s32 %v1335, %v1337
      %v1339 = vrot.slane %v1331, %v1338
      %v1341 = vunpack.c.l.s4 1934713408
      %v1342 = vunpack.c.0.s8 %v1341
      %v1343 = vlaneseq
      %v1344 = vshrl.u32 %v1343, 7
      %v1345 = vsub.s32 %v1342, %v1344
      %v1346 = vrot.slane %v1332, %v1345
      %v1347 = vcombine.high %v1339, 0
      %v1348 = vcombine.high %v1346, 0
      %v1349 = vcombine.low %v216, %v1138
      %v1351 = vunpack.c.l.s4 1983009808
      %v1352 = vunpack.c.0.s8 %v1351
      %v1353 = vlaneseq
      %v1354 = vshrl.u32 %v1353, 7
      %v1355 = vsub.s32 %v1352, %v1354
      %v1356 = vrot.slane %v1349, %v1355
      %v1357 = vcombine.low %v1130, %v1146
      %v1359 = vunpack.c.l.s4 1983009808
      %v1360 = vunpack.c.0.s8 %v1359
      %v1361 = vlaneseq
      %v1362 = vshrl.u32 %v1361, 7
      %v1363 = vsub.s32 %v1360, %v1362
      %v1364 = vrot.slane %v1357, %v1363
      %v1365 = vcombine.low %v1356, %v1364
      %v1366 = vcombine.high %v1356, %v1364
      %v1368 = vunpack.c.l.s4 1934713408
      %v1369 = vunpack.c.0.s8 %v1368
      %v1370 = vlaneseq
      %v1371 = vshrl.u32 %v1370, 7
      %v1372 = vsub.s32 %v1369, %v1371
      %v1373 = vrot.slane %v1365, %v1372
      %v1375 = vunpack.c.l.s4 1934713408
      %v1376 = vunpack.c.0.s8 %v1375
      %v1377 = vlaneseq
      %v1378 = vshrl.u32 %v1377, 7
      %v1379 = vsub.s32 %v1376, %v1378
      %v1380 = vrot.slane %v1366, %v1379
      %v1381 = vcombine.high %v1373, 0
      %v1382 = vcombine.high %v1380, 0
      %v1383 = vcombine.low %v1126, %v1142
      %v1385 = vunpack.c.l.s4 1983009808
      %v1386 = vunpack.c.0.s8 %v1385
      %v1387 = vlaneseq
      %v1388 = vshrl.u32 %v1387, 7
      %v1389 = vsub.s32 %v1386, %v1388
      %v1390 = vrot.slane %v1383, %v1389
      %v1391 = vcombine.low %v1134, %v1150
      %v1393 = vunpack.c.l.s4 1983009808
      %v1394 = vunpack.c.0.s8 %v1393
      %v1395 = vlaneseq
      %v1396 = vshrl.u32 %v1395, 7
      %v1397 = vsub.s32 %v1394, %v1396
      %v1398 = vrot.slane %v1391, %v1397
      %v1399 = vcombine.low %v1390, %v1398
      %v1400 = vcombine.high %v1390, %v1398
      %v1402 = vunpack.c.l.s4 1934713408
      %v1403 = vunpack.c.0.s8 %v1402
      %v1404 = vlaneseq
      %v1405 = vshrl.u32 %v1404, 7
      %v1406 = vsub.s32 %v1403, %v1405
      %v1407 = vrot.slane %v1399, %v1406
      %v1409 = vunpack.c.l.s4 1934713408
      %v1410 = vunpack.c.0.s8 %v1409
      %v1411 = vlaneseq
      %v1412 = vshrl.u32 %v1411, 7
      %v1413 = vsub.s32 %v1410, %v1412
      %v1414 = vrot.slane %v1400, %v1413
      %v1415 = vcombine.high %v1407, 0
      %v1416 = vcombine.high %v1414, 0
      %v1417 = vcombine.low %v1154, %v1170
      %v1419 = vunpack.c.l.s4 1983009808
      %v1420 = vunpack.c.0.s8 %v1419
      %v1421 = vlaneseq
      %v1422 = vshrl.u32 %v1421, 7
      %v1423 = vsub.s32 %v1420, %v1422
      %v1424 = vrot.slane %v1417, %v1423
      %v1425 = vcombine.low %v1162, %v1178
      %v1427 = vunpack.c.l.s4 1983009808
      %v1428 = vunpack.c.0.s8 %v1427
      %v1429 = vlaneseq
      %v1430 = vshrl.u32 %v1429, 7
      %v1431 = vsub.s32 %v1428, %v1430
      %v1432 = vrot.slane %v1425, %v1431
      %v1433 = vcombine.low %v1424, %v1432
      %v1434 = vcombine.high %v1424, %v1432
      %v1436 = vunpack.c.l.s4 1934713408
      %v1437 = vunpack.c.0.s8 %v1436
      %v1438 = vlaneseq
      %v1439 = vshrl.u32 %v1438, 7
      %v1440 = vsub.s32 %v1437, %v1439
      %v1441 = vrot.slane %v1433, %v1440
      %v1443 = vunpack.c.l.s4 1934713408
      %v1444 = vunpack.c.0.s8 %v1443
      %v1445 = vlaneseq
      %v1446 = vshrl.u32 %v1445, 7
      %v1447 = vsub.s32 %v1444, %v1446
      %v1448 = vrot.slane %v1434, %v1447
      %v1449 = vcombine.high %v1441, 0
      %v1450 = vcombine.high %v1448, 0
      %v1451 = vcombine.low %v1158, %v1174
      %v1453 = vunpack.c.l.s4 1983009808
      %v1454 = vunpack.c.0.s8 %v1453
      %v1455 = vlaneseq
      %v1456 = vshrl.u32 %v1455, 7
      %v1457 = vsub.s32 %v1454, %v1456
      %v1458 = vrot.slane %v1451, %v1457
      %v1459 = vcombine.low %v1166, %v1182
      %v1461 = vunpack.c.l.s4 1983009808
      %v1462 = vunpack.c.0.s8 %v1461
      %v1463 = vlaneseq
      %v1464 = vshrl.u32 %v1463, 7
      %v1465 = vsub.s32 %v1462, %v1464
      %v1466 = vrot.slane %v1459, %v1465
      %v1467 = vcombine.low %v1458, %v1466
      %v1468 = vcombine.high %v1458, %v1466
      %v1470 = vunpack.c.l.s4 1934713408
      %v1471 = vunpack.c.0.s8 %v1470
      %v1472 = vlaneseq
      %v1473 = vshrl.u32 %v1472, 7
      %v1474 = vsub.s32 %v1471, %v1473
      %v1475 = vrot.slane %v1467, %v1474
      %v1477 = vunpack.c.l.s4 1934713408
      %v1478 = vunpack.c.0.s8 %v1477
      %v1479 = vlaneseq
      %v1480 = vshrl.u32 %v1479, 7
      %v1481 = vsub.s32 %v1478, %v1480
      %v1482 = vrot.slane %v1468, %v1481
      %v1483 = vcombine.high %v1475, 0
      %v1484 = vcombine.high %v1482, 0
      %v1487 = vpack.i.b16 %v1271, %v1237
      %v1488 = vshrl.u32 %v1237, 16
      %v1489 = vshrl.u32 %v1271, 16
      %v1490 = vpack.i.b16 %v1489, %v1488
      %v1493 = vpack.i.b16 %v1279, %v1245
      %v1494 = vshrl.u32 %v1245, 16
      %v1495 = vshrl.u32 %v1279, 16
      %v1496 = vpack.i.b16 %v1495, %v1494
      %v1499 = vpack.i.b16 %v1278, %v1244
      %v1500 = vshrl.u32 %v1244, 16
      %v1501 = vshrl.u32 %v1278, 16
      %v1502 = vpack.i.b16 %v1501, %v1500
      %v1505 = vpack.i.b16 %v1280, %v1246
      %v1506 = vshrl.u32 %v1246, 16
      %v1507 = vshrl.u32 %v1280, 16
      %v1508 = vpack.i.b16 %v1507, %v1506
      %v1511 = vpack.i.b16 %v1407, %v1373
      %v1512 = vshrl.u32 %v1373, 16
      %v1513 = vshrl.u32 %v1407, 16
      %v1514 = vpack.i.b16 %v1513, %v1512
      %v1517 = vpack.i.b16 %v1415, %v1381
      %v1518 = vshrl.u32 %v1381, 16
      %v1519 = vshrl.u32 %v1415, 16
      %v1520 = vpack.i.b16 %v1519, %v1518
      %v1523 = vpack.i.b16 %v1414, %v1380
      %v1524 = vshrl.u32 %v1380, 16
      %v1525 = vshrl.u32 %v1414, 16
      %v1526 = vpack.i.b16 %v1525, %v1524
      %v1529 = vpack.i.b16 %v1416, %v1382
      %v1530 = vshrl.u32 %v1382, 16
      %v1531 = vshrl.u32 %v1416, 16
      %v1532 = vpack.i.b16 %v1531, %v1530
      %v1535 = vpack.i.b16 %v1339, %v1305
      %v1536 = vshrl.u32 %v1305, 16
      %v1537 = vshrl.u32 %v1339, 16
      %v1538 = vpack.i.b16 %v1537, %v1536
      %v1541 = vpack.i.b16 %v1347, %v1313
      %v1542 = vshrl.u32 %v1313, 16
      %v1543 = vshrl.u32 %v1347, 16
      %v1544 = vpack.i.b16 %v1543, %v1542
      %v1547 = vpack.i.b16 %v1346, %v1312
      %v1548 = vshrl.u32 %v1312, 16
      %v1549 = vshrl.u32 %v1346, 16
      %v1550 = vpack.i.b16 %v1549, %v1548
      %v1553 = vpack.i.b16 %v1348, %v1314
      %v1554 = vshrl.u32 %v1314, 16
      %v1555 = vshrl.u32 %v1348, 16
      %v1556 = vpack.i.b16 %v1555, %v1554
      %v1559 = vpack.i.b16 %v1475, %v1441
      %v1560 = vshrl.u32 %v1441, 16
      %v1561 = vshrl.u32 %v1475, 16
      %v1562 = vpack.i.b16 %v1561, %v1560
      %v1565 = vpack.i.b16 %v1483, %v1449
      %v1566 = vshrl.u32 %v1449, 16
      %v1567 = vshrl.u32 %v1483, 16
      %v1568 = vpack.i.b16 %v1567, %v1566
      %v1571 = vpack.i.b16 %v1482, %v1448
      %v1572 = vshrl.u32 %v1448, 16
      %v1573 = vshrl.u32 %v1482, 16
      %v1574 = vpack.i.b16 %v1573, %v1572
      %v1577 = vpack.i.b16 %v1484, %v1450
      %v1578 = vshrl.u32 %v1450, 16
      %v1579 = vshrl.u32 %v1484, 16
      %v1580 = vpack.i.b16 %v1579, %v1578
      %1582 = vrot.lane.b32.xlu0 %v204, 124
      %v1583 = vpop.permute.xlu0 %1582
      %1584 = vrot.lane.b32.xlu0 %v204, 120
      %v1585 = vpop.permute.xlu0 %1584
      %1586 = vrot.lane.b32.xlu0 %v204, 116
      %v1587 = vpop.permute.xlu0 %1586
      %1588 = vrot.lane.b32.xlu0 %v204, 112
      %v1589 = vpop.permute.xlu0 %1588
      %1590 = vrot.lane.b32.xlu0 %v204, 108
      %v1591 = vpop.permute.xlu0 %1590
      %1592 = vrot.lane.b32.xlu0 %v204, 104
      %v1593 = vpop.permute.xlu0 %1592
      %1594 = vrot.lane.b32.xlu0 %v204, 100
      %v1595 = vpop.permute.xlu0 %1594
      %1596 = vrot.lane.b32.xlu0 %v204, 96
      %v1597 = vpop.permute.xlu0 %1596
      %1598 = vrot.lane.b32.xlu0 %v204, 92
      %v1599 = vpop.permute.xlu0 %1598
      %1600 = vrot.lane.b32.xlu0 %v204, 88
      %v1601 = vpop.permute.xlu0 %1600
      %1602 = vrot.lane.b32.xlu0 %v204, 84
      %v1603 = vpop.permute.xlu0 %1602
      %1604 = vrot.lane.b32.xlu0 %v204, 80
      %v1605 = vpop.permute.xlu0 %1604
      %1606 = vrot.lane.b32.xlu0 %v204, 76
      %v1607 = vpop.permute.xlu0 %1606
      %1608 = vrot.lane.b32.xlu0 %v204, 72
      %v1609 = vpop.permute.xlu0 %1608
      %1610 = vrot.lane.b32.xlu0 %v204, 68
      %v1611 = vpop.permute.xlu0 %1610
      %vm1612 = vsmask.f32 3328
      %vm1613 = vsmask.f32 7440
      %vm1614 = vmor %vm1612, %vm1613
      %v1616 = vshrl.u32 %v202, 16
      %v1618 = vrot.slane %v1616, 4
      %v1619 = vshll.u32 %v202, 16
      %v1621 = vrot.slane %v1619, 5
      %v1622 = vor.u32 %v1618, %v1621
      %v1623 = vrot.slane %v1622, 4
      %v1625 = vshll.u32 %v203, 16
      %v1627 = vrot.slane %v1625, 5
      %v1628 = vsel %vm1614, %v1623, %v1627
      %v1629 = vshrl.u32 %v203, 16
      %v1631 = vrot.slane %v1629, 4
      %v1632 = vor.u32 %v1631, %v1627
      %v1633 = vrot.slane %v1632, 4
      %v1635 = vshll.u32 %v204, 16
      %v1637 = vrot.slane %v1635, 5
      %v1638 = vsel %vm1614, %v1633, %v1637
      %v1640 = vshrl.u32 %v208, 16
      %v1642 = vrot.slane %v1640, 4
      %v1643 = vshll.u32 %v208, 16
      %v1645 = vrot.slane %v1643, 5
      %v1646 = vor.u32 %v1642, %v1645
      %v1647 = vrot.slane %v1646, 4
      %v1649 = vshll.u32 %v210, 16
      %v1651 = vrot.slane %v1649, 5
      %v1652 = vsel %vm1614, %v1647, %v1651
      %v1653 = vshrl.u32 %v210, 16
      %v1655 = vrot.slane %v1653, 4
      %v1656 = vor.u32 %v1655, %v1651
      %v1657 = vrot.slane %v1656, 4
      %v1659 = vshll.u32 %v1583, 16
      %v1661 = vrot.slane %v1659, 5
      %v1662 = vsel %vm1614, %v1657, %v1661
      %v1664 = vshrl.u32 %v214, 16
      %v1666 = vrot.slane %v1664, 4
      %v1667 = vshll.u32 %v214, 16
      %v1669 = vrot.slane %v1667, 5
      %v1670 = vor.u32 %v1666, %v1669
      %v1671 = vrot.slane %v1670, 4
      %v1673 = vshll.u32 %v216, 16
      %v1675 = vrot.slane %v1673, 5
      %v1676 = vsel %vm1614, %v1671, %v1675
      %v1677 = vshrl.u32 %v216, 16
      %v1679 = vrot.slane %v1677, 4
      %v1680 = vor.u32 %v1679, %v1675
      %v1681 = vrot.slane %v1680, 4
      %v1683 = vshll.u32 %v1585, 16
      %v1685 = vrot.slane %v1683, 5
      %v1686 = vsel %vm1614, %v1681, %v1685
      %v1688 = vshrl.u32 %v220, 16
      %v1690 = vrot.slane %v1688, 4
      %v1691 = vshll.u32 %v220, 16
      %v1693 = vrot.slane %v1691, 5
      %v1694 = vor.u32 %v1690, %v1693
      %v1695 = vrot.slane %v1694, 4
      %v1697 = vshll.u32 %v222, 16
      %v1699 = vrot.slane %v1697, 5
      %v1700 = vsel %vm1614, %v1695, %v1699
      %v1701 = vshrl.u32 %v222, 16
      %v1703 = vrot.slane %v1701, 4
      %v1704 = vor.u32 %v1703, %v1699
      %v1705 = vrot.slane %v1704, 4
      %v1707 = vshll.u32 %v1587, 16
      %v1709 = vrot.slane %v1707, 5
      %v1710 = vsel %vm1614, %v1705, %v1709
      %v1712 = vshrl.u32 %v226, 16
      %v1714 = vrot.slane %v1712, 4
      %v1715 = vshll.u32 %v226, 16
      %v1717 = vrot.slane %v1715, 5
      %v1718 = vor.u32 %v1714, %v1717
      %v1719 = vrot.slane %v1718, 4
      %v1721 = vshll.u32 %v228, 16
      %v1723 = vrot.slane %v1721, 5
      %v1724 = vsel %vm1614, %v1719, %v1723
      %v1725 = vshrl.u32 %v228, 16
      %v1727 = vrot.slane %v1725, 4
      %v1728 = vor.u32 %v1727, %v1723
      %v1729 = vrot.slane %v1728, 4
      %v1731 = vshll.u32 %v1589, 16
      %v1733 = vrot.slane %v1731, 5
      %v1734 = vsel %vm1614, %v1729, %v1733
      %v1736 = vshrl.u32 %v232, 16
      %v1738 = vrot.slane %v1736, 4
      %v1739 = vshll.u32 %v232, 16
      %v1741 = vrot.slane %v1739, 5
      %v1742 = vor.u32 %v1738, %v1741
      %v1743 = vrot.slane %v1742, 4
      %v1745 = vshll.u32 %v234, 16
      %v1747 = vrot.slane %v1745, 5
      %v1748 = vsel %vm1614, %v1743, %v1747
      %v1749 = vshrl.u32 %v234, 16
      %v1751 = vrot.slane %v1749, 4
      %v1752 = vor.u32 %v1751, %v1747
      %v1753 = vrot.slane %v1752, 4
      %v1755 = vshll.u32 %v1591, 16
      %v1757 = vrot.slane %v1755, 5
      %v1758 = vsel %vm1614, %v1753, %v1757
      %v1760 = vshrl.u32 %v238, 16
      %v1762 = vrot.slane %v1760, 4
      %v1763 = vshll.u32 %v238, 16
      %v1765 = vrot.slane %v1763, 5
      %v1766 = vor.u32 %v1762, %v1765
      %v1767 = vrot.slane %v1766, 4
      %v1769 = vshll.u32 %v240, 16
      %v1771 = vrot.slane %v1769, 5
      %v1772 = vsel %vm1614, %v1767, %v1771
      %v1773 = vshrl.u32 %v240, 16
      %v1775 = vrot.slane %v1773, 4
      %v1776 = vor.u32 %v1775, %v1771
      %v1777 = vrot.slane %v1776, 4
      %v1779 = vshll.u32 %v1593, 16
      %v1781 = vrot.slane %v1779, 5
      %v1782 = vsel %vm1614, %v1777, %v1781
      %v1784 = vshrl.u32 %v244, 16
      %v1786 = vrot.slane %v1784, 4
      %v1787 = vshll.u32 %v244, 16
      %v1789 = vrot.slane %v1787, 5
      %v1790 = vor.u32 %v1786, %v1789
      %v1791 = vrot.slane %v1790, 4
      %v1793 = vshll.u32 %v246, 16
      %v1795 = vrot.slane %v1793, 5
      %v1796 = vsel %vm1614, %v1791, %v1795
      %v1797 = vshrl.u32 %v246, 16
      %v1799 = vrot.slane %v1797, 4
      %v1800 = vor.u32 %v1799, %v1795
      %v1801 = vrot.slane %v1800, 4
      %v1803 = vshll.u32 %v1595, 16
      %v1805 = vrot.slane %v1803, 5
      %v1806 = vsel %vm1614, %v1801, %v1805
      %v1808 = vshrl.u32 %v250, 16
      %v1810 = vrot.slane %v1808, 4
      %v1811 = vshll.u32 %v250, 16
      %v1813 = vrot.slane %v1811, 5
      %v1814 = vor.u32 %v1810, %v1813
      %v1815 = vrot.slane %v1814, 4
      %v1817 = vshll.u32 %v252, 16
      %v1819 = vrot.slane %v1817, 5
      %v1820 = vsel %vm1614, %v1815, %v1819
      %v1821 = vshrl.u32 %v252, 16
      %v1823 = vrot.slane %v1821, 4
      %v1824 = vor.u32 %v1823, %v1819
      %v1825 = vrot.slane %v1824, 4
      %v1827 = vshll.u32 %v1597, 16
      %v1829 = vrot.slane %v1827, 5
      %v1830 = vsel %vm1614, %v1825, %v1829
      %v1832 = vshrl.u32 %v256, 16
      %v1834 = vrot.slane %v1832, 4
      %v1835 = vshll.u32 %v256, 16
      %v1837 = vrot.slane %v1835, 5
      %v1838 = vor.u32 %v1834, %v1837
      %v1839 = vrot.slane %v1838, 4
      %v1841 = vshll.u32 %v258, 16
      %v1843 = vrot.slane %v1841, 5
      %v1844 = vsel %vm1614, %v1839, %v1843
      %v1845 = vshrl.u32 %v258, 16
      %v1847 = vrot.slane %v1845, 4
      %v1848 = vor.u32 %v1847, %v1843
      %v1849 = vrot.slane %v1848, 4
      %v1851 = vshll.u32 %v1599, 16
      %v1853 = vrot.slane %v1851, 5
      %v1854 = vsel %vm1614, %v1849, %v1853
      %v1856 = vshrl.u32 %v262, 16
      %v1858 = vrot.slane %v1856, 4
      %v1859 = vshll.u32 %v262, 16
      %v1861 = vrot.slane %v1859, 5
      %v1862 = vor.u32 %v1858, %v1861
      %v1863 = vrot.slane %v1862, 4
      %v1865 = vshll.u32 %v264, 16
      %v1867 = vrot.slane %v1865, 5
      %v1868 = vsel %vm1614, %v1863, %v1867
      %v1869 = vshrl.u32 %v264, 16
      %v1871 = vrot.slane %v1869, 4
      %v1872 = vor.u32 %v1871, %v1867
      %v1873 = vrot.slane %v1872, 4
      %v1875 = vshll.u32 %v1601, 16
      %v1877 = vrot.slane %v1875, 5
      %v1878 = vsel %vm1614, %v1873, %v1877
      %v1880 = vshrl.u32 %v268, 16
      %v1882 = vrot.slane %v1880, 4
      %v1883 = vshll.u32 %v268, 16
      %v1885 = vrot.slane %v1883, 5
      %v1886 = vor.u32 %v1882, %v1885
      %v1887 = vrot.slane %v1886, 4
      %v1889 = vshll.u32 %v270, 16
      %v1891 = vrot.slane %v1889, 5
      %v1892 = vsel %vm1614, %v1887, %v1891
      %v1893 = vshrl.u32 %v270, 16
      %v1895 = vrot.slane %v1893, 4
      %v1896 = vor.u32 %v1895, %v1891
      %v1897 = vrot.slane %v1896, 4
      %v1899 = vshll.u32 %v1603, 16
      %v1901 = vrot.slane %v1899, 5
      %v1902 = vsel %vm1614, %v1897, %v1901
      %v1904 = vshrl.u32 %v274, 16
      %v1906 = vrot.slane %v1904, 4
      %v1907 = vshll.u32 %v274, 16
      %v1909 = vrot.slane %v1907, 5
      %v1910 = vor.u32 %v1906, %v1909
      %v1911 = vrot.slane %v1910, 4
      %v1913 = vshll.u32 %v276, 16
      %v1915 = vrot.slane %v1913, 5
      %v1916 = vsel %vm1614, %v1911, %v1915
      %v1917 = vshrl.u32 %v276, 16
      %v1919 = vrot.slane %v1917, 4
      %v1920 = vor.u32 %v1919, %v1915
      %v1921 = vrot.slane %v1920, 4
      %v1923 = vshll.u32 %v1605, 16
      %v1925 = vrot.slane %v1923, 5
      %v1926 = vsel %vm1614, %v1921, %v1925
      %v1928 = vshrl.u32 %v280, 16
      %v1930 = vrot.slane %v1928, 4
      %v1931 = vshll.u32 %v280, 16
      %v1933 = vrot.slane %v1931, 5
      %v1934 = vor.u32 %v1930, %v1933
      %v1935 = vrot.slane %v1934, 4
      %v1937 = vshll.u32 %v282, 16
      %v1939 = vrot.slane %v1937, 5
      %v1940 = vsel %vm1614, %v1935, %v1939
      %v1941 = vshrl.u32 %v282, 16
      %v1943 = vrot.slane %v1941, 4
      %v1944 = vor.u32 %v1943, %v1939
      %v1945 = vrot.slane %v1944, 4
      %v1947 = vshll.u32 %v1607, 16
      %v1949 = vrot.slane %v1947, 5
      %v1950 = vsel %vm1614, %v1945, %v1949
      %v1952 = vshrl.u32 %v286, 16
      %v1954 = vrot.slane %v1952, 4
      %v1955 = vshll.u32 %v286, 16
      %v1957 = vrot.slane %v1955, 5
      %v1958 = vor.u32 %v1954, %v1957
      %v1959 = vrot.slane %v1958, 4
      %v1961 = vshll.u32 %v288, 16
      %v1963 = vrot.slane %v1961, 5
      %v1964 = vsel %vm1614, %v1959, %v1963
      %v1965 = vshrl.u32 %v288, 16
      %v1967 = vrot.slane %v1965, 4
      %v1968 = vor.u32 %v1967, %v1963
      %v1969 = vrot.slane %v1968, 4
      %v1971 = vshll.u32 %v1609, 16
      %v1973 = vrot.slane %v1971, 5
      %v1974 = vsel %vm1614, %v1969, %v1973
      %v1976 = vshrl.u32 %v292, 16
      %v1978 = vrot.slane %v1976, 4
      %v1979 = vshll.u32 %v292, 16
      %v1981 = vrot.slane %v1979, 5
      %v1982 = vor.u32 %v1978, %v1981
      %v1983 = vrot.slane %v1982, 4
      %v1985 = vshll.u32 %v294, 16
      %v1987 = vrot.slane %v1985, 5
      %v1988 = vsel %vm1614, %v1983, %v1987
      %v1989 = vshrl.u32 %v294, 16
      %v1991 = vrot.slane %v1989, 4
      %v1992 = vor.u32 %v1991, %v1987
      %v1993 = vrot.slane %v1992, 4
      %v1995 = vshll.u32 %v1611, 16
      %v1997 = vrot.slane %v1995, 5
      %v1998 = vsel %vm1614, %v1993, %v1997
      %v2031 = vcombine.low %v1628, %v1724
      %v2033 = vunpack.c.l.s4 1983009808
      %v2034 = vunpack.c.0.s8 %v2033
      %v2035 = vlaneseq
      %v2036 = vshrl.u32 %v2035, 7
      %v2037 = vsub.s32 %v2034, %v2036
      %v2038 = vrot.slane %v2031, %v2037
      %v2039 = vcombine.low %v1676, %v1772
      %v2041 = vunpack.c.l.s4 1983009808
      %v2042 = vunpack.c.0.s8 %v2041
      %v2043 = vlaneseq
      %v2044 = vshrl.u32 %v2043, 7
      %v2045 = vsub.s32 %v2042, %v2044
      %v2046 = vrot.slane %v2039, %v2045
      %v2047 = vcombine.low %v2038, %v2046
      %v2048 = vcombine.high %v2038, %v2046
      %v2050 = vunpack.c.l.s4 1934713408
      %v2051 = vunpack.c.0.s8 %v2050
      %v2052 = vlaneseq
      %v2053 = vshrl.u32 %v2052, 7
      %v2054 = vsub.s32 %v2051, %v2053
      %v2055 = vrot.slane %v2047, %v2054
      %v2057 = vunpack.c.l.s4 1934713408
      %v2058 = vunpack.c.0.s8 %v2057
      %v2059 = vlaneseq
      %v2060 = vshrl.u32 %v2059, 7
      %v2061 = vsub.s32 %v2058, %v2060
      %v2062 = vrot.slane %v2048, %v2061
      %v2063 = vcombine.high %v2055, 0
      %v2064 = vcombine.high %v2062, 0
      %v2065 = vcombine.low %v1652, %v1748
      %v2067 = vunpack.c.l.s4 1983009808
      %v2068 = vunpack.c.0.s8 %v2067
      %v2069 = vlaneseq
      %v2070 = vshrl.u32 %v2069, 7
      %v2071 = vsub.s32 %v2068, %v2070
      %v2072 = vrot.slane %v2065, %v2071
      %v2073 = vcombine.low %v1700, %v1796
      %v2075 = vunpack.c.l.s4 1983009808
      %v2076 = vunpack.c.0.s8 %v2075
      %v2077 = vlaneseq
      %v2078 = vshrl.u32 %v2077, 7
      %v2079 = vsub.s32 %v2076, %v2078
      %v2080 = vrot.slane %v2073, %v2079
      %v2081 = vcombine.low %v2072, %v2080
      %v2082 = vcombine.high %v2072, %v2080
      %v2084 = vunpack.c.l.s4 1934713408
      %v2085 = vunpack.c.0.s8 %v2084
      %v2086 = vlaneseq
      %v2087 = vshrl.u32 %v2086, 7
      %v2088 = vsub.s32 %v2085, %v2087
      %v2089 = vrot.slane %v2081, %v2088
      %v2091 = vunpack.c.l.s4 1934713408
      %v2092 = vunpack.c.0.s8 %v2091
      %v2093 = vlaneseq
      %v2094 = vshrl.u32 %v2093, 7
      %v2095 = vsub.s32 %v2092, %v2094
      %v2096 = vrot.slane %v2082, %v2095
      %v2097 = vcombine.high %v2089, 0
      %v2098 = vcombine.high %v2096, 0
      %v2099 = vcombine.low %v1820, %v1916
      %v2101 = vunpack.c.l.s4 1983009808
      %v2102 = vunpack.c.0.s8 %v2101
      %v2103 = vlaneseq
      %v2104 = vshrl.u32 %v2103, 7
      %v2105 = vsub.s32 %v2102, %v2104
      %v2106 = vrot.slane %v2099, %v2105
      %v2107 = vcombine.low %v1868, %v1964
      %v2109 = vunpack.c.l.s4 1983009808
      %v2110 = vunpack.c.0.s8 %v2109
      %v2111 = vlaneseq
      %v2112 = vshrl.u32 %v2111, 7
      %v2113 = vsub.s32 %v2110, %v2112
      %v2114 = vrot.slane %v2107, %v2113
      %v2115 = vcombine.low %v2106, %v2114
      %v2116 = vcombine.high %v2106, %v2114
      %v2118 = vunpack.c.l.s4 1934713408
      %v2119 = vunpack.c.0.s8 %v2118
      %v2120 = vlaneseq
      %v2121 = vshrl.u32 %v2120, 7
      %v2122 = vsub.s32 %v2119, %v2121
      %v2123 = vrot.slane %v2115, %v2122
      %v2125 = vunpack.c.l.s4 1934713408
      %v2126 = vunpack.c.0.s8 %v2125
      %v2127 = vlaneseq
      %v2128 = vshrl.u32 %v2127, 7
      %v2129 = vsub.s32 %v2126, %v2128
      %v2130 = vrot.slane %v2116, %v2129
      %v2131 = vcombine.high %v2123, 0
      %v2132 = vcombine.high %v2130, 0
      %v2133 = vcombine.low %v1844, %v1940
      %v2135 = vunpack.c.l.s4 1983009808
      %v2136 = vunpack.c.0.s8 %v2135
      %v2137 = vlaneseq
      %v2138 = vshrl.u32 %v2137, 7
      %v2139 = vsub.s32 %v2136, %v2138
      %v2140 = vrot.slane %v2133, %v2139
      %v2141 = vcombine.low %v1892, %v1988
      %v2143 = vunpack.c.l.s4 1983009808
      %v2144 = vunpack.c.0.s8 %v2143
      %v2145 = vlaneseq
      %v2146 = vshrl.u32 %v2145, 7
      %v2147 = vsub.s32 %v2144, %v2146
      %v2148 = vrot.slane %v2141, %v2147
      %v2149 = vcombine.low %v2140, %v2148
      %v2150 = vcombine.high %v2140, %v2148
      %v2152 = vunpack.c.l.s4 1934713408
      %v2153 = vunpack.c.0.s8 %v2152
      %v2154 = vlaneseq
      %v2155 = vshrl.u32 %v2154, 7
      %v2156 = vsub.s32 %v2153, %v2155
      %v2157 = vrot.slane %v2149, %v2156
      %v2159 = vunpack.c.l.s4 1934713408
      %v2160 = vunpack.c.0.s8 %v2159
      %v2161 = vlaneseq
      %v2162 = vshrl.u32 %v2161, 7
      %v2163 = vsub.s32 %v2160, %v2162
      %v2164 = vrot.slane %v2150, %v2163
      %v2165 = vcombine.high %v2157, 0
      %v2166 = vcombine.high %v2164, 0
      %v2167 = vcombine.low %v1638, %v1734
      %v2169 = vunpack.c.l.s4 1983009808
      %v2170 = vunpack.c.0.s8 %v2169
      %v2171 = vlaneseq
      %v2172 = vshrl.u32 %v2171, 7
      %v2173 = vsub.s32 %v2170, %v2172
      %v2174 = vrot.slane %v2167, %v2173
      %v2175 = vcombine.low %v1686, %v1782
      %v2177 = vunpack.c.l.s4 1983009808
      %v2178 = vunpack.c.0.s8 %v2177
      %v2179 = vlaneseq
      %v2180 = vshrl.u32 %v2179, 7
      %v2181 = vsub.s32 %v2178, %v2180
      %v2182 = vrot.slane %v2175, %v2181
      %v2183 = vcombine.low %v2174, %v2182
      %v2184 = vcombine.high %v2174, %v2182
      %v2186 = vunpack.c.l.s4 1934713408
      %v2187 = vunpack.c.0.s8 %v2186
      %v2188 = vlaneseq
      %v2189 = vshrl.u32 %v2188, 7
      %v2190 = vsub.s32 %v2187, %v2189
      %v2191 = vrot.slane %v2183, %v2190
      %v2193 = vunpack.c.l.s4 1934713408
      %v2194 = vunpack.c.0.s8 %v2193
      %v2195 = vlaneseq
      %v2196 = vshrl.u32 %v2195, 7
      %v2197 = vsub.s32 %v2194, %v2196
      %v2198 = vrot.slane %v2184, %v2197
      %v2199 = vcombine.high %v2191, 0
      %v2200 = vcombine.high %v2198, 0
      %v2201 = vcombine.low %v1662, %v1758
      %v2203 = vunpack.c.l.s4 1983009808
      %v2204 = vunpack.c.0.s8 %v2203
      %v2205 = vlaneseq
      %v2206 = vshrl.u32 %v2205, 7
      %v2207 = vsub.s32 %v2204, %v2206
      %v2208 = vrot.slane %v2201, %v2207
      %v2209 = vcombine.low %v1710, %v1806
      %v2211 = vunpack.c.l.s4 1983009808
      %v2212 = vunpack.c.0.s8 %v2211
      %v2213 = vlaneseq
      %v2214 = vshrl.u32 %v2213, 7
      %v2215 = vsub.s32 %v2212, %v2214
      %v2216 = vrot.slane %v2209, %v2215
      %v2217 = vcombine.low %v2208, %v2216
      %v2218 = vcombine.high %v2208, %v2216
      %v2220 = vunpack.c.l.s4 1934713408
      %v2221 = vunpack.c.0.s8 %v2220
      %v2222 = vlaneseq
      %v2223 = vshrl.u32 %v2222, 7
      %v2224 = vsub.s32 %v2221, %v2223
      %v2225 = vrot.slane %v2217, %v2224
      %v2227 = vunpack.c.l.s4 1934713408
      %v2228 = vunpack.c.0.s8 %v2227
      %v2229 = vlaneseq
      %v2230 = vshrl.u32 %v2229, 7
      %v2231 = vsub.s32 %v2228, %v2230
      %v2232 = vrot.slane %v2218, %v2231
      %v2233 = vcombine.high %v2225, 0
      %v2234 = vcombine.high %v2232, 0
      %v2235 = vcombine.low %v1830, %v1926
      %v2237 = vunpack.c.l.s4 1983009808
      %v2238 = vunpack.c.0.s8 %v2237
      %v2239 = vlaneseq
      %v2240 = vshrl.u32 %v2239, 7
      %v2241 = vsub.s32 %v2238, %v2240
      %v2242 = vrot.slane %v2235, %v2241
      %v2243 = vcombine.low %v1878, %v1974
      %v2245 = vunpack.c.l.s4 1983009808
      %v2246 = vunpack.c.0.s8 %v2245
      %v2247 = vlaneseq
      %v2248 = vshrl.u32 %v2247, 7
      %v2249 = vsub.s32 %v2246, %v2248
      %v2250 = vrot.slane %v2243, %v2249
      %v2251 = vcombine.low %v2242, %v2250
      %v2252 = vcombine.high %v2242, %v2250
      %v2254 = vunpack.c.l.s4 1934713408
      %v2255 = vunpack.c.0.s8 %v2254
      %v2256 = vlaneseq
      %v2257 = vshrl.u32 %v2256, 7
      %v2258 = vsub.s32 %v2255, %v2257
      %v2259 = vrot.slane %v2251, %v2258
      %v2261 = vunpack.c.l.s4 1934713408
      %v2262 = vunpack.c.0.s8 %v2261
      %v2263 = vlaneseq
      %v2264 = vshrl.u32 %v2263, 7
      %v2265 = vsub.s32 %v2262, %v2264
      %v2266 = vrot.slane %v2252, %v2265
      %v2267 = vcombine.high %v2259, 0
      %v2268 = vcombine.high %v2266, 0
      %v2269 = vcombine.low %v1854, %v1950
      %v2271 = vunpack.c.l.s4 1983009808
      %v2272 = vunpack.c.0.s8 %v2271
      %v2273 = vlaneseq
      %v2274 = vshrl.u32 %v2273, 7
      %v2275 = vsub.s32 %v2272, %v2274
      %v2276 = vrot.slane %v2269, %v2275
      %v2277 = vcombine.low %v1902, %v1998
      %v2279 = vunpack.c.l.s4 1983009808
      %v2280 = vunpack.c.0.s8 %v2279
      %v2281 = vlaneseq
      %v2282 = vshrl.u32 %v2281, 7
      %v2283 = vsub.s32 %v2280, %v2282
      %v2284 = vrot.slane %v2277, %v2283
      %v2285 = vcombine.low %v2276, %v2284
      %v2286 = vcombine.high %v2276, %v2284
      %v2288 = vunpack.c.l.s4 1934713408
      %v2289 = vunpack.c.0.s8 %v2288
      %v2290 = vlaneseq
      %v2291 = vshrl.u32 %v2290, 7
      %v2292 = vsub.s32 %v2289, %v2291
      %v2293 = vrot.slane %v2285, %v2292
      %v2295 = vunpack.c.l.s4 1934713408
      %v2296 = vunpack.c.0.s8 %v2295
      %v2297 = vlaneseq
      %v2298 = vshrl.u32 %v2297, 7
      %v2299 = vsub.s32 %v2296, %v2298
      %v2300 = vrot.slane %v2286, %v2299
      %v2301 = vcombine.high %v2293, 0
      %v2302 = vcombine.high %v2300, 0
      %v2305 = vpack.i.b16 %v2089, %v2055
      %v2306 = vshrl.u32 %v2055, 16
      %v2307 = vshrl.u32 %v2089, 16
      %v2308 = vpack.i.b16 %v2307, %v2306
      %v2311 = vpack.i.b16 %v2097, %v2063
      %v2312 = vshrl.u32 %v2063, 16
      %v2313 = vshrl.u32 %v2097, 16
      %v2314 = vpack.i.b16 %v2313, %v2312
      %v2317 = vpack.i.b16 %v2096, %v2062
      %v2318 = vshrl.u32 %v2062, 16
      %v2319 = vshrl.u32 %v2096, 16
      %v2320 = vpack.i.b16 %v2319, %v2318
      %v2323 = vpack.i.b16 %v2098, %v2064
      %v2324 = vshrl.u32 %v2064, 16
      %v2325 = vshrl.u32 %v2098, 16
      %v2326 = vpack.i.b16 %v2325, %v2324
      %v2329 = vpack.i.b16 %v2225, %v2191
      %v2330 = vshrl.u32 %v2191, 16
      %v2331 = vshrl.u32 %v2225, 16
      %v2332 = vpack.i.b16 %v2331, %v2330
      %v2335 = vpack.i.b16 %v2233, %v2199
      %v2336 = vshrl.u32 %v2199, 16
      %v2337 = vshrl.u32 %v2233, 16
      %v2338 = vpack.i.b16 %v2337, %v2336
      %v2341 = vpack.i.b16 %v2232, %v2198
      %v2342 = vshrl.u32 %v2198, 16
      %v2343 = vshrl.u32 %v2232, 16
      %v2344 = vpack.i.b16 %v2343, %v2342
      %v2347 = vpack.i.b16 %v2234, %v2200
      %v2348 = vshrl.u32 %v2200, 16
      %v2349 = vshrl.u32 %v2234, 16
      %v2350 = vpack.i.b16 %v2349, %v2348
      %v2353 = vpack.i.b16 %v2157, %v2123
      %v2354 = vshrl.u32 %v2123, 16
      %v2355 = vshrl.u32 %v2157, 16
      %v2356 = vpack.i.b16 %v2355, %v2354
      %v2359 = vpack.i.b16 %v2165, %v2131
      %v2360 = vshrl.u32 %v2131, 16
      %v2361 = vshrl.u32 %v2165, 16
      %v2362 = vpack.i.b16 %v2361, %v2360
      %v2365 = vpack.i.b16 %v2164, %v2130
      %v2366 = vshrl.u32 %v2130, 16
      %v2367 = vshrl.u32 %v2164, 16
      %v2368 = vpack.i.b16 %v2367, %v2366
      %v2371 = vpack.i.b16 %v2166, %v2132
      %v2372 = vshrl.u32 %v2132, 16
      %v2373 = vshrl.u32 %v2166, 16
      %v2374 = vpack.i.b16 %v2373, %v2372
      %v2377 = vpack.i.b16 %v2293, %v2259
      %v2378 = vshrl.u32 %v2259, 16
      %v2379 = vshrl.u32 %v2293, 16
      %v2380 = vpack.i.b16 %v2379, %v2378
      %v2383 = vpack.i.b16 %v2301, %v2267
      %v2384 = vshrl.u32 %v2267, 16
      %v2385 = vshrl.u32 %v2301, 16
      %v2386 = vpack.i.b16 %v2385, %v2384
      %v2389 = vpack.i.b16 %v2300, %v2266
      %v2390 = vshrl.u32 %v2266, 16
      %v2391 = vshrl.u32 %v2300, 16
      %v2392 = vpack.i.b16 %v2391, %v2390
      %v2395 = vpack.i.b16 %v2302, %v2268
      %v2396 = vshrl.u32 %v2268, 16
      %v2397 = vshrl.u32 %v2302, 16
      %v2398 = vpack.i.b16 %v2397, %v2396
      %2399 = vrot.lane.b32.xlu0 %v1628, 124
      %v2400 = vpop.permute.xlu0 %2399
      %2401 = vrot.lane.b32.xlu0 %v1638, 124
      %v2402 = vpop.permute.xlu0 %2401
      %2403 = vrot.lane.b32.xlu0 %v1652, 124
      %v2404 = vpop.permute.xlu0 %2403
      %2405 = vrot.lane.b32.xlu0 %v1662, 124
      %v2406 = vpop.permute.xlu0 %2405
      %2407 = vrot.lane.b32.xlu0 %v1676, 124
      %v2408 = vpop.permute.xlu0 %2407
      %2409 = vrot.lane.b32.xlu0 %v1686, 124
      %v2410 = vpop.permute.xlu0 %2409
      %2411 = vrot.lane.b32.xlu0 %v1700, 124
      %v2412 = vpop.permute.xlu0 %2411
      %2413 = vrot.lane.b32.xlu0 %v1710, 124
      %v2414 = vpop.permute.xlu0 %2413
      %2415 = vrot.lane.b32.xlu0 %v1724, 124
      %v2416 = vpop.permute.xlu0 %2415
      %2417 = vrot.lane.b32.xlu0 %v1734, 124
      %v2418 = vpop.permute.xlu0 %2417
      %2419 = vrot.lane.b32.xlu0 %v1748, 124
      %v2420 = vpop.permute.xlu0 %2419
      %2421 = vrot.lane.b32.xlu0 %v1758, 124
      %v2422 = vpop.permute.xlu0 %2421
      %2423 = vrot.lane.b32.xlu0 %v1772, 124
      %v2424 = vpop.permute.xlu0 %2423
      %2425 = vrot.lane.b32.xlu0 %v1782, 124
      %v2426 = vpop.permute.xlu0 %2425
      %2427 = vrot.lane.b32.xlu0 %v1796, 124
      %v2428 = vpop.permute.xlu0 %2427
      %2429 = vrot.lane.b32.xlu0 %v1806, 124
      %v2430 = vpop.permute.xlu0 %2429
      %2431 = vrot.lane.b32.xlu0 %v1820, 124
      %v2432 = vpop.permute.xlu0 %2431
      %2433 = vrot.lane.b32.xlu0 %v1830, 124
      %v2434 = vpop.permute.xlu0 %2433
      %2435 = vrot.lane.b32.xlu0 %v1844, 124
      %v2436 = vpop.permute.xlu0 %2435
      %2437 = vrot.lane.b32.xlu0 %v1854, 124
      %v2438 = vpop.permute.xlu0 %2437
      %2439 = vrot.lane.b32.xlu0 %v1868, 124
      %v2440 = vpop.permute.xlu0 %2439
      %2441 = vrot.lane.b32.xlu0 %v1878, 124
      %v2442 = vpop.permute.xlu0 %2441
      %2443 = vrot.lane.b32.xlu0 %v1892, 124
      %v2444 = vpop.permute.xlu0 %2443
      %2445 = vrot.lane.b32.xlu0 %v1902, 124
      %v2446 = vpop.permute.xlu0 %2445
      %2447 = vrot.lane.b32.xlu0 %v1916, 124
      %v2448 = vpop.permute.xlu0 %2447
      %2449 = vrot.lane.b32.xlu0 %v1926, 124
      %v2450 = vpop.permute.xlu0 %2449
      %2451 = vrot.lane.b32.xlu0 %v1940, 124
      %v2452 = vpop.permute.xlu0 %2451
      %2453 = vrot.lane.b32.xlu0 %v1950, 124
      %v2454 = vpop.permute.xlu0 %2453
      %2455 = vrot.lane.b32.xlu0 %v1964, 124
      %v2456 = vpop.permute.xlu0 %2455
      %2457 = vrot.lane.b32.xlu0 %v1974, 124
      %v2458 = vpop.permute.xlu0 %2457
      %2459 = vrot.lane.b32.xlu0 %v1988, 124
      %v2460 = vpop.permute.xlu0 %2459
      %2461 = vrot.lane.b32.xlu0 %v1998, 124
      %v2462 = vpop.permute.xlu0 %2461
      %v2495 = vcombine.low %v2400, %v2416
      %v2497 = vunpack.c.l.s4 1983009808
      %v2498 = vunpack.c.0.s8 %v2497
      %v2499 = vlaneseq
      %v2500 = vshrl.u32 %v2499, 7
      %v2501 = vsub.s32 %v2498, %v2500
      %v2502 = vrot.slane %v2495, %v2501
      %v2503 = vcombine.low %v2408, %v2424
      %v2505 = vunpack.c.l.s4 1983009808
      %v2506 = vunpack.c.0.s8 %v2505
      %v2507 = vlaneseq
      %v2508 = vshrl.u32 %v2507, 7
      %v2509 = vsub.s32 %v2506, %v2508
      %v2510 = vrot.slane %v2503, %v2509
      %v2511 = vcombine.low %v2502, %v2510
      %v2512 = vcombine.high %v2502, %v2510
      %v2514 = vunpack.c.l.s4 1934713408
      %v2515 = vunpack.c.0.s8 %v2514
      %v2516 = vlaneseq
      %v2517 = vshrl.u32 %v2516, 7
      %v2518 = vsub.s32 %v2515, %v2517
      %v2519 = vrot.slane %v2511, %v2518
      %v2521 = vunpack.c.l.s4 1934713408
      %v2522 = vunpack.c.0.s8 %v2521
      %v2523 = vlaneseq
      %v2524 = vshrl.u32 %v2523, 7
      %v2525 = vsub.s32 %v2522, %v2524
      %v2526 = vrot.slane %v2512, %v2525
      %v2527 = vcombine.high %v2519, 0
      %v2528 = vcombine.high %v2526, 0
      %v2529 = vcombine.low %v2404, %v2420
      %v2531 = vunpack.c.l.s4 1983009808
      %v2532 = vunpack.c.0.s8 %v2531
      %v2533 = vlaneseq
      %v2534 = vshrl.u32 %v2533, 7
      %v2535 = vsub.s32 %v2532, %v2534
      %v2536 = vrot.slane %v2529, %v2535
      %v2537 = vcombine.low %v2412, %v2428
      %v2539 = vunpack.c.l.s4 1983009808
      %v2540 = vunpack.c.0.s8 %v2539
      %v2541 = vlaneseq
      %v2542 = vshrl.u32 %v2541, 7
      %v2543 = vsub.s32 %v2540, %v2542
      %v2544 = vrot.slane %v2537, %v2543
      %v2545 = vcombine.low %v2536, %v2544
      %v2546 = vcombine.high %v2536, %v2544
      %v2548 = vunpack.c.l.s4 1934713408
      %v2549 = vunpack.c.0.s8 %v2548
      %v2550 = vlaneseq
      %v2551 = vshrl.u32 %v2550, 7
      %v2552 = vsub.s32 %v2549, %v2551
      %v2553 = vrot.slane %v2545, %v2552
      %v2555 = vunpack.c.l.s4 1934713408
      %v2556 = vunpack.c.0.s8 %v2555
      %v2557 = vlaneseq
      %v2558 = vshrl.u32 %v2557, 7
      %v2559 = vsub.s32 %v2556, %v2558
      %v2560 = vrot.slane %v2546, %v2559
      %v2561 = vcombine.high %v2553, 0
      %v2562 = vcombine.high %v2560, 0
      %v2563 = vcombine.low %v2432, %v2448
      %v2565 = vunpack.c.l.s4 1983009808
      %v2566 = vunpack.c.0.s8 %v2565
      %v2567 = vlaneseq
      %v2568 = vshrl.u32 %v2567, 7
      %v2569 = vsub.s32 %v2566, %v2568
      %v2570 = vrot.slane %v2563, %v2569
      %v2571 = vcombine.low %v2440, %v2456
      %v2573 = vunpack.c.l.s4 1983009808
      %v2574 = vunpack.c.0.s8 %v2573
      %v2575 = vlaneseq
      %v2576 = vshrl.u32 %v2575, 7
      %v2577 = vsub.s32 %v2574, %v2576
      %v2578 = vrot.slane %v2571, %v2577
      %v2579 = vcombine.low %v2570, %v2578
      %v2580 = vcombine.high %v2570, %v2578
      %v2582 = vunpack.c.l.s4 1934713408
      %v2583 = vunpack.c.0.s8 %v2582
      %v2584 = vlaneseq
      %v2585 = vshrl.u32 %v2584, 7
      %v2586 = vsub.s32 %v2583, %v2585
      %v2587 = vrot.slane %v2579, %v2586
      %v2589 = vunpack.c.l.s4 1934713408
      %v2590 = vunpack.c.0.s8 %v2589
      %v2591 = vlaneseq
      %v2592 = vshrl.u32 %v2591, 7
      %v2593 = vsub.s32 %v2590, %v2592
      %v2594 = vrot.slane %v2580, %v2593
      %v2595 = vcombine.high %v2587, 0
      %v2596 = vcombine.high %v2594, 0
      %v2597 = vcombine.low %v2436, %v2452
      %v2599 = vunpack.c.l.s4 1983009808
      %v2600 = vunpack.c.0.s8 %v2599
      %v2601 = vlaneseq
      %v2602 = vshrl.u32 %v2601, 7
      %v2603 = vsub.s32 %v2600, %v2602
      %v2604 = vrot.slane %v2597, %v2603
      %v2605 = vcombine.low %v2444, %v2460
      %v2607 = vunpack.c.l.s4 1983009808
      %v2608 = vunpack.c.0.s8 %v2607
      %v2609 = vlaneseq
      %v2610 = vshrl.u32 %v2609, 7
      %v2611 = vsub.s32 %v2608, %v2610
      %v2612 = vrot.slane %v2605, %v2611
      %v2613 = vcombine.low %v2604, %v2612
      %v2614 = vcombine.high %v2604, %v2612
      %v2616 = vunpack.c.l.s4 1934713408
      %v2617 = vunpack.c.0.s8 %v2616
      %v2618 = vlaneseq
      %v2619 = vshrl.u32 %v2618, 7
      %v2620 = vsub.s32 %v2617, %v2619
      %v2621 = vrot.slane %v2613, %v2620
      %v2623 = vunpack.c.l.s4 1934713408
      %v2624 = vunpack.c.0.s8 %v2623
      %v2625 = vlaneseq
      %v2626 = vshrl.u32 %v2625, 7
      %v2627 = vsub.s32 %v2624, %v2626
      %v2628 = vrot.slane %v2614, %v2627
      %v2629 = vcombine.high %v2621, 0
      %v2630 = vcombine.high %v2628, 0
      %v2631 = vcombine.low %v2402, %v2418
      %v2633 = vunpack.c.l.s4 1983009808
      %v2634 = vunpack.c.0.s8 %v2633
      %v2635 = vlaneseq
      %v2636 = vshrl.u32 %v2635, 7
      %v2637 = vsub.s32 %v2634, %v2636
      %v2638 = vrot.slane %v2631, %v2637
      %v2639 = vcombine.low %v2410, %v2426
      %v2641 = vunpack.c.l.s4 1983009808
      %v2642 = vunpack.c.0.s8 %v2641
      %v2643 = vlaneseq
      %v2644 = vshrl.u32 %v2643, 7
      %v2645 = vsub.s32 %v2642, %v2644
      %v2646 = vrot.slane %v2639, %v2645
      %v2647 = vcombine.low %v2638, %v2646
      %v2648 = vcombine.high %v2638, %v2646
      %v2650 = vunpack.c.l.s4 1934713408
      %v2651 = vunpack.c.0.s8 %v2650
      %v2652 = vlaneseq
      %v2653 = vshrl.u32 %v2652, 7
      %v2654 = vsub.s32 %v2651, %v2653
      %v2655 = vrot.slane %v2647, %v2654
      %v2657 = vunpack.c.l.s4 1934713408
      %v2658 = vunpack.c.0.s8 %v2657
      %v2659 = vlaneseq
      %v2660 = vshrl.u32 %v2659, 7
      %v2661 = vsub.s32 %v2658, %v2660
      %v2662 = vrot.slane %v2648, %v2661
      %v2663 = vcombine.high %v2655, 0
      %v2664 = vcombine.high %v2662, 0
      %v2665 = vcombine.low %v2406, %v2422
      %v2667 = vunpack.c.l.s4 1983009808
      %v2668 = vunpack.c.0.s8 %v2667
      %v2669 = vlaneseq
      %v2670 = vshrl.u32 %v2669, 7
      %v2671 = vsub.s32 %v2668, %v2670
      %v2672 = vrot.slane %v2665, %v2671
      %v2673 = vcombine.low %v2414, %v2430
      %v2675 = vunpack.c.l.s4 1983009808
      %v2676 = vunpack.c.0.s8 %v2675
      %v2677 = vlaneseq
      %v2678 = vshrl.u32 %v2677, 7
      %v2679 = vsub.s32 %v2676, %v2678
      %v2680 = vrot.slane %v2673, %v2679
      %v2681 = vcombine.low %v2672, %v2680
      %v2682 = vcombine.high %v2672, %v2680
      %v2684 = vunpack.c.l.s4 1934713408
      %v2685 = vunpack.c.0.s8 %v2684
      %v2686 = vlaneseq
      %v2687 = vshrl.u32 %v2686, 7
      %v2688 = vsub.s32 %v2685, %v2687
      %v2689 = vrot.slane %v2681, %v2688
      %v2691 = vunpack.c.l.s4 1934713408
      %v2692 = vunpack.c.0.s8 %v2691
      %v2693 = vlaneseq
      %v2694 = vshrl.u32 %v2693, 7
      %v2695 = vsub.s32 %v2692, %v2694
      %v2696 = vrot.slane %v2682, %v2695
      %v2697 = vcombine.high %v2689, 0
      %v2698 = vcombine.high %v2696, 0
      %v2699 = vcombine.low %v2434, %v2450
      %v2701 = vunpack.c.l.s4 1983009808
      %v2702 = vunpack.c.0.s8 %v2701
      %v2703 = vlaneseq
      %v2704 = vshrl.u32 %v2703, 7
      %v2705 = vsub.s32 %v2702, %v2704
      %v2706 = vrot.slane %v2699, %v2705
      %v2707 = vcombine.low %v2442, %v2458
      %v2709 = vunpack.c.l.s4 1983009808
      %v2710 = vunpack.c.0.s8 %v2709
      %v2711 = vlaneseq
      %v2712 = vshrl.u32 %v2711, 7
      %v2713 = vsub.s32 %v2710, %v2712
      %v2714 = vrot.slane %v2707, %v2713
      %v2715 = vcombine.low %v2706, %v2714
      %v2716 = vcombine.high %v2706, %v2714
      %v2718 = vunpack.c.l.s4 1934713408
      %v2719 = vunpack.c.0.s8 %v2718
      %v2720 = vlaneseq
      %v2721 = vshrl.u32 %v2720, 7
      %v2722 = vsub.s32 %v2719, %v2721
      %v2723 = vrot.slane %v2715, %v2722
      %v2725 = vunpack.c.l.s4 1934713408
      %v2726 = vunpack.c.0.s8 %v2725
      %v2727 = vlaneseq
      %v2728 = vshrl.u32 %v2727, 7
      %v2729 = vsub.s32 %v2726, %v2728
      %v2730 = vrot.slane %v2716, %v2729
      %v2731 = vcombine.high %v2723, 0
      %v2732 = vcombine.high %v2730, 0
      %v2733 = vcombine.low %v2438, %v2454
      %v2735 = vunpack.c.l.s4 1983009808
      %v2736 = vunpack.c.0.s8 %v2735
      %v2737 = vlaneseq
      %v2738 = vshrl.u32 %v2737, 7
      %v2739 = vsub.s32 %v2736, %v2738
      %v2740 = vrot.slane %v2733, %v2739
      %v2741 = vcombine.low %v2446, %v2462
      %v2743 = vunpack.c.l.s4 1983009808
      %v2744 = vunpack.c.0.s8 %v2743
      %v2745 = vlaneseq
      %v2746 = vshrl.u32 %v2745, 7
      %v2747 = vsub.s32 %v2744, %v2746
      %v2748 = vrot.slane %v2741, %v2747
      %v2749 = vcombine.low %v2740, %v2748
      %v2750 = vcombine.high %v2740, %v2748
      %v2752 = vunpack.c.l.s4 1934713408
      %v2753 = vunpack.c.0.s8 %v2752
      %v2754 = vlaneseq
      %v2755 = vshrl.u32 %v2754, 7
      %v2756 = vsub.s32 %v2753, %v2755
      %v2757 = vrot.slane %v2749, %v2756
      %v2759 = vunpack.c.l.s4 1934713408
      %v2760 = vunpack.c.0.s8 %v2759
      %v2761 = vlaneseq
      %v2762 = vshrl.u32 %v2761, 7
      %v2763 = vsub.s32 %v2760, %v2762
      %v2764 = vrot.slane %v2750, %v2763
      %v2765 = vcombine.high %v2757, 0
      %v2766 = vcombine.high %v2764, 0
      %v2769 = vpack.i.b16 %v2553, %v2519
      %v2770 = vshrl.u32 %v2519, 16
      %v2771 = vshrl.u32 %v2553, 16
      %v2772 = vpack.i.b16 %v2771, %v2770
      %v2775 = vpack.i.b16 %v2561, %v2527
      %v2776 = vshrl.u32 %v2527, 16
      %v2777 = vshrl.u32 %v2561, 16
      %v2778 = vpack.i.b16 %v2777, %v2776
      %v2781 = vpack.i.b16 %v2560, %v2526
      %v2782 = vshrl.u32 %v2526, 16
      %v2783 = vshrl.u32 %v2560, 16
      %v2784 = vpack.i.b16 %v2783, %v2782
      %v2787 = vpack.i.b16 %v2562, %v2528
      %v2788 = vshrl.u32 %v2528, 16
      %v2789 = vshrl.u32 %v2562, 16
      %v2790 = vpack.i.b16 %v2789, %v2788
      %v2793 = vpack.i.b16 %v2689, %v2655
      %v2794 = vshrl.u32 %v2655, 16
      %v2795 = vshrl.u32 %v2689, 16
      %v2796 = vpack.i.b16 %v2795, %v2794
      %v2799 = vpack.i.b16 %v2697, %v2663
      %v2800 = vshrl.u32 %v2663, 16
      %v2801 = vshrl.u32 %v2697, 16
      %v2802 = vpack.i.b16 %v2801, %v2800
      %v2805 = vpack.i.b16 %v2696, %v2662
      %v2806 = vshrl.u32 %v2662, 16
      %v2807 = vshrl.u32 %v2696, 16
      %v2808 = vpack.i.b16 %v2807, %v2806
      %v2811 = vpack.i.b16 %v2698, %v2664
      %v2812 = vshrl.u32 %v2664, 16
      %v2813 = vshrl.u32 %v2698, 16
      %v2814 = vpack.i.b16 %v2813, %v2812
      %v2817 = vpack.i.b16 %v2621, %v2587
      %v2818 = vshrl.u32 %v2587, 16
      %v2819 = vshrl.u32 %v2621, 16
      %v2820 = vpack.i.b16 %v2819, %v2818
      %v2823 = vpack.i.b16 %v2629, %v2595
      %v2824 = vshrl.u32 %v2595, 16
      %v2825 = vshrl.u32 %v2629, 16
      %v2826 = vpack.i.b16 %v2825, %v2824
      %v2829 = vpack.i.b16 %v2628, %v2594
      %v2830 = vshrl.u32 %v2594, 16
      %v2831 = vshrl.u32 %v2628, 16
      %v2832 = vpack.i.b16 %v2831, %v2830
      %v2835 = vpack.i.b16 %v2630, %v2596
      %v2836 = vshrl.u32 %v2596, 16
      %v2837 = vshrl.u32 %v2630, 16
      %v2838 = vpack.i.b16 %v2837, %v2836
      %v2841 = vpack.i.b16 %v2757, %v2723
      %v2842 = vshrl.u32 %v2723, 16
      %v2843 = vshrl.u32 %v2757, 16
      %v2844 = vpack.i.b16 %v2843, %v2842
      %v2847 = vpack.i.b16 %v2765, %v2731
      %v2848 = vshrl.u32 %v2731, 16
      %v2849 = vshrl.u32 %v2765, 16
      %v2850 = vpack.i.b16 %v2849, %v2848
      %v2853 = vpack.i.b16 %v2764, %v2730
      %v2854 = vshrl.u32 %v2730, 16
      %v2855 = vshrl.u32 %v2764, 16
      %v2856 = vpack.i.b16 %v2855, %v2854
      %v2859 = vpack.i.b16 %v2766, %v2732
      %v2860 = vshrl.u32 %v2732, 16
      %v2861 = vshrl.u32 %v2766, 16
      %v2862 = vpack.i.b16 %v2861, %v2860
      %2863 = vrot.lane.b32.xlu0 %v1628, 120
      %v2864 = vpop.permute.xlu0 %2863
      %2865 = vrot.lane.b32.xlu0 %v1638, 120
      %v2866 = vpop.permute.xlu0 %2865
      %2867 = vrot.lane.b32.xlu0 %v1652, 120
      %v2868 = vpop.permute.xlu0 %2867
      %2869 = vrot.lane.b32.xlu0 %v1662, 120
      %v2870 = vpop.permute.xlu0 %2869
      %2871 = vrot.lane.b32.xlu0 %v1676, 120
      %v2872 = vpop.permute.xlu0 %2871
      %2873 = vrot.lane.b32.xlu0 %v1686, 120
      %v2874 = vpop.permute.xlu0 %2873
      %2875 = vrot.lane.b32.xlu0 %v1700, 120
      %v2876 = vpop.permute.xlu0 %2875
      %2877 = vrot.lane.b32.xlu0 %v1710, 120
      %v2878 = vpop.permute.xlu0 %2877
      %2879 = vrot.lane.b32.xlu0 %v1724, 120
      %v2880 = vpop.permute.xlu0 %2879
      %2881 = vrot.lane.b32.xlu0 %v1734, 120
      %v2882 = vpop.permute.xlu0 %2881
      %2883 = vrot.lane.b32.xlu0 %v1748, 120
      %v2884 = vpop.permute.xlu0 %2883
      %2885 = vrot.lane.b32.xlu0 %v1758, 120
      %v2886 = vpop.permute.xlu0 %2885
      %2887 = vrot.lane.b32.xlu0 %v1772, 120
      %v2888 = vpop.permute.xlu0 %2887
      %2889 = vrot.lane.b32.xlu0 %v1782, 120
      %v2890 = vpop.permute.xlu0 %2889
      %2891 = vrot.lane.b32.xlu0 %v1796, 120
      %v2892 = vpop.permute.xlu0 %2891
      %2893 = vrot.lane.b32.xlu0 %v1806, 120
      %v2894 = vpop.permute.xlu0 %2893
      %2895 = vrot.lane.b32.xlu0 %v1820, 120
      %v2896 = vpop.permute.xlu0 %2895
      %2897 = vrot.lane.b32.xlu0 %v1830, 120
      %v2898 = vpop.permute.xlu0 %2897
      %2899 = vrot.lane.b32.xlu0 %v1844, 120
      %v2900 = vpop.permute.xlu0 %2899
      %2901 = vrot.lane.b32.xlu0 %v1854, 120
      %v2902 = vpop.permute.xlu0 %2901
      %2903 = vrot.lane.b32.xlu0 %v1868, 120
      %v2904 = vpop.permute.xlu0 %2903
      %2905 = vrot.lane.b32.xlu0 %v1878, 120
      %v2906 = vpop.permute.xlu0 %2905
      %2907 = vrot.lane.b32.xlu0 %v1892, 120
      %v2908 = vpop.permute.xlu0 %2907
      %2909 = vrot.lane.b32.xlu0 %v1902, 120
      %v2910 = vpop.permute.xlu0 %2909
      %2911 = vrot.lane.b32.xlu0 %v1916, 120
      %v2912 = vpop.permute.xlu0 %2911
      %2913 = vrot.lane.b32.xlu0 %v1926, 120
      %v2914 = vpop.permute.xlu0 %2913
      %2915 = vrot.lane.b32.xlu0 %v1940, 120
      %v2916 = vpop.permute.xlu0 %2915
      %2917 = vrot.lane.b32.xlu0 %v1950, 120
      %v2918 = vpop.permute.xlu0 %2917
      %2919 = vrot.lane.b32.xlu0 %v1964, 120
      %v2920 = vpop.permute.xlu0 %2919
      %2921 = vrot.lane.b32.xlu0 %v1974, 120
      %v2922 = vpop.permute.xlu0 %2921
      %2923 = vrot.lane.b32.xlu0 %v1988, 120
      %v2924 = vpop.permute.xlu0 %2923
      %2925 = vrot.lane.b32.xlu0 %v1998, 120
      %v2926 = vpop.permute.xlu0 %2925
      %v2959 = vcombine.low %v2864, %v2880
      %v2961 = vunpack.c.l.s4 1983009808
      %v2962 = vunpack.c.0.s8 %v2961
      %v2963 = vlaneseq
      %v2964 = vshrl.u32 %v2963, 7
      %v2965 = vsub.s32 %v2962, %v2964
      %v2966 = vrot.slane %v2959, %v2965
      %v2967 = vcombine.low %v2872, %v2888
      %v2969 = vunpack.c.l.s4 1983009808
      %v2970 = vunpack.c.0.s8 %v2969
      %v2971 = vlaneseq
      %v2972 = vshrl.u32 %v2971, 7
      %v2973 = vsub.s32 %v2970, %v2972
      %v2974 = vrot.slane %v2967, %v2973
      %v2975 = vcombine.low %v2966, %v2974
      %v2976 = vcombine.high %v2966, %v2974
      %v2978 = vunpack.c.l.s4 1934713408
      %v2979 = vunpack.c.0.s8 %v2978
      %v2980 = vlaneseq
      %v2981 = vshrl.u32 %v2980, 7
      %v2982 = vsub.s32 %v2979, %v2981
      %v2983 = vrot.slane %v2975, %v2982
      %v2985 = vunpack.c.l.s4 1934713408
      %v2986 = vunpack.c.0.s8 %v2985
      %v2987 = vlaneseq
      %v2988 = vshrl.u32 %v2987, 7
      %v2989 = vsub.s32 %v2986, %v2988
      %v2990 = vrot.slane %v2976, %v2989
      %v2991 = vcombine.high %v2983, 0
      %v2992 = vcombine.high %v2990, 0
      %v2993 = vcombine.low %v2868, %v2884
      %v2995 = vunpack.c.l.s4 1983009808
      %v2996 = vunpack.c.0.s8 %v2995
      %v2997 = vlaneseq
      %v2998 = vshrl.u32 %v2997, 7
      %v2999 = vsub.s32 %v2996, %v2998
      %v3000 = vrot.slane %v2993, %v2999
      %v3001 = vcombine.low %v2876, %v2892
      %v3003 = vunpack.c.l.s4 1983009808
      %v3004 = vunpack.c.0.s8 %v3003
      %v3005 = vlaneseq
      %v3006 = vshrl.u32 %v3005, 7
      %v3007 = vsub.s32 %v3004, %v3006
      %v3008 = vrot.slane %v3001, %v3007
      %v3009 = vcombine.low %v3000, %v3008
      %v3010 = vcombine.high %v3000, %v3008
      %v3012 = vunpack.c.l.s4 1934713408
      %v3013 = vunpack.c.0.s8 %v3012
      %v3014 = vlaneseq
      %v3015 = vshrl.u32 %v3014, 7
      %v3016 = vsub.s32 %v3013, %v3015
      %v3017 = vrot.slane %v3009, %v3016
      %v3019 = vunpack.c.l.s4 1934713408
      %v3020 = vunpack.c.0.s8 %v3019
      %v3021 = vlaneseq
      %v3022 = vshrl.u32 %v3021, 7
      %v3023 = vsub.s32 %v3020, %v3022
      %v3024 = vrot.slane %v3010, %v3023
      %v3025 = vcombine.high %v3017, 0
      %v3026 = vcombine.high %v3024, 0
      %v3027 = vcombine.low %v2896, %v2912
      %v3029 = vunpack.c.l.s4 1983009808
      %v3030 = vunpack.c.0.s8 %v3029
      %v3031 = vlaneseq
      %v3032 = vshrl.u32 %v3031, 7
      %v3033 = vsub.s32 %v3030, %v3032
      %v3034 = vrot.slane %v3027, %v3033
      %v3035 = vcombine.low %v2904, %v2920
      %v3037 = vunpack.c.l.s4 1983009808
      %v3038 = vunpack.c.0.s8 %v3037
      %v3039 = vlaneseq
      %v3040 = vshrl.u32 %v3039, 7
      %v3041 = vsub.s32 %v3038, %v3040
      %v3042 = vrot.slane %v3035, %v3041
      %v3043 = vcombine.low %v3034, %v3042
      %v3044 = vcombine.high %v3034, %v3042
      %v3046 = vunpack.c.l.s4 1934713408
      %v3047 = vunpack.c.0.s8 %v3046
      %v3048 = vlaneseq
      %v3049 = vshrl.u32 %v3048, 7
      %v3050 = vsub.s32 %v3047, %v3049
      %v3051 = vrot.slane %v3043, %v3050
      %v3053 = vunpack.c.l.s4 1934713408
      %v3054 = vunpack.c.0.s8 %v3053
      %v3055 = vlaneseq
      %v3056 = vshrl.u32 %v3055, 7
      %v3057 = vsub.s32 %v3054, %v3056
      %v3058 = vrot.slane %v3044, %v3057
      %v3059 = vcombine.high %v3051, 0
      %v3060 = vcombine.high %v3058, 0
      %v3061 = vcombine.low %v2900, %v2916
      %v3063 = vunpack.c.l.s4 1983009808
      %v3064 = vunpack.c.0.s8 %v3063
      %v3065 = vlaneseq
      %v3066 = vshrl.u32 %v3065, 7
      %v3067 = vsub.s32 %v3064, %v3066
      %v3068 = vrot.slane %v3061, %v3067
      %v3069 = vcombine.low %v2908, %v2924
      %v3071 = vunpack.c.l.s4 1983009808
      %v3072 = vunpack.c.0.s8 %v3071
      %v3073 = vlaneseq
      %v3074 = vshrl.u32 %v3073, 7
      %v3075 = vsub.s32 %v3072, %v3074
      %v3076 = vrot.slane %v3069, %v3075
      %v3077 = vcombine.low %v3068, %v3076
      %v3078 = vcombine.high %v3068, %v3076
      %v3080 = vunpack.c.l.s4 1934713408
      %v3081 = vunpack.c.0.s8 %v3080
      %v3082 = vlaneseq
      %v3083 = vshrl.u32 %v3082, 7
      %v3084 = vsub.s32 %v3081, %v3083
      %v3085 = vrot.slane %v3077, %v3084
      %v3087 = vunpack.c.l.s4 1934713408
      %v3088 = vunpack.c.0.s8 %v3087
      %v3089 = vlaneseq
      %v3090 = vshrl.u32 %v3089, 7
      %v3091 = vsub.s32 %v3088, %v3090
      %v3092 = vrot.slane %v3078, %v3091
      %v3093 = vcombine.high %v3085, 0
      %v3094 = vcombine.high %v3092, 0
      %v3095 = vcombine.low %v2866, %v2882
      %v3097 = vunpack.c.l.s4 1983009808
      %v3098 = vunpack.c.0.s8 %v3097
      %v3099 = vlaneseq
      %v3100 = vshrl.u32 %v3099, 7
      %v3101 = vsub.s32 %v3098, %v3100
      %v3102 = vrot.slane %v3095, %v3101
      %v3103 = vcombine.low %v2874, %v2890
      %v3105 = vunpack.c.l.s4 1983009808
      %v3106 = vunpack.c.0.s8 %v3105
      %v3107 = vlaneseq
      %v3108 = vshrl.u32 %v3107, 7
      %v3109 = vsub.s32 %v3106, %v3108
      %v3110 = vrot.slane %v3103, %v3109
      %v3111 = vcombine.low %v3102, %v3110
      %v3112 = vcombine.high %v3102, %v3110
      %v3114 = vunpack.c.l.s4 1934713408
      %v3115 = vunpack.c.0.s8 %v3114
      %v3116 = vlaneseq
      %v3117 = vshrl.u32 %v3116, 7
      %v3118 = vsub.s32 %v3115, %v3117
      %v3119 = vrot.slane %v3111, %v3118
      %v3121 = vunpack.c.l.s4 1934713408
      %v3122 = vunpack.c.0.s8 %v3121
      %v3123 = vlaneseq
      %v3124 = vshrl.u32 %v3123, 7
      %v3125 = vsub.s32 %v3122, %v3124
      %v3126 = vrot.slane %v3112, %v3125
      %v3127 = vcombine.high %v3119, 0
      %v3128 = vcombine.high %v3126, 0
      %v3129 = vcombine.low %v2870, %v2886
      %v3131 = vunpack.c.l.s4 1983009808
      %v3132 = vunpack.c.0.s8 %v3131
      %v3133 = vlaneseq
      %v3134 = vshrl.u32 %v3133, 7
      %v3135 = vsub.s32 %v3132, %v3134
      %v3136 = vrot.slane %v3129, %v3135
      %v3137 = vcombine.low %v2878, %v2894
      %v3139 = vunpack.c.l.s4 1983009808
      %v3140 = vunpack.c.0.s8 %v3139
      %v3141 = vlaneseq
      %v3142 = vshrl.u32 %v3141, 7
      %v3143 = vsub.s32 %v3140, %v3142
      %v3144 = vrot.slane %v3137, %v3143
      %v3145 = vcombine.low %v3136, %v3144
      %v3146 = vcombine.high %v3136, %v3144
      %v3148 = vunpack.c.l.s4 1934713408
      %v3149 = vunpack.c.0.s8 %v3148
      %v3150 = vlaneseq
      %v3151 = vshrl.u32 %v3150, 7
      %v3152 = vsub.s32 %v3149, %v3151
      %v3153 = vrot.slane %v3145, %v3152
      %v3155 = vunpack.c.l.s4 1934713408
      %v3156 = vunpack.c.0.s8 %v3155
      %v3157 = vlaneseq
      %v3158 = vshrl.u32 %v3157, 7
      %v3159 = vsub.s32 %v3156, %v3158
      %v3160 = vrot.slane %v3146, %v3159
      %v3161 = vcombine.high %v3153, 0
      %v3162 = vcombine.high %v3160, 0
      %v3163 = vcombine.low %v2898, %v2914
      %v3165 = vunpack.c.l.s4 1983009808
      %v3166 = vunpack.c.0.s8 %v3165
      %v3167 = vlaneseq
      %v3168 = vshrl.u32 %v3167, 7
      %v3169 = vsub.s32 %v3166, %v3168
      %v3170 = vrot.slane %v3163, %v3169
      %v3171 = vcombine.low %v2906, %v2922
      %v3173 = vunpack.c.l.s4 1983009808
      %v3174 = vunpack.c.0.s8 %v3173
      %v3175 = vlaneseq
      %v3176 = vshrl.u32 %v3175, 7
      %v3177 = vsub.s32 %v3174, %v3176
      %v3178 = vrot.slane %v3171, %v3177
      %v3179 = vcombine.low %v3170, %v3178
      %v3180 = vcombine.high %v3170, %v3178
      %v3182 = vunpack.c.l.s4 1934713408
      %v3183 = vunpack.c.0.s8 %v3182
      %v3184 = vlaneseq
      %v3185 = vshrl.u32 %v3184, 7
      %v3186 = vsub.s32 %v3183, %v3185
      %v3187 = vrot.slane %v3179, %v3186
      %v3189 = vunpack.c.l.s4 1934713408
      %v3190 = vunpack.c.0.s8 %v3189
      %v3191 = vlaneseq
      %v3192 = vshrl.u32 %v3191, 7
      %v3193 = vsub.s32 %v3190, %v3192
      %v3194 = vrot.slane %v3180, %v3193
      %v3195 = vcombine.high %v3187, 0
      %v3196 = vcombine.high %v3194, 0
      %v3197 = vcombine.low %v2902, %v2918
      %v3199 = vunpack.c.l.s4 1983009808
      %v3200 = vunpack.c.0.s8 %v3199
      %v3201 = vlaneseq
      %v3202 = vshrl.u32 %v3201, 7
      %v3203 = vsub.s32 %v3200, %v3202
      %v3204 = vrot.slane %v3197, %v3203
      %v3205 = vcombine.low %v2910, %v2926
      %v3207 = vunpack.c.l.s4 1983009808
      %v3208 = vunpack.c.0.s8 %v3207
      %v3209 = vlaneseq
      %v3210 = vshrl.u32 %v3209, 7
      %v3211 = vsub.s32 %v3208, %v3210
      %v3212 = vrot.slane %v3205, %v3211
      %v3213 = vcombine.low %v3204, %v3212
      %v3214 = vcombine.high %v3204, %v3212
      %v3216 = vunpack.c.l.s4 1934713408
      %v3217 = vunpack.c.0.s8 %v3216
      %v3218 = vlaneseq
      %v3219 = vshrl.u32 %v3218, 7
      %v3220 = vsub.s32 %v3217, %v3219
      %v3221 = vrot.slane %v3213, %v3220
      %v3223 = vunpack.c.l.s4 1934713408
      %v3224 = vunpack.c.0.s8 %v3223
      %v3225 = vlaneseq
      %v3226 = vshrl.u32 %v3225, 7
      %v3227 = vsub.s32 %v3224, %v3226
      %v3228 = vrot.slane %v3214, %v3227
      %v3229 = vcombine.high %v3221, 0
      %v3230 = vcombine.high %v3228, 0
      %v3233 = vpack.i.b16 %v3017, %v2983
      %v3234 = vshrl.u32 %v2983, 16
      %v3235 = vshrl.u32 %v3017, 16
      %v3236 = vpack.i.b16 %v3235, %v3234
      %v3239 = vpack.i.b16 %v3025, %v2991
      %v3240 = vshrl.u32 %v2991, 16
      %v3241 = vshrl.u32 %v3025, 16
      %v3242 = vpack.i.b16 %v3241, %v3240
      %v3245 = vpack.i.b16 %v3024, %v2990
      %v3246 = vshrl.u32 %v2990, 16
      %v3247 = vshrl.u32 %v3024, 16
      %v3248 = vpack.i.b16 %v3247, %v3246
      %v3251 = vpack.i.b16 %v3026, %v2992
      %v3252 = vshrl.u32 %v2992, 16
      %v3253 = vshrl.u32 %v3026, 16
      %v3254 = vpack.i.b16 %v3253, %v3252
      %v3257 = vpack.i.b16 %v3153, %v3119
      %v3258 = vshrl.u32 %v3119, 16
      %v3259 = vshrl.u32 %v3153, 16
      %v3260 = vpack.i.b16 %v3259, %v3258
      %v3263 = vpack.i.b16 %v3161, %v3127
      %v3264 = vshrl.u32 %v3127, 16
      %v3265 = vshrl.u32 %v3161, 16
      %v3266 = vpack.i.b16 %v3265, %v3264
      %v3269 = vpack.i.b16 %v3160, %v3126
      %v3270 = vshrl.u32 %v3126, 16
      %v3271 = vshrl.u32 %v3160, 16
      %v3272 = vpack.i.b16 %v3271, %v3270
      %v3275 = vpack.i.b16 %v3162, %v3128
      %v3276 = vshrl.u32 %v3128, 16
      %v3277 = vshrl.u32 %v3162, 16
      %v3278 = vpack.i.b16 %v3277, %v3276
      %v3281 = vpack.i.b16 %v3085, %v3051
      %v3282 = vshrl.u32 %v3051, 16
      %v3283 = vshrl.u32 %v3085, 16
      %v3284 = vpack.i.b16 %v3283, %v3282
      %v3287 = vpack.i.b16 %v3093, %v3059
      %v3288 = vshrl.u32 %v3059, 16
      %v3289 = vshrl.u32 %v3093, 16
      %v3290 = vpack.i.b16 %v3289, %v3288
      %v3293 = vpack.i.b16 %v3092, %v3058
      %v3294 = vshrl.u32 %v3058, 16
      %v3295 = vshrl.u32 %v3092, 16
      %v3296 = vpack.i.b16 %v3295, %v3294
      %v3299 = vpack.i.b16 %v3094, %v3060
      %v3300 = vshrl.u32 %v3060, 16
      %v3301 = vshrl.u32 %v3094, 16
      %v3302 = vpack.i.b16 %v3301, %v3300
      %v3305 = vpack.i.b16 %v3221, %v3187
      %v3306 = vshrl.u32 %v3187, 16
      %v3307 = vshrl.u32 %v3221, 16
      %v3308 = vpack.i.b16 %v3307, %v3306
      %v3311 = vpack.i.b16 %v3229, %v3195
      %v3312 = vshrl.u32 %v3195, 16
      %v3313 = vshrl.u32 %v3229, 16
      %v3314 = vpack.i.b16 %v3313, %v3312
      %v3317 = vpack.i.b16 %v3228, %v3194
      %v3318 = vshrl.u32 %v3194, 16
      %v3319 = vshrl.u32 %v3228, 16
      %v3320 = vpack.i.b16 %v3319, %v3318
      %v3323 = vpack.i.b16 %v3230, %v3196
      %v3324 = vshrl.u32 %v3196, 16
      %v3325 = vshrl.u32 %v3230, 16
      %v3326 = vpack.i.b16 %v3325, %v3324
      %vm3327 = vcmask 1042432
      %vm3328 = vcmask 1046532
      %vm3329 = vmor %vm3327, %vm3328
      %v3330 = vrot.slane %v202, 5
      %v3331 = vrot.slane %v3330, 4
      %v3332 = vrot.slane %v203, 5
      %v3333 = vsel %vm3329, %v3331, %v3332
      %v3334 = vrot.slane %v3332, 4
      %v3335 = vrot.slane %v204, 5
      %v3336 = vsel %vm3329, %v3334, %v3335
      %v3337 = vrot.slane %v208, 5
      %v3338 = vrot.slane %v3337, 4
      %v3339 = vrot.slane %v210, 5
      %v3340 = vsel %vm3329, %v3338, %v3339
      %v3341 = vrot.slane %v3339, 4
      %v3342 = vrot.slane %v1583, 5
      %v3343 = vsel %vm3329, %v3341, %v3342
      %v3344 = vrot.slane %v214, 5
      %v3345 = vrot.slane %v3344, 4
      %v3346 = vrot.slane %v216, 5
      %v3347 = vsel %vm3329, %v3345, %v3346
      %v3348 = vrot.slane %v3346, 4
      %v3349 = vrot.slane %v1585, 5
      %v3350 = vsel %vm3329, %v3348, %v3349
      %v3351 = vrot.slane %v220, 5
      %v3352 = vrot.slane %v3351, 4
      %v3353 = vrot.slane %v222, 5
      %v3354 = vsel %vm3329, %v3352, %v3353
      %v3355 = vrot.slane %v3353, 4
      %v3356 = vrot.slane %v1587, 5
      %v3357 = vsel %vm3329, %v3355, %v3356
      %v3358 = vrot.slane %v226, 5
      %v3359 = vrot.slane %v3358, 4
      %v3360 = vrot.slane %v228, 5
      %v3361 = vsel %vm3329, %v3359, %v3360
      %v3362 = vrot.slane %v3360, 4
      %v3363 = vrot.slane %v1589, 5
      %v3364 = vsel %vm3329, %v3362, %v3363
      %v3365 = vrot.slane %v232, 5
      %v3366 = vrot.slane %v3365, 4
      %v3367 = vrot.slane %v234, 5
      %v3368 = vsel %vm3329, %v3366, %v3367
      %v3369 = vrot.slane %v3367, 4
      %v3370 = vrot.slane %v1591, 5
      %v3371 = vsel %vm3329, %v3369, %v3370
      %v3372 = vrot.slane %v238, 5
      %v3373 = vrot.slane %v3372, 4
      %v3374 = vrot.slane %v240, 5
      %v3375 = vsel %vm3329, %v3373, %v3374
      %v3376 = vrot.slane %v3374, 4
      %v3377 = vrot.slane %v1593, 5
      %v3378 = vsel %vm3329, %v3376, %v3377
      %v3379 = vrot.slane %v244, 5
      %v3380 = vrot.slane %v3379, 4
      %v3381 = vrot.slane %v246, 5
      %v3382 = vsel %vm3329, %v3380, %v3381
      %v3383 = vrot.slane %v3381, 4
      %v3384 = vrot.slane %v1595, 5
      %v3385 = vsel %vm3329, %v3383, %v3384
      %v3386 = vrot.slane %v250, 5
      %v3387 = vrot.slane %v3386, 4
      %v3388 = vrot.slane %v252, 5
      %v3389 = vsel %vm3329, %v3387, %v3388
      %v3390 = vrot.slane %v3388, 4
      %v3391 = vrot.slane %v1597, 5
      %v3392 = vsel %vm3329, %v3390, %v3391
      %v3393 = vrot.slane %v256, 5
      %v3394 = vrot.slane %v3393, 4
      %v3395 = vrot.slane %v258, 5
      %v3396 = vsel %vm3329, %v3394, %v3395
      %v3397 = vrot.slane %v3395, 4
      %v3398 = vrot.slane %v1599, 5
      %v3399 = vsel %vm3329, %v3397, %v3398
      %v3400 = vrot.slane %v262, 5
      %v3401 = vrot.slane %v3400, 4
      %v3402 = vrot.slane %v264, 5
      %v3403 = vsel %vm3329, %v3401, %v3402
      %v3404 = vrot.slane %v3402, 4
      %v3405 = vrot.slane %v1601, 5
      %v3406 = vsel %vm3329, %v3404, %v3405
      %v3407 = vrot.slane %v268, 5
      %v3408 = vrot.slane %v3407, 4
      %v3409 = vrot.slane %v270, 5
      %v3410 = vsel %vm3329, %v3408, %v3409
      %v3411 = vrot.slane %v3409, 4
      %v3412 = vrot.slane %v1603, 5
      %v3413 = vsel %vm3329, %v3411, %v3412
      %v3414 = vrot.slane %v274, 5
      %v3415 = vrot.slane %v3414, 4
      %v3416 = vrot.slane %v276, 5
      %v3417 = vsel %vm3329, %v3415, %v3416
      %v3418 = vrot.slane %v3416, 4
      %v3419 = vrot.slane %v1605, 5
      %v3420 = vsel %vm3329, %v3418, %v3419
      %v3421 = vrot.slane %v280, 5
      %v3422 = vrot.slane %v3421, 4
      %v3423 = vrot.slane %v282, 5
      %v3424 = vsel %vm3329, %v3422, %v3423
      %v3425 = vrot.slane %v3423, 4
      %v3426 = vrot.slane %v1607, 5
      %v3427 = vsel %vm3329, %v3425, %v3426
      %v3428 = vrot.slane %v286, 5
      %v3429 = vrot.slane %v3428, 4
      %v3430 = vrot.slane %v288, 5
      %v3431 = vsel %vm3329, %v3429, %v3430
      %v3432 = vrot.slane %v3430, 4
      %v3433 = vrot.slane %v1609, 5
      %v3434 = vsel %vm3329, %v3432, %v3433
      %v3435 = vrot.slane %v292, 5
      %v3436 = vrot.slane %v3435, 4
      %v3437 = vrot.slane %v294, 5
      %v3438 = vsel %vm3329, %v3436, %v3437
      %v3439 = vrot.slane %v3437, 4
      %v3440 = vrot.slane %v1611, 5
      %v3441 = vsel %vm3329, %v3439, %v3440
      %v3474 = vcombine.low %v3333, %v3361
      %v3476 = vunpack.c.l.s4 1983009808
      %v3477 = vunpack.c.0.s8 %v3476
      %v3478 = vlaneseq
      %v3479 = vshrl.u32 %v3478, 7
      %v3480 = vsub.s32 %v3477, %v3479
      %v3481 = vrot.slane %v3474, %v3480
      %v3482 = vcombine.low %v3347, %v3375
      %v3484 = vunpack.c.l.s4 1983009808
      %v3485 = vunpack.c.0.s8 %v3484
      %v3486 = vlaneseq
      %v3487 = vshrl.u32 %v3486, 7
      %v3488 = vsub.s32 %v3485, %v3487
      %v3489 = vrot.slane %v3482, %v3488
      %v3490 = vcombine.low %v3481, %v3489
      %v3491 = vcombine.high %v3481, %v3489
      %v3493 = vunpack.c.l.s4 1934713408
      %v3494 = vunpack.c.0.s8 %v3493
      %v3495 = vlaneseq
      %v3496 = vshrl.u32 %v3495, 7
      %v3497 = vsub.s32 %v3494, %v3496
      %v3498 = vrot.slane %v3490, %v3497
      %v3500 = vunpack.c.l.s4 1934713408
      %v3501 = vunpack.c.0.s8 %v3500
      %v3502 = vlaneseq
      %v3503 = vshrl.u32 %v3502, 7
      %v3504 = vsub.s32 %v3501, %v3503
      %v3505 = vrot.slane %v3491, %v3504
      %v3506 = vcombine.high %v3498, 0
      %v3507 = vcombine.high %v3505, 0
      %v3508 = vcombine.low %v3340, %v3368
      %v3510 = vunpack.c.l.s4 1983009808
      %v3511 = vunpack.c.0.s8 %v3510
      %v3512 = vlaneseq
      %v3513 = vshrl.u32 %v3512, 7
      %v3514 = vsub.s32 %v3511, %v3513
      %v3515 = vrot.slane %v3508, %v3514
      %v3516 = vcombine.low %v3354, %v3382
      %v3518 = vunpack.c.l.s4 1983009808
      %v3519 = vunpack.c.0.s8 %v3518
      %v3520 = vlaneseq
      %v3521 = vshrl.u32 %v3520, 7
      %v3522 = vsub.s32 %v3519, %v3521
      %v3523 = vrot.slane %v3516, %v3522
      %v3524 = vcombine.low %v3515, %v3523
      %v3525 = vcombine.high %v3515, %v3523
      %v3527 = vunpack.c.l.s4 1934713408
      %v3528 = vunpack.c.0.s8 %v3527
      %v3529 = vlaneseq
      %v3530 = vshrl.u32 %v3529, 7
      %v3531 = vsub.s32 %v3528, %v3530
      %v3532 = vrot.slane %v3524, %v3531
      %v3534 = vunpack.c.l.s4 1934713408
      %v3535 = vunpack.c.0.s8 %v3534
      %v3536 = vlaneseq
      %v3537 = vshrl.u32 %v3536, 7
      %v3538 = vsub.s32 %v3535, %v3537
      %v3539 = vrot.slane %v3525, %v3538
      %v3540 = vcombine.high %v3532, 0
      %v3541 = vcombine.high %v3539, 0
      %v3542 = vcombine.low %v3389, %v3417
      %v3544 = vunpack.c.l.s4 1983009808
      %v3545 = vunpack.c.0.s8 %v3544
      %v3546 = vlaneseq
      %v3547 = vshrl.u32 %v3546, 7
      %v3548 = vsub.s32 %v3545, %v3547
      %v3549 = vrot.slane %v3542, %v3548
      %v3550 = vcombine.low %v3403, %v3431
      %v3552 = vunpack.c.l.s4 1983009808
      %v3553 = vunpack.c.0.s8 %v3552
      %v3554 = vlaneseq
      %v3555 = vshrl.u32 %v3554, 7
      %v3556 = vsub.s32 %v3553, %v3555
      %v3557 = vrot.slane %v3550, %v3556
      %v3558 = vcombine.low %v3549, %v3557
      %v3559 = vcombine.high %v3549, %v3557
      %v3561 = vunpack.c.l.s4 1934713408
      %v3562 = vunpack.c.0.s8 %v3561
      %v3563 = vlaneseq
      %v3564 = vshrl.u32 %v3563, 7
      %v3565 = vsub.s32 %v3562, %v3564
      %v3566 = vrot.slane %v3558, %v3565
      %v3568 = vunpack.c.l.s4 1934713408
      %v3569 = vunpack.c.0.s8 %v3568
      %v3570 = vlaneseq
      %v3571 = vshrl.u32 %v3570, 7
      %v3572 = vsub.s32 %v3569, %v3571
      %v3573 = vrot.slane %v3559, %v3572
      %v3574 = vcombine.high %v3566, 0
      %v3575 = vcombine.high %v3573, 0
      %v3576 = vcombine.low %v3396, %v3424
      %v3578 = vunpack.c.l.s4 1983009808
      %v3579 = vunpack.c.0.s8 %v3578
      %v3580 = vlaneseq
      %v3581 = vshrl.u32 %v3580, 7
      %v3582 = vsub.s32 %v3579, %v3581
      %v3583 = vrot.slane %v3576, %v3582
      %v3584 = vcombine.low %v3410, %v3438
      %v3586 = vunpack.c.l.s4 1983009808
      %v3587 = vunpack.c.0.s8 %v3586
      %v3588 = vlaneseq
      %v3589 = vshrl.u32 %v3588, 7
      %v3590 = vsub.s32 %v3587, %v3589
      %v3591 = vrot.slane %v3584, %v3590
      %v3592 = vcombine.low %v3583, %v3591
      %v3593 = vcombine.high %v3583, %v3591
      %v3595 = vunpack.c.l.s4 1934713408
      %v3596 = vunpack.c.0.s8 %v3595
      %v3597 = vlaneseq
      %v3598 = vshrl.u32 %v3597, 7
      %v3599 = vsub.s32 %v3596, %v3598
      %v3600 = vrot.slane %v3592, %v3599
      %v3602 = vunpack.c.l.s4 1934713408
      %v3603 = vunpack.c.0.s8 %v3602
      %v3604 = vlaneseq
      %v3605 = vshrl.u32 %v3604, 7
      %v3606 = vsub.s32 %v3603, %v3605
      %v3607 = vrot.slane %v3593, %v3606
      %v3608 = vcombine.high %v3600, 0
      %v3609 = vcombine.high %v3607, 0
      %v3610 = vcombine.low %v3336, %v3364
      %v3612 = vunpack.c.l.s4 1983009808
      %v3613 = vunpack.c.0.s8 %v3612
      %v3614 = vlaneseq
      %v3615 = vshrl.u32 %v3614, 7
      %v3616 = vsub.s32 %v3613, %v3615
      %v3617 = vrot.slane %v3610, %v3616
      %v3618 = vcombine.low %v3350, %v3378
      %v3620 = vunpack.c.l.s4 1983009808
      %v3621 = vunpack.c.0.s8 %v3620
      %v3622 = vlaneseq
      %v3623 = vshrl.u32 %v3622, 7
      %v3624 = vsub.s32 %v3621, %v3623
      %v3625 = vrot.slane %v3618, %v3624
      %v3626 = vcombine.low %v3617, %v3625
      %v3627 = vcombine.high %v3617, %v3625
      %v3629 = vunpack.c.l.s4 1934713408
      %v3630 = vunpack.c.0.s8 %v3629
      %v3631 = vlaneseq
      %v3632 = vshrl.u32 %v3631, 7
      %v3633 = vsub.s32 %v3630, %v3632
      %v3634 = vrot.slane %v3626, %v3633
      %v3636 = vunpack.c.l.s4 1934713408
      %v3637 = vunpack.c.0.s8 %v3636
      %v3638 = vlaneseq
      %v3639 = vshrl.u32 %v3638, 7
      %v3640 = vsub.s32 %v3637, %v3639
      %v3641 = vrot.slane %v3627, %v3640
      %v3642 = vcombine.high %v3634, 0
      %v3643 = vcombine.high %v3641, 0
      %v3644 = vcombine.low %v3343, %v3371
      %v3646 = vunpack.c.l.s4 1983009808
      %v3647 = vunpack.c.0.s8 %v3646
      %v3648 = vlaneseq
      %v3649 = vshrl.u32 %v3648, 7
      %v3650 = vsub.s32 %v3647, %v3649
      %v3651 = vrot.slane %v3644, %v3650
      %v3652 = vcombine.low %v3357, %v3385
      %v3654 = vunpack.c.l.s4 1983009808
      %v3655 = vunpack.c.0.s8 %v3654
      %v3656 = vlaneseq
      %v3657 = vshrl.u32 %v3656, 7
      %v3658 = vsub.s32 %v3655, %v3657
      %v3659 = vrot.slane %v3652, %v3658
      %v3660 = vcombine.low %v3651, %v3659
      %v3661 = vcombine.high %v3651, %v3659
      %v3663 = vunpack.c.l.s4 1934713408
      %v3664 = vunpack.c.0.s8 %v3663
      %v3665 = vlaneseq
      %v3666 = vshrl.u32 %v3665, 7
      %v3667 = vsub.s32 %v3664, %v3666
      %v3668 = vrot.slane %v3660, %v3667
      %v3670 = vunpack.c.l.s4 1934713408
      %v3671 = vunpack.c.0.s8 %v3670
      %v3672 = vlaneseq
      %v3673 = vshrl.u32 %v3672, 7
      %v3674 = vsub.s32 %v3671, %v3673
      %v3675 = vrot.slane %v3661, %v3674
      %v3676 = vcombine.high %v3668, 0
      %v3677 = vcombine.high %v3675, 0
      %v3678 = vcombine.low %v3392, %v3420
      %v3680 = vunpack.c.l.s4 1983009808
      %v3681 = vunpack.c.0.s8 %v3680
      %v3682 = vlaneseq
      %v3683 = vshrl.u32 %v3682, 7
      %v3684 = vsub.s32 %v3681, %v3683
      %v3685 = vrot.slane %v3678, %v3684
      %v3686 = vcombine.low %v3406, %v3434
      %v3688 = vunpack.c.l.s4 1983009808
      %v3689 = vunpack.c.0.s8 %v3688
      %v3690 = vlaneseq
      %v3691 = vshrl.u32 %v3690, 7
      %v3692 = vsub.s32 %v3689, %v3691
      %v3693 = vrot.slane %v3686, %v3692
      %v3694 = vcombine.low %v3685, %v3693
      %v3695 = vcombine.high %v3685, %v3693
      %v3697 = vunpack.c.l.s4 1934713408
      %v3698 = vunpack.c.0.s8 %v3697
      %v3699 = vlaneseq
      %v3700 = vshrl.u32 %v3699, 7
      %v3701 = vsub.s32 %v3698, %v3700
      %v3702 = vrot.slane %v3694, %v3701
      %v3704 = vunpack.c.l.s4 1934713408
      %v3705 = vunpack.c.0.s8 %v3704
      %v3706 = vlaneseq
      %v3707 = vshrl.u32 %v3706, 7
      %v3708 = vsub.s32 %v3705, %v3707
      %v3709 = vrot.slane %v3695, %v3708
      %v3710 = vcombine.high %v3702, 0
      %v3711 = vcombine.high %v3709, 0
      %v3712 = vcombine.low %v3399, %v3427
      %v3714 = vunpack.c.l.s4 1983009808
      %v3715 = vunpack.c.0.s8 %v3714
      %v3716 = vlaneseq
      %v3717 = vshrl.u32 %v3716, 7
      %v3718 = vsub.s32 %v3715, %v3717
      %v3719 = vrot.slane %v3712, %v3718
      %v3720 = vcombine.low %v3413, %v3441
      %v3722 = vunpack.c.l.s4 1983009808
      %v3723 = vunpack.c.0.s8 %v3722
      %v3724 = vlaneseq
      %v3725 = vshrl.u32 %v3724, 7
      %v3726 = vsub.s32 %v3723, %v3725
      %v3727 = vrot.slane %v3720, %v3726
      %v3728 = vcombine.low %v3719, %v3727
      %v3729 = vcombine.high %v3719, %v3727
      %v3731 = vunpack.c.l.s4 1934713408
      %v3732 = vunpack.c.0.s8 %v3731
      %v3733 = vlaneseq
      %v3734 = vshrl.u32 %v3733, 7
      %v3735 = vsub.s32 %v3732, %v3734
      %v3736 = vrot.slane %v3728, %v3735
      %v3738 = vunpack.c.l.s4 1934713408
      %v3739 = vunpack.c.0.s8 %v3738
      %v3740 = vlaneseq
      %v3741 = vshrl.u32 %v3740, 7
      %v3742 = vsub.s32 %v3739, %v3741
      %v3743 = vrot.slane %v3729, %v3742
      %v3744 = vcombine.high %v3736, 0
      %v3745 = vcombine.high %v3743, 0
      %v3748 = vpack.i.b16 %v3532, %v3498
      %v3749 = vshrl.u32 %v3498, 16
      %v3750 = vshrl.u32 %v3532, 16
      %v3751 = vpack.i.b16 %v3750, %v3749
      %v3754 = vpack.i.b16 %v3540, %v3506
      %v3755 = vshrl.u32 %v3506, 16
      %v3756 = vshrl.u32 %v3540, 16
      %v3757 = vpack.i.b16 %v3756, %v3755
      %v3760 = vpack.i.b16 %v3539, %v3505
      %v3761 = vshrl.u32 %v3505, 16
      %v3762 = vshrl.u32 %v3539, 16
      %v3763 = vpack.i.b16 %v3762, %v3761
      %v3766 = vpack.i.b16 %v3541, %v3507
      %v3767 = vshrl.u32 %v3507, 16
      %v3768 = vshrl.u32 %v3541, 16
      %v3769 = vpack.i.b16 %v3768, %v3767
      %v3772 = vpack.i.b16 %v3668, %v3634
      %v3773 = vshrl.u32 %v3634, 16
      %v3774 = vshrl.u32 %v3668, 16
      %v3775 = vpack.i.b16 %v3774, %v3773
      %v3778 = vpack.i.b16 %v3676, %v3642
      %v3779 = vshrl.u32 %v3642, 16
      %v3780 = vshrl.u32 %v3676, 16
      %v3781 = vpack.i.b16 %v3780, %v3779
      %v3784 = vpack.i.b16 %v3675, %v3641
      %v3785 = vshrl.u32 %v3641, 16
      %v3786 = vshrl.u32 %v3675, 16
      %v3787 = vpack.i.b16 %v3786, %v3785
      %v3790 = vpack.i.b16 %v3677, %v3643
      %v3791 = vshrl.u32 %v3643, 16
      %v3792 = vshrl.u32 %v3677, 16
      %v3793 = vpack.i.b16 %v3792, %v3791
      %v3796 = vpack.i.b16 %v3600, %v3566
      %v3797 = vshrl.u32 %v3566, 16
      %v3798 = vshrl.u32 %v3600, 16
      %v3799 = vpack.i.b16 %v3798, %v3797
      %v3802 = vpack.i.b16 %v3608, %v3574
      %v3803 = vshrl.u32 %v3574, 16
      %v3804 = vshrl.u32 %v3608, 16
      %v3805 = vpack.i.b16 %v3804, %v3803
      %v3808 = vpack.i.b16 %v3607, %v3573
      %v3809 = vshrl.u32 %v3573, 16
      %v3810 = vshrl.u32 %v3607, 16
      %v3811 = vpack.i.b16 %v3810, %v3809
      %v3814 = vpack.i.b16 %v3609, %v3575
      %v3815 = vshrl.u32 %v3575, 16
      %v3816 = vshrl.u32 %v3609, 16
      %v3817 = vpack.i.b16 %v3816, %v3815
      %v3820 = vpack.i.b16 %v3736, %v3702
      %v3821 = vshrl.u32 %v3702, 16
      %v3822 = vshrl.u32 %v3736, 16
      %v3823 = vpack.i.b16 %v3822, %v3821
      %v3826 = vpack.i.b16 %v3744, %v3710
      %v3827 = vshrl.u32 %v3710, 16
      %v3828 = vshrl.u32 %v3744, 16
      %v3829 = vpack.i.b16 %v3828, %v3827
      %v3832 = vpack.i.b16 %v3743, %v3709
      %v3833 = vshrl.u32 %v3709, 16
      %v3834 = vshrl.u32 %v3743, 16
      %v3835 = vpack.i.b16 %v3834, %v3833
      %v3838 = vpack.i.b16 %v3745, %v3711
      %v3839 = vshrl.u32 %v3711, 16
      %v3840 = vshrl.u32 %v3745, 16
      %v3841 = vpack.i.b16 %v3840, %v3839
      %3842 = vrot.lane.b32.xlu0 %v3333, 124
      %v3843 = vpop.permute.xlu0 %3842
      %3844 = vrot.lane.b32.xlu0 %v3336, 124
      %v3845 = vpop.permute.xlu0 %3844
      %3846 = vrot.lane.b32.xlu0 %v3340, 124
      %v3847 = vpop.permute.xlu0 %3846
      %3848 = vrot.lane.b32.xlu0 %v3343, 124
      %v3849 = vpop.permute.xlu0 %3848
      %3850 = vrot.lane.b32.xlu0 %v3347, 124
      %v3851 = vpop.permute.xlu0 %3850
      %3852 = vrot.lane.b32.xlu0 %v3350, 124
      %v3853 = vpop.permute.xlu0 %3852
      %3854 = vrot.lane.b32.xlu0 %v3354, 124
      %v3855 = vpop.permute.xlu0 %3854
      %3856 = vrot.lane.b32.xlu0 %v3357, 124
      %v3857 = vpop.permute.xlu0 %3856
      %3858 = vrot.lane.b32.xlu0 %v3361, 124
      %v3859 = vpop.permute.xlu0 %3858
      %3860 = vrot.lane.b32.xlu0 %v3364, 124
      %v3861 = vpop.permute.xlu0 %3860
      %3862 = vrot.lane.b32.xlu0 %v3368, 124
      %v3863 = vpop.permute.xlu0 %3862
      %3864 = vrot.lane.b32.xlu0 %v3371, 124
      %v3865 = vpop.permute.xlu0 %3864
      %3866 = vrot.lane.b32.xlu0 %v3375, 124
      %v3867 = vpop.permute.xlu0 %3866
      %3868 = vrot.lane.b32.xlu0 %v3378, 124
      %v3869 = vpop.permute.xlu0 %3868
      %3870 = vrot.lane.b32.xlu0 %v3382, 124
      %v3871 = vpop.permute.xlu0 %3870
      %3872 = vrot.lane.b32.xlu0 %v3385, 124
      %v3873 = vpop.permute.xlu0 %3872
      %3874 = vrot.lane.b32.xlu0 %v3389, 124
      %v3875 = vpop.permute.xlu0 %3874
      %3876 = vrot.lane.b32.xlu0 %v3392, 124
      %v3877 = vpop.permute.xlu0 %3876
      %3878 = vrot.lane.b32.xlu0 %v3396, 124
      %v3879 = vpop.permute.xlu0 %3878
      %3880 = vrot.lane.b32.xlu0 %v3399, 124
      %v3881 = vpop.permute.xlu0 %3880
      %3882 = vrot.lane.b32.xlu0 %v3403, 124
      %v3883 = vpop.permute.xlu0 %3882
      %3884 = vrot.lane.b32.xlu0 %v3406, 124
      %v3885 = vpop.permute.xlu0 %3884
      %3886 = vrot.lane.b32.xlu0 %v3410, 124
      %v3887 = vpop.permute.xlu0 %3886
      %3888 = vrot.lane.b32.xlu0 %v3413, 124
      %v3889 = vpop.permute.xlu0 %3888
      %3890 = vrot.lane.b32.xlu0 %v3417, 124
      %v3891 = vpop.permute.xlu0 %3890
      %3892 = vrot.lane.b32.xlu0 %v3420, 124
      %v3893 = vpop.permute.xlu0 %3892
      %3894 = vrot.lane.b32.xlu0 %v3424, 124
      %v3895 = vpop.permute.xlu0 %3894
      %3896 = vrot.lane.b32.xlu0 %v3427, 124
      %v3897 = vpop.permute.xlu0 %3896
      %3898 = vrot.lane.b32.xlu0 %v3431, 124
      %v3899 = vpop.permute.xlu0 %3898
      %3900 = vrot.lane.b32.xlu0 %v3434, 124
      %v3901 = vpop.permute.xlu0 %3900
      %3902 = vrot.lane.b32.xlu0 %v3438, 124
      %v3903 = vpop.permute.xlu0 %3902
      %3904 = vrot.lane.b32.xlu0 %v3441, 124
      %v3905 = vpop.permute.xlu0 %3904
      %v3938 = vcombine.low %v3843, %v3859
      %v3940 = vunpack.c.l.s4 1983009808
      %v3941 = vunpack.c.0.s8 %v3940
      %v3942 = vlaneseq
      %v3943 = vshrl.u32 %v3942, 7
      %v3944 = vsub.s32 %v3941, %v3943
      %v3945 = vrot.slane %v3938, %v3944
      %v3946 = vcombine.low %v3851, %v3867
      %v3948 = vunpack.c.l.s4 1983009808
      %v3949 = vunpack.c.0.s8 %v3948
      %v3950 = vlaneseq
      %v3951 = vshrl.u32 %v3950, 7
      %v3952 = vsub.s32 %v3949, %v3951
      %v3953 = vrot.slane %v3946, %v3952
      %v3954 = vcombine.low %v3945, %v3953
      %v3955 = vcombine.high %v3945, %v3953
      %v3957 = vunpack.c.l.s4 1934713408
      %v3958 = vunpack.c.0.s8 %v3957
      %v3959 = vlaneseq
      %v3960 = vshrl.u32 %v3959, 7
      %v3961 = vsub.s32 %v3958, %v3960
      %v3962 = vrot.slane %v3954, %v3961
      %v3964 = vunpack.c.l.s4 1934713408
      %v3965 = vunpack.c.0.s8 %v3964
      %v3966 = vlaneseq
      %v3967 = vshrl.u32 %v3966, 7
      %v3968 = vsub.s32 %v3965, %v3967
      %v3969 = vrot.slane %v3955, %v3968
      %v3970 = vcombine.high %v3962, 0
      %v3971 = vcombine.high %v3969, 0
      %v3972 = vcombine.low %v3847, %v3863
      %v3974 = vunpack.c.l.s4 1983009808
      %v3975 = vunpack.c.0.s8 %v3974
      %v3976 = vlaneseq
      %v3977 = vshrl.u32 %v3976, 7
      %v3978 = vsub.s32 %v3975, %v3977
      %v3979 = vrot.slane %v3972, %v3978
      %v3980 = vcombine.low %v3855, %v3871
      %v3982 = vunpack.c.l.s4 1983009808
      %v3983 = vunpack.c.0.s8 %v3982
      %v3984 = vlaneseq
      %v3985 = vshrl.u32 %v3984, 7
      %v3986 = vsub.s32 %v3983, %v3985
      %v3987 = vrot.slane %v3980, %v3986
      %v3988 = vcombine.low %v3979, %v3987
      %v3989 = vcombine.high %v3979, %v3987
      %v3991 = vunpack.c.l.s4 1934713408
      %v3992 = vunpack.c.0.s8 %v3991
      %v3993 = vlaneseq
      %v3994 = vshrl.u32 %v3993, 7
      %v3995 = vsub.s32 %v3992, %v3994
      %v3996 = vrot.slane %v3988, %v3995
      %v3998 = vunpack.c.l.s4 1934713408
      %v3999 = vunpack.c.0.s8 %v3998
      %v4000 = vlaneseq
      %v4001 = vshrl.u32 %v4000, 7
      %v4002 = vsub.s32 %v3999, %v4001
      %v4003 = vrot.slane %v3989, %v4002
      %v4004 = vcombine.high %v3996, 0
      %v4005 = vcombine.high %v4003, 0
      %v4006 = vcombine.low %v3875, %v3891
      %v4008 = vunpack.c.l.s4 1983009808
      %v4009 = vunpack.c.0.s8 %v4008
      %v4010 = vlaneseq
      %v4011 = vshrl.u32 %v4010, 7
      %v4012 = vsub.s32 %v4009, %v4011
      %v4013 = vrot.slane %v4006, %v4012
      %v4014 = vcombine.low %v3883, %v3899
      %v4016 = vunpack.c.l.s4 1983009808
      %v4017 = vunpack.c.0.s8 %v4016
      %v4018 = vlaneseq
      %v4019 = vshrl.u32 %v4018, 7
      %v4020 = vsub.s32 %v4017, %v4019
      %v4021 = vrot.slane %v4014, %v4020
      %v4022 = vcombine.low %v4013, %v4021
      %v4023 = vcombine.high %v4013, %v4021
      %v4025 = vunpack.c.l.s4 1934713408
      %v4026 = vunpack.c.0.s8 %v4025
      %v4027 = vlaneseq
      %v4028 = vshrl.u32 %v4027, 7
      %v4029 = vsub.s32 %v4026, %v4028
      %v4030 = vrot.slane %v4022, %v4029
      %v4032 = vunpack.c.l.s4 1934713408
      %v4033 = vunpack.c.0.s8 %v4032
      %v4034 = vlaneseq
      %v4035 = vshrl.u32 %v4034, 7
      %v4036 = vsub.s32 %v4033, %v4035
      %v4037 = vrot.slane %v4023, %v4036
      %v4038 = vcombine.high %v4030, 0
      %v4039 = vcombine.high %v4037, 0
      %v4040 = vcombine.low %v3879, %v3895
      %v4042 = vunpack.c.l.s4 1983009808
      %v4043 = vunpack.c.0.s8 %v4042
      %v4044 = vlaneseq
      %v4045 = vshrl.u32 %v4044, 7
      %v4046 = vsub.s32 %v4043, %v4045
      %v4047 = vrot.slane %v4040, %v4046
      %v4048 = vcombine.low %v3887, %v3903
      %v4050 = vunpack.c.l.s4 1983009808
      %v4051 = vunpack.c.0.s8 %v4050
      %v4052 = vlaneseq
      %v4053 = vshrl.u32 %v4052, 7
      %v4054 = vsub.s32 %v4051, %v4053
      %v4055 = vrot.slane %v4048, %v4054
      %v4056 = vcombine.low %v4047, %v4055
      %v4057 = vcombine.high %v4047, %v4055
      %v4059 = vunpack.c.l.s4 1934713408
      %v4060 = vunpack.c.0.s8 %v4059
      %v4061 = vlaneseq
      %v4062 = vshrl.u32 %v4061, 7
      %v4063 = vsub.s32 %v4060, %v4062
      %v4064 = vrot.slane %v4056, %v4063
      %v4066 = vunpack.c.l.s4 1934713408
      %v4067 = vunpack.c.0.s8 %v4066
      %v4068 = vlaneseq
      %v4069 = vshrl.u32 %v4068, 7
      %v4070 = vsub.s32 %v4067, %v4069
      %v4071 = vrot.slane %v4057, %v4070
      %v4072 = vcombine.high %v4064, 0
      %v4073 = vcombine.high %v4071, 0
      %v4074 = vcombine.low %v3845, %v3861
      %v4076 = vunpack.c.l.s4 1983009808
      %v4077 = vunpack.c.0.s8 %v4076
      %v4078 = vlaneseq
      %v4079 = vshrl.u32 %v4078, 7
      %v4080 = vsub.s32 %v4077, %v4079
      %v4081 = vrot.slane %v4074, %v4080
      %v4082 = vcombine.low %v3853, %v3869
      %v4084 = vunpack.c.l.s4 1983009808
      %v4085 = vunpack.c.0.s8 %v4084
      %v4086 = vlaneseq
      %v4087 = vshrl.u32 %v4086, 7
      %v4088 = vsub.s32 %v4085, %v4087
      %v4089 = vrot.slane %v4082, %v4088
      %v4090 = vcombine.low %v4081, %v4089
      %v4091 = vcombine.high %v4081, %v4089
      %v4093 = vunpack.c.l.s4 1934713408
      %v4094 = vunpack.c.0.s8 %v4093
      %v4095 = vlaneseq
      %v4096 = vshrl.u32 %v4095, 7
      %v4097 = vsub.s32 %v4094, %v4096
      %v4098 = vrot.slane %v4090, %v4097
      %v4100 = vunpack.c.l.s4 1934713408
      %v4101 = vunpack.c.0.s8 %v4100
      %v4102 = vlaneseq
      %v4103 = vshrl.u32 %v4102, 7
      %v4104 = vsub.s32 %v4101, %v4103
      %v4105 = vrot.slane %v4091, %v4104
      %v4106 = vcombine.high %v4098, 0
      %v4107 = vcombine.high %v4105, 0
      %v4108 = vcombine.low %v3849, %v3865
      %v4110 = vunpack.c.l.s4 1983009808
      %v4111 = vunpack.c.0.s8 %v4110
      %v4112 = vlaneseq
      %v4113 = vshrl.u32 %v4112, 7
      %v4114 = vsub.s32 %v4111, %v4113
      %v4115 = vrot.slane %v4108, %v4114
      %v4116 = vcombine.low %v3857, %v3873
      %v4118 = vunpack.c.l.s4 1983009808
      %v4119 = vunpack.c.0.s8 %v4118
      %v4120 = vlaneseq
      %v4121 = vshrl.u32 %v4120, 7
      %v4122 = vsub.s32 %v4119, %v4121
      %v4123 = vrot.slane %v4116, %v4122
      %v4124 = vcombine.low %v4115, %v4123
      %v4125 = vcombine.high %v4115, %v4123
      %v4127 = vunpack.c.l.s4 1934713408
      %v4128 = vunpack.c.0.s8 %v4127
      %v4129 = vlaneseq
      %v4130 = vshrl.u32 %v4129, 7
      %v4131 = vsub.s32 %v4128, %v4130
      %v4132 = vrot.slane %v4124, %v4131
      %v4134 = vunpack.c.l.s4 1934713408
      %v4135 = vunpack.c.0.s8 %v4134
      %v4136 = vlaneseq
      %v4137 = vshrl.u32 %v4136, 7
      %v4138 = vsub.s32 %v4135, %v4137
      %v4139 = vrot.slane %v4125, %v4138
      %v4140 = vcombine.high %v4132, 0
      %v4141 = vcombine.high %v4139, 0
      %v4142 = vcombine.low %v3877, %v3893
      %v4144 = vunpack.c.l.s4 1983009808
      %v4145 = vunpack.c.0.s8 %v4144
      %v4146 = vlaneseq
      %v4147 = vshrl.u32 %v4146, 7
      %v4148 = vsub.s32 %v4145, %v4147
      %v4149 = vrot.slane %v4142, %v4148
      %v4150 = vcombine.low %v3885, %v3901
      %v4152 = vunpack.c.l.s4 1983009808
      %v4153 = vunpack.c.0.s8 %v4152
      %v4154 = vlaneseq
      %v4155 = vshrl.u32 %v4154, 7
      %v4156 = vsub.s32 %v4153, %v4155
      %v4157 = vrot.slane %v4150, %v4156
      %v4158 = vcombine.low %v4149, %v4157
      %v4159 = vcombine.high %v4149, %v4157
      %v4161 = vunpack.c.l.s4 1934713408
      %v4162 = vunpack.c.0.s8 %v4161
      %v4163 = vlaneseq
      %v4164 = vshrl.u32 %v4163, 7
      %v4165 = vsub.s32 %v4162, %v4164
      %v4166 = vrot.slane %v4158, %v4165
      %v4168 = vunpack.c.l.s4 1934713408
      %v4169 = vunpack.c.0.s8 %v4168
      %v4170 = vlaneseq
      %v4171 = vshrl.u32 %v4170, 7
      %v4172 = vsub.s32 %v4169, %v4171
      %v4173 = vrot.slane %v4159, %v4172
      %v4174 = vcombine.high %v4166, 0
      %v4175 = vcombine.high %v4173, 0
      %v4176 = vcombine.low %v3881, %v3897
      %v4178 = vunpack.c.l.s4 1983009808
      %v4179 = vunpack.c.0.s8 %v4178
      %v4180 = vlaneseq
      %v4181 = vshrl.u32 %v4180, 7
      %v4182 = vsub.s32 %v4179, %v4181
      %v4183 = vrot.slane %v4176, %v4182
      %v4184 = vcombine.low %v3889, %v3905
      %v4186 = vunpack.c.l.s4 1983009808
      %v4187 = vunpack.c.0.s8 %v4186
      %v4188 = vlaneseq
      %v4189 = vshrl.u32 %v4188, 7
      %v4190 = vsub.s32 %v4187, %v4189
      %v4191 = vrot.slane %v4184, %v4190
      %v4192 = vcombine.low %v4183, %v4191
      %v4193 = vcombine.high %v4183, %v4191
      %v4195 = vunpack.c.l.s4 1934713408
      %v4196 = vunpack.c.0.s8 %v4195
      %v4197 = vlaneseq
      %v4198 = vshrl.u32 %v4197, 7
      %v4199 = vsub.s32 %v4196, %v4198
      %v4200 = vrot.slane %v4192, %v4199
      %v4202 = vunpack.c.l.s4 1934713408
      %v4203 = vunpack.c.0.s8 %v4202
      %v4204 = vlaneseq
      %v4205 = vshrl.u32 %v4204, 7
      %v4206 = vsub.s32 %v4203, %v4205
      %v4207 = vrot.slane %v4193, %v4206
      %v4208 = vcombine.high %v4200, 0
      %v4209 = vcombine.high %v4207, 0
      %v4212 = vpack.i.b16 %v3996, %v3962
      %v4213 = vshrl.u32 %v3962, 16
      %v4214 = vshrl.u32 %v3996, 16
      %v4215 = vpack.i.b16 %v4214, %v4213
      %v4218 = vpack.i.b16 %v4004, %v3970
      %v4219 = vshrl.u32 %v3970, 16
      %v4220 = vshrl.u32 %v4004, 16
      %v4221 = vpack.i.b16 %v4220, %v4219
      %v4224 = vpack.i.b16 %v4003, %v3969
      %v4225 = vshrl.u32 %v3969, 16
      %v4226 = vshrl.u32 %v4003, 16
      %v4227 = vpack.i.b16 %v4226, %v4225
      %v4230 = vpack.i.b16 %v4005, %v3971
      %v4231 = vshrl.u32 %v3971, 16
      %v4232 = vshrl.u32 %v4005, 16
      %v4233 = vpack.i.b16 %v4232, %v4231
      %v4236 = vpack.i.b16 %v4132, %v4098
      %v4237 = vshrl.u32 %v4098, 16
      %v4238 = vshrl.u32 %v4132, 16
      %v4239 = vpack.i.b16 %v4238, %v4237
      %v4242 = vpack.i.b16 %v4140, %v4106
      %v4243 = vshrl.u32 %v4106, 16
      %v4244 = vshrl.u32 %v4140, 16
      %v4245 = vpack.i.b16 %v4244, %v4243
      %v4248 = vpack.i.b16 %v4139, %v4105
      %v4249 = vshrl.u32 %v4105, 16
      %v4250 = vshrl.u32 %v4139, 16
      %v4251 = vpack.i.b16 %v4250, %v4249
      %v4254 = vpack.i.b16 %v4141, %v4107
      %v4255 = vshrl.u32 %v4107, 16
      %v4256 = vshrl.u32 %v4141, 16
      %v4257 = vpack.i.b16 %v4256, %v4255
      %v4260 = vpack.i.b16 %v4064, %v4030
      %v4261 = vshrl.u32 %v4030, 16
      %v4262 = vshrl.u32 %v4064, 16
      %v4263 = vpack.i.b16 %v4262, %v4261
      %v4266 = vpack.i.b16 %v4072, %v4038
      %v4267 = vshrl.u32 %v4038, 16
      %v4268 = vshrl.u32 %v4072, 16
      %v4269 = vpack.i.b16 %v4268, %v4267
      %v4272 = vpack.i.b16 %v4071, %v4037
      %v4273 = vshrl.u32 %v4037, 16
      %v4274 = vshrl.u32 %v4071, 16
      %v4275 = vpack.i.b16 %v4274, %v4273
      %v4278 = vpack.i.b16 %v4073, %v4039
      %v4279 = vshrl.u32 %v4039, 16
      %v4280 = vshrl.u32 %v4073, 16
      %v4281 = vpack.i.b16 %v4280, %v4279
      %v4284 = vpack.i.b16 %v4200, %v4166
      %v4285 = vshrl.u32 %v4166, 16
      %v4286 = vshrl.u32 %v4200, 16
      %v4287 = vpack.i.b16 %v4286, %v4285
      %v4290 = vpack.i.b16 %v4208, %v4174
      %v4291 = vshrl.u32 %v4174, 16
      %v4292 = vshrl.u32 %v4208, 16
      %v4293 = vpack.i.b16 %v4292, %v4291
      %v4296 = vpack.i.b16 %v4207, %v4173
      %v4297 = vshrl.u32 %v4173, 16
      %v4298 = vshrl.u32 %v4207, 16
      %v4299 = vpack.i.b16 %v4298, %v4297
      %v4302 = vpack.i.b16 %v4209, %v4175
      %v4303 = vshrl.u32 %v4175, 16
      %v4304 = vshrl.u32 %v4209, 16
      %v4305 = vpack.i.b16 %v4304, %v4303
      %4306 = vrot.lane.b32.xlu0 %v3333, 120
      %v4307 = vpop.permute.xlu0 %4306
      %4308 = vrot.lane.b32.xlu0 %v3336, 120
      %v4309 = vpop.permute.xlu0 %4308
      %4310 = vrot.lane.b32.xlu0 %v3340, 120
      %v4311 = vpop.permute.xlu0 %4310
      %4312 = vrot.lane.b32.xlu0 %v3343, 120
      %v4313 = vpop.permute.xlu0 %4312
      %4314 = vrot.lane.b32.xlu0 %v3347, 120
      %v4315 = vpop.permute.xlu0 %4314
      %4316 = vrot.lane.b32.xlu0 %v3350, 120
      %v4317 = vpop.permute.xlu0 %4316
      %4318 = vrot.lane.b32.xlu0 %v3354, 120
      %v4319 = vpop.permute.xlu0 %4318
      %4320 = vrot.lane.b32.xlu0 %v3357, 120
      %v4321 = vpop.permute.xlu0 %4320
      %4322 = vrot.lane.b32.xlu0 %v3361, 120
      %v4323 = vpop.permute.xlu0 %4322
      %4324 = vrot.lane.b32.xlu0 %v3364, 120
      %v4325 = vpop.permute.xlu0 %4324
      %4326 = vrot.lane.b32.xlu0 %v3368, 120
      %v4327 = vpop.permute.xlu0 %4326
      %4328 = vrot.lane.b32.xlu0 %v3371, 120
      %v4329 = vpop.permute.xlu0 %4328
      %4330 = vrot.lane.b32.xlu0 %v3375, 120
      %v4331 = vpop.permute.xlu0 %4330
      %4332 = vrot.lane.b32.xlu0 %v3378, 120
      %v4333 = vpop.permute.xlu0 %4332
      %4334 = vrot.lane.b32.xlu0 %v3382, 120
      %v4335 = vpop.permute.xlu0 %4334
      %4336 = vrot.lane.b32.xlu0 %v3385, 120
      %v4337 = vpop.permute.xlu0 %4336
      %4338 = vrot.lane.b32.xlu0 %v3389, 120
      %v4339 = vpop.permute.xlu0 %4338
      %4340 = vrot.lane.b32.xlu0 %v3392, 120
      %v4341 = vpop.permute.xlu0 %4340
      %4342 = vrot.lane.b32.xlu0 %v3396, 120
      %v4343 = vpop.permute.xlu0 %4342
      %4344 = vrot.lane.b32.xlu0 %v3399, 120
      %v4345 = vpop.permute.xlu0 %4344
      %4346 = vrot.lane.b32.xlu0 %v3403, 120
      %v4347 = vpop.permute.xlu0 %4346
      %4348 = vrot.lane.b32.xlu0 %v3406, 120
      %v4349 = vpop.permute.xlu0 %4348
      %4350 = vrot.lane.b32.xlu0 %v3410, 120
      %v4351 = vpop.permute.xlu0 %4350
      %4352 = vrot.lane.b32.xlu0 %v3413, 120
      %v4353 = vpop.permute.xlu0 %4352
      %4354 = vrot.lane.b32.xlu0 %v3417, 120
      %v4355 = vpop.permute.xlu0 %4354
      %4356 = vrot.lane.b32.xlu0 %v3420, 120
      %v4357 = vpop.permute.xlu0 %4356
      %4358 = vrot.lane.b32.xlu0 %v3424, 120
      %v4359 = vpop.permute.xlu0 %4358
      %4360 = vrot.lane.b32.xlu0 %v3427, 120
      %v4361 = vpop.permute.xlu0 %4360
      %4362 = vrot.lane.b32.xlu0 %v3431, 120
      %v4363 = vpop.permute.xlu0 %4362
      %4364 = vrot.lane.b32.xlu0 %v3434, 120
      %v4365 = vpop.permute.xlu0 %4364
      %4366 = vrot.lane.b32.xlu0 %v3438, 120
      %v4367 = vpop.permute.xlu0 %4366
      %4368 = vrot.lane.b32.xlu0 %v3441, 120
      %v4369 = vpop.permute.xlu0 %4368
      %v4402 = vcombine.low %v4307, %v4323
      %v4404 = vunpack.c.l.s4 1983009808
      %v4405 = vunpack.c.0.s8 %v4404
      %v4406 = vlaneseq
      %v4407 = vshrl.u32 %v4406, 7
      %v4408 = vsub.s32 %v4405, %v4407
      %v4409 = vrot.slane %v4402, %v4408
      %v4410 = vcombine.low %v4315, %v4331
      %v4412 = vunpack.c.l.s4 1983009808
      %v4413 = vunpack.c.0.s8 %v4412
      %v4414 = vlaneseq
      %v4415 = vshrl.u32 %v4414, 7
      %v4416 = vsub.s32 %v4413, %v4415
      %v4417 = vrot.slane %v4410, %v4416
      %v4418 = vcombine.low %v4409, %v4417
      %v4419 = vcombine.high %v4409, %v4417
      %v4421 = vunpack.c.l.s4 1934713408
      %v4422 = vunpack.c.0.s8 %v4421
      %v4423 = vlaneseq
      %v4424 = vshrl.u32 %v4423, 7
      %v4425 = vsub.s32 %v4422, %v4424
      %v4426 = vrot.slane %v4418, %v4425
      %v4428 = vunpack.c.l.s4 1934713408
      %v4429 = vunpack.c.0.s8 %v4428
      %v4430 = vlaneseq
      %v4431 = vshrl.u32 %v4430, 7
      %v4432 = vsub.s32 %v4429, %v4431
      %v4433 = vrot.slane %v4419, %v4432
      %v4434 = vcombine.high %v4426, 0
      %v4435 = vcombine.high %v4433, 0
      %v4436 = vcombine.low %v4311, %v4327
      %v4438 = vunpack.c.l.s4 1983009808
      %v4439 = vunpack.c.0.s8 %v4438
      %v4440 = vlaneseq
      %v4441 = vshrl.u32 %v4440, 7
      %v4442 = vsub.s32 %v4439, %v4441
      %v4443 = vrot.slane %v4436, %v4442
      %v4444 = vcombine.low %v4319, %v4335
      %v4446 = vunpack.c.l.s4 1983009808
      %v4447 = vunpack.c.0.s8 %v4446
      %v4448 = vlaneseq
      %v4449 = vshrl.u32 %v4448, 7
      %v4450 = vsub.s32 %v4447, %v4449
      %v4451 = vrot.slane %v4444, %v4450
      %v4452 = vcombine.low %v4443, %v4451
      %v4453 = vcombine.high %v4443, %v4451
      %v4455 = vunpack.c.l.s4 1934713408
      %v4456 = vunpack.c.0.s8 %v4455
      %v4457 = vlaneseq
      %v4458 = vshrl.u32 %v4457, 7
      %v4459 = vsub.s32 %v4456, %v4458
      %v4460 = vrot.slane %v4452, %v4459
      %v4462 = vunpack.c.l.s4 1934713408
      %v4463 = vunpack.c.0.s8 %v4462
      %v4464 = vlaneseq
      %v4465 = vshrl.u32 %v4464, 7
      %v4466 = vsub.s32 %v4463, %v4465
      %v4467 = vrot.slane %v4453, %v4466
      %v4468 = vcombine.high %v4460, 0
      %v4469 = vcombine.high %v4467, 0
      %v4470 = vcombine.low %v4339, %v4355
      %v4472 = vunpack.c.l.s4 1983009808
      %v4473 = vunpack.c.0.s8 %v4472
      %v4474 = vlaneseq
      %v4475 = vshrl.u32 %v4474, 7
      %v4476 = vsub.s32 %v4473, %v4475
      %v4477 = vrot.slane %v4470, %v4476
      %v4478 = vcombine.low %v4347, %v4363
      %v4480 = vunpack.c.l.s4 1983009808
      %v4481 = vunpack.c.0.s8 %v4480
      %v4482 = vlaneseq
      %v4483 = vshrl.u32 %v4482, 7
      %v4484 = vsub.s32 %v4481, %v4483
      %v4485 = vrot.slane %v4478, %v4484
      %v4486 = vcombine.low %v4477, %v4485
      %v4487 = vcombine.high %v4477, %v4485
      %v4489 = vunpack.c.l.s4 1934713408
      %v4490 = vunpack.c.0.s8 %v4489
      %v4491 = vlaneseq
      %v4492 = vshrl.u32 %v4491, 7
      %v4493 = vsub.s32 %v4490, %v4492
      %v4494 = vrot.slane %v4486, %v4493
      %v4496 = vunpack.c.l.s4 1934713408
      %v4497 = vunpack.c.0.s8 %v4496
      %v4498 = vlaneseq
      %v4499 = vshrl.u32 %v4498, 7
      %v4500 = vsub.s32 %v4497, %v4499
      %v4501 = vrot.slane %v4487, %v4500
      %v4502 = vcombine.high %v4494, 0
      %v4503 = vcombine.high %v4501, 0
      %v4504 = vcombine.low %v4343, %v4359
      %v4506 = vunpack.c.l.s4 1983009808
      %v4507 = vunpack.c.0.s8 %v4506
      %v4508 = vlaneseq
      %v4509 = vshrl.u32 %v4508, 7
      %v4510 = vsub.s32 %v4507, %v4509
      %v4511 = vrot.slane %v4504, %v4510
      %v4512 = vcombine.low %v4351, %v4367
      %v4514 = vunpack.c.l.s4 1983009808
      %v4515 = vunpack.c.0.s8 %v4514
      %v4516 = vlaneseq
      %v4517 = vshrl.u32 %v4516, 7
      %v4518 = vsub.s32 %v4515, %v4517
      %v4519 = vrot.slane %v4512, %v4518
      %v4520 = vcombine.low %v4511, %v4519
      %v4521 = vcombine.high %v4511, %v4519
      %v4523 = vunpack.c.l.s4 1934713408
      %v4524 = vunpack.c.0.s8 %v4523
      %v4525 = vlaneseq
      %v4526 = vshrl.u32 %v4525, 7
      %v4527 = vsub.s32 %v4524, %v4526
      %v4528 = vrot.slane %v4520, %v4527
      %v4530 = vunpack.c.l.s4 1934713408
      %v4531 = vunpack.c.0.s8 %v4530
      %v4532 = vlaneseq
      %v4533 = vshrl.u32 %v4532, 7
      %v4534 = vsub.s32 %v4531, %v4533
      %v4535 = vrot.slane %v4521, %v4534
      %v4536 = vcombine.high %v4528, 0
      %v4537 = vcombine.high %v4535, 0
      %v4538 = vcombine.low %v4309, %v4325
      %v4540 = vunpack.c.l.s4 1983009808
      %v4541 = vunpack.c.0.s8 %v4540
      %v4542 = vlaneseq
      %v4543 = vshrl.u32 %v4542, 7
      %v4544 = vsub.s32 %v4541, %v4543
      %v4545 = vrot.slane %v4538, %v4544
      %v4546 = vcombine.low %v4317, %v4333
      %v4548 = vunpack.c.l.s4 1983009808
      %v4549 = vunpack.c.0.s8 %v4548
      %v4550 = vlaneseq
      %v4551 = vshrl.u32 %v4550, 7
      %v4552 = vsub.s32 %v4549, %v4551
      %v4553 = vrot.slane %v4546, %v4552
      %v4554 = vcombine.low %v4545, %v4553
      %v4555 = vcombine.high %v4545, %v4553
      %v4557 = vunpack.c.l.s4 1934713408
      %v4558 = vunpack.c.0.s8 %v4557
      %v4559 = vlaneseq
      %v4560 = vshrl.u32 %v4559, 7
      %v4561 = vsub.s32 %v4558, %v4560
      %v4562 = vrot.slane %v4554, %v4561
      %v4564 = vunpack.c.l.s4 1934713408
      %v4565 = vunpack.c.0.s8 %v4564
      %v4566 = vlaneseq
      %v4567 = vshrl.u32 %v4566, 7
      %v4568 = vsub.s32 %v4565, %v4567
      %v4569 = vrot.slane %v4555, %v4568
      %v4570 = vcombine.high %v4562, 0
      %v4571 = vcombine.high %v4569, 0
      %v4572 = vcombine.low %v4313, %v4329
      %v4574 = vunpack.c.l.s4 1983009808
      %v4575 = vunpack.c.0.s8 %v4574
      %v4576 = vlaneseq
      %v4577 = vshrl.u32 %v4576, 7
      %v4578 = vsub.s32 %v4575, %v4577
      %v4579 = vrot.slane %v4572, %v4578
      %v4580 = vcombine.low %v4321, %v4337
      %v4582 = vunpack.c.l.s4 1983009808
      %v4583 = vunpack.c.0.s8 %v4582
      %v4584 = vlaneseq
      %v4585 = vshrl.u32 %v4584, 7
      %v4586 = vsub.s32 %v4583, %v4585
      %v4587 = vrot.slane %v4580, %v4586
      %v4588 = vcombine.low %v4579, %v4587
      %v4589 = vcombine.high %v4579, %v4587
      %v4591 = vunpack.c.l.s4 1934713408
      %v4592 = vunpack.c.0.s8 %v4591
      %v4593 = vlaneseq
      %v4594 = vshrl.u32 %v4593, 7
      %v4595 = vsub.s32 %v4592, %v4594
      %v4596 = vrot.slane %v4588, %v4595
      %v4598 = vunpack.c.l.s4 1934713408
      %v4599 = vunpack.c.0.s8 %v4598
      %v4600 = vlaneseq
      %v4601 = vshrl.u32 %v4600, 7
      %v4602 = vsub.s32 %v4599, %v4601
      %v4603 = vrot.slane %v4589, %v4602
      %v4604 = vcombine.high %v4596, 0
      %v4605 = vcombine.high %v4603, 0
      %v4606 = vcombine.low %v4341, %v4357
      %v4608 = vunpack.c.l.s4 1983009808
      %v4609 = vunpack.c.0.s8 %v4608
      %v4610 = vlaneseq
      %v4611 = vshrl.u32 %v4610, 7
      %v4612 = vsub.s32 %v4609, %v4611
      %v4613 = vrot.slane %v4606, %v4612
      %v4614 = vcombine.low %v4349, %v4365
      %v4616 = vunpack.c.l.s4 1983009808
      %v4617 = vunpack.c.0.s8 %v4616
      %v4618 = vlaneseq
      %v4619 = vshrl.u32 %v4618, 7
      %v4620 = vsub.s32 %v4617, %v4619
      %v4621 = vrot.slane %v4614, %v4620
      %v4622 = vcombine.low %v4613, %v4621
      %v4623 = vcombine.high %v4613, %v4621
      %v4625 = vunpack.c.l.s4 1934713408
      %v4626 = vunpack.c.0.s8 %v4625
      %v4627 = vlaneseq
      %v4628 = vshrl.u32 %v4627, 7
      %v4629 = vsub.s32 %v4626, %v4628
      %v4630 = vrot.slane %v4622, %v4629
      %v4632 = vunpack.c.l.s4 1934713408
      %v4633 = vunpack.c.0.s8 %v4632
      %v4634 = vlaneseq
      %v4635 = vshrl.u32 %v4634, 7
      %v4636 = vsub.s32 %v4633, %v4635
      %v4637 = vrot.slane %v4623, %v4636
      %v4638 = vcombine.high %v4630, 0
      %v4639 = vcombine.high %v4637, 0
      %v4640 = vcombine.low %v4345, %v4361
      %v4642 = vunpack.c.l.s4 1983009808
      %v4643 = vunpack.c.0.s8 %v4642
      %v4644 = vlaneseq
      %v4645 = vshrl.u32 %v4644, 7
      %v4646 = vsub.s32 %v4643, %v4645
      %v4647 = vrot.slane %v4640, %v4646
      %v4648 = vcombine.low %v4353, %v4369
      %v4650 = vunpack.c.l.s4 1983009808
      %v4651 = vunpack.c.0.s8 %v4650
      %v4652 = vlaneseq
      %v4653 = vshrl.u32 %v4652, 7
      %v4654 = vsub.s32 %v4651, %v4653
      %v4655 = vrot.slane %v4648, %v4654
      %v4656 = vcombine.low %v4647, %v4655
      %v4657 = vcombine.high %v4647, %v4655
      %v4659 = vunpack.c.l.s4 1934713408
      %v4660 = vunpack.c.0.s8 %v4659
      %v4661 = vlaneseq
      %v4662 = vshrl.u32 %v4661, 7
      %v4663 = vsub.s32 %v4660, %v4662
      %v4664 = vrot.slane %v4656, %v4663
      %v4666 = vunpack.c.l.s4 1934713408
      %v4667 = vunpack.c.0.s8 %v4666
      %v4668 = vlaneseq
      %v4669 = vshrl.u32 %v4668, 7
      %v4670 = vsub.s32 %v4667, %v4669
      %v4671 = vrot.slane %v4657, %v4670
      %v4672 = vcombine.high %v4664, 0
      %v4673 = vcombine.high %v4671, 0
      %v4676 = vpack.i.b16 %v4460, %v4426
      %v4677 = vshrl.u32 %v4426, 16
      %v4678 = vshrl.u32 %v4460, 16
      %v4679 = vpack.i.b16 %v4678, %v4677
      %v4682 = vpack.i.b16 %v4468, %v4434
      %v4683 = vshrl.u32 %v4434, 16
      %v4684 = vshrl.u32 %v4468, 16
      %v4685 = vpack.i.b16 %v4684, %v4683
      %v4688 = vpack.i.b16 %v4467, %v4433
      %v4689 = vshrl.u32 %v4433, 16
      %v4690 = vshrl.u32 %v4467, 16
      %v4691 = vpack.i.b16 %v4690, %v4689
      %v4694 = vpack.i.b16 %v4469, %v4435
      %v4695 = vshrl.u32 %v4435, 16
      %v4696 = vshrl.u32 %v4469, 16
      %v4697 = vpack.i.b16 %v4696, %v4695
      %v4700 = vpack.i.b16 %v4596, %v4562
      %v4701 = vshrl.u32 %v4562, 16
      %v4702 = vshrl.u32 %v4596, 16
      %v4703 = vpack.i.b16 %v4702, %v4701
      %v4706 = vpack.i.b16 %v4604, %v4570
      %v4707 = vshrl.u32 %v4570, 16
      %v4708 = vshrl.u32 %v4604, 16
      %v4709 = vpack.i.b16 %v4708, %v4707
      %v4712 = vpack.i.b16 %v4603, %v4569
      %v4713 = vshrl.u32 %v4569, 16
      %v4714 = vshrl.u32 %v4603, 16
      %v4715 = vpack.i.b16 %v4714, %v4713
      %v4718 = vpack.i.b16 %v4605, %v4571
      %v4719 = vshrl.u32 %v4571, 16
      %v4720 = vshrl.u32 %v4605, 16
      %v4721 = vpack.i.b16 %v4720, %v4719
      %v4724 = vpack.i.b16 %v4528, %v4494
      %v4725 = vshrl.u32 %v4494, 16
      %v4726 = vshrl.u32 %v4528, 16
      %v4727 = vpack.i.b16 %v4726, %v4725
      %v4730 = vpack.i.b16 %v4536, %v4502
      %v4731 = vshrl.u32 %v4502, 16
      %v4732 = vshrl.u32 %v4536, 16
      %v4733 = vpack.i.b16 %v4732, %v4731
      %v4736 = vpack.i.b16 %v4535, %v4501
      %v4737 = vshrl.u32 %v4501, 16
      %v4738 = vshrl.u32 %v4535, 16
      %v4739 = vpack.i.b16 %v4738, %v4737
      %v4742 = vpack.i.b16 %v4537, %v4503
      %v4743 = vshrl.u32 %v4503, 16
      %v4744 = vshrl.u32 %v4537, 16
      %v4745 = vpack.i.b16 %v4744, %v4743
      %v4748 = vpack.i.b16 %v4664, %v4630
      %v4749 = vshrl.u32 %v4630, 16
      %v4750 = vshrl.u32 %v4664, 16
      %v4751 = vpack.i.b16 %v4750, %v4749
      %v4754 = vpack.i.b16 %v4672, %v4638
      %v4755 = vshrl.u32 %v4638, 16
      %v4756 = vshrl.u32 %v4672, 16
      %v4757 = vpack.i.b16 %v4756, %v4755
      %v4760 = vpack.i.b16 %v4671, %v4637
      %v4761 = vshrl.u32 %v4637, 16
      %v4762 = vshrl.u32 %v4671, 16
      %v4763 = vpack.i.b16 %v4762, %v4761
      %v4766 = vpack.i.b16 %v4673, %v4639
      %v4767 = vshrl.u32 %v4639, 16
      %v4768 = vshrl.u32 %v4673, 16
      %v4769 = vpack.i.b16 %v4768, %v4767
      %v4770 = vunpack.c.l.b16 %v571
      %v4771 = vunpack.c.l.b16 %v619
      %v4772 = vunpack.c.l.b16 %v574
      %v4773 = vunpack.c.l.b16 %v622
      %v4774 = vunpack.c.l.b16 %v577
      %v4775 = vunpack.c.l.b16 %v625
      %v4776 = vunpack.c.l.b16 %v580
      %v4777 = vunpack.c.l.b16 %v628
      %v4778 = vunpack.c.l.b16 %v583
      %v4779 = vunpack.c.l.b16 %v631
      %v4780 = vunpack.c.l.b16 %v586
      %v4781 = vunpack.c.l.b16 %v634
      %v4782 = vunpack.c.l.b16 %v589
      %v4783 = vunpack.c.l.b16 %v637
      %v4784 = vunpack.c.l.b16 %v592
      %v4785 = vunpack.c.l.b16 %v640
      %v4786 = vunpack.c.l.b16 %v595
      %v4787 = vunpack.c.l.b16 %v643
      %v4788 = vunpack.c.l.b16 %v598
      %v4789 = vunpack.c.l.b16 %v646
      %v4790 = vunpack.c.l.b16 %v601
      %v4791 = vunpack.c.l.b16 %v649
      %v4792 = vunpack.c.l.b16 %v604
      %v4793 = vunpack.c.l.b16 %v652
      %v4794 = vunpack.c.l.b16 %v607
      %v4795 = vunpack.c.l.b16 %v655
      %v4796 = vunpack.c.l.b16 %v610
      %v4797 = vunpack.c.l.b16 %v658
      %v4798 = vunpack.c.l.b16 %v613
      %v4799 = vunpack.c.l.b16 %v661
      %v4800 = vunpack.c.l.b16 %v616
      %v4801 = vunpack.c.l.b16 %v664
      %v4802 = vpack.c.b16 %v4771, %v4770
      %v4803 = vpack.c.b16 %v4773, %v4772
      %v4804 = vpack.c.b16 %v4775, %v4774
      %v4805 = vpack.c.b16 %v4777, %v4776
      %v4806 = vpack.c.b16 %v4779, %v4778
      %v4807 = vpack.c.b16 %v4781, %v4780
      %v4808 = vpack.c.b16 %v4783, %v4782
      %v4809 = vpack.c.b16 %v4785, %v4784
      %v4810 = vpack.c.b16 %v4787, %v4786
      %v4811 = vpack.c.b16 %v4789, %v4788
      %v4812 = vpack.c.b16 %v4791, %v4790
      %v4813 = vpack.c.b16 %v4793, %v4792
      %v4814 = vpack.c.b16 %v4795, %v4794
      %v4815 = vpack.c.b16 %v4797, %v4796
      %v4816 = vpack.c.b16 %v4799, %v4798
      %v4817 = vpack.c.b16 %v4801, %v4800
      %v4818 = vunpack.c.l.b16 %v1029
      %v4819 = vunpack.c.l.b16 %v1077
      %v4820 = vunpack.c.l.b16 %v1032
      %v4821 = vunpack.c.l.b16 %v1080
      %v4822 = vunpack.c.l.b16 %v1035
      %v4823 = vunpack.c.l.b16 %v1083
      %v4824 = vunpack.c.l.b16 %v1038
      %v4825 = vunpack.c.l.b16 %v1086
      %v4826 = vunpack.c.l.b16 %v1041
      %v4827 = vunpack.c.l.b16 %v1089
      %v4828 = vunpack.c.l.b16 %v1044
      %v4829 = vunpack.c.l.b16 %v1092
      %v4830 = vunpack.c.l.b16 %v1047
      %v4831 = vunpack.c.l.b16 %v1095
      %v4832 = vunpack.c.l.b16 %v1050
      %v4833 = vunpack.c.l.b16 %v1098
      %v4834 = vunpack.c.l.b16 %v1053
      %v4835 = vunpack.c.l.b16 %v1101
      %v4836 = vunpack.c.l.b16 %v1056
      %v4837 = vunpack.c.l.b16 %v1104
      %v4838 = vunpack.c.l.b16 %v1059
      %v4839 = vunpack.c.l.b16 %v1107
      %v4840 = vunpack.c.l.b16 %v1062
      %v4841 = vunpack.c.l.b16 %v1110
      %v4842 = vunpack.c.l.b16 %v1065
      %v4843 = vunpack.c.l.b16 %v1113
      %v4844 = vunpack.c.l.b16 %v1068
      %v4845 = vunpack.c.l.b16 %v1116
      %v4846 = vunpack.c.l.b16 %v1071
      %v4847 = vunpack.c.l.b16 %v1119
      %v4848 = vunpack.c.l.b16 %v1074
      %v4849 = vunpack.c.l.b16 %v1122
      %v4850 = vpack.c.b16 %v4819, %v4818
      %v4851 = vpack.c.b16 %v4821, %v4820
      %v4852 = vpack.c.b16 %v4823, %v4822
      %v4853 = vpack.c.b16 %v4825, %v4824
      %v4854 = vpack.c.b16 %v4827, %v4826
      %v4855 = vpack.c.b16 %v4829, %v4828
      %v4856 = vpack.c.b16 %v4831, %v4830
      %v4857 = vpack.c.b16 %v4833, %v4832
      %v4858 = vpack.c.b16 %v4835, %v4834
      %v4859 = vpack.c.b16 %v4837, %v4836
      %v4860 = vpack.c.b16 %v4839, %v4838
      %v4861 = vpack.c.b16 %v4841, %v4840
      %v4862 = vpack.c.b16 %v4843, %v4842
      %v4863 = vpack.c.b16 %v4845, %v4844
      %v4864 = vpack.c.b16 %v4847, %v4846
      %v4865 = vpack.c.b16 %v4849, %v4848
      %4866 = vrot.lane.b32.xlu0 %v4850, 4
      %v4867 = vpop.permute.xlu0 %4866
      %4868 = vrot.lane.b32.xlu0 %v4851, 4
      %v4869 = vpop.permute.xlu0 %4868
      %4870 = vrot.lane.b32.xlu0 %v4852, 4
      %v4871 = vpop.permute.xlu0 %4870
      %4872 = vrot.lane.b32.xlu0 %v4853, 4
      %v4873 = vpop.permute.xlu0 %4872
      %4874 = vrot.lane.b32.xlu0 %v4854, 4
      %v4875 = vpop.permute.xlu0 %4874
      %4876 = vrot.lane.b32.xlu0 %v4855, 4
      %v4877 = vpop.permute.xlu0 %4876
      %4878 = vrot.lane.b32.xlu0 %v4856, 4
      %v4879 = vpop.permute.xlu0 %4878
      %4880 = vrot.lane.b32.xlu0 %v4857, 4
      %v4881 = vpop.permute.xlu0 %4880
      %4882 = vrot.lane.b32.xlu0 %v4858, 4
      %v4883 = vpop.permute.xlu0 %4882
      %4884 = vrot.lane.b32.xlu0 %v4859, 4
      %v4885 = vpop.permute.xlu0 %4884
      %4886 = vrot.lane.b32.xlu0 %v4860, 4
      %v4887 = vpop.permute.xlu0 %4886
      %4888 = vrot.lane.b32.xlu0 %v4861, 4
      %v4889 = vpop.permute.xlu0 %4888
      %4890 = vrot.lane.b32.xlu0 %v4862, 4
      %v4891 = vpop.permute.xlu0 %4890
      %4892 = vrot.lane.b32.xlu0 %v4863, 4
      %v4893 = vpop.permute.xlu0 %4892
      %4894 = vrot.lane.b32.xlu0 %v4864, 4
      %v4895 = vpop.permute.xlu0 %4894
      %4896 = vrot.lane.b32.xlu0 %v4865, 4
      %v4897 = vpop.permute.xlu0 %4896
      %v4898 = vunpack.c.l.b16 %v1487
      %v4899 = vunpack.c.l.b16 %v1535
      %v4900 = vunpack.c.l.b16 %v1490
      %v4901 = vunpack.c.l.b16 %v1538
      %v4902 = vunpack.c.l.b16 %v1493
      %v4903 = vunpack.c.l.b16 %v1541
      %v4904 = vunpack.c.l.b16 %v1496
      %v4905 = vunpack.c.l.b16 %v1544
      %v4906 = vunpack.c.l.b16 %v1499
      %v4907 = vunpack.c.l.b16 %v1547
      %v4908 = vunpack.c.l.b16 %v1502
      %v4909 = vunpack.c.l.b16 %v1550
      %v4910 = vunpack.c.l.b16 %v1505
      %v4911 = vunpack.c.l.b16 %v1553
      %v4912 = vunpack.c.l.b16 %v1508
      %v4913 = vunpack.c.l.b16 %v1556
      %v4914 = vunpack.c.l.b16 %v1511
      %v4915 = vunpack.c.l.b16 %v1559
      %v4916 = vunpack.c.l.b16 %v1514
      %v4917 = vunpack.c.l.b16 %v1562
      %v4918 = vunpack.c.l.b16 %v1517
      %v4919 = vunpack.c.l.b16 %v1565
      %v4920 = vunpack.c.l.b16 %v1520
      %v4921 = vunpack.c.l.b16 %v1568
      %v4922 = vunpack.c.l.b16 %v1523
      %v4923 = vunpack.c.l.b16 %v1571
      %v4924 = vunpack.c.l.b16 %v1526
      %v4925 = vunpack.c.l.b16 %v1574
      %v4926 = vunpack.c.l.b16 %v1529
      %v4927 = vunpack.c.l.b16 %v1577
      %v4928 = vunpack.c.l.b16 %v1532
      %v4929 = vunpack.c.l.b16 %v1580
      %v4930 = vpack.c.b16 %v4899, %v4898
      %v4931 = vpack.c.b16 %v4901, %v4900
      %v4932 = vpack.c.b16 %v4903, %v4902
      %v4933 = vpack.c.b16 %v4905, %v4904
      %v4934 = vpack.c.b16 %v4907, %v4906
      %v4935 = vpack.c.b16 %v4909, %v4908
      %v4936 = vpack.c.b16 %v4911, %v4910
      %v4937 = vpack.c.b16 %v4913, %v4912
      %v4938 = vpack.c.b16 %v4915, %v4914
      %v4939 = vpack.c.b16 %v4917, %v4916
      %v4940 = vpack.c.b16 %v4919, %v4918
      %v4941 = vpack.c.b16 %v4921, %v4920
      %v4942 = vpack.c.b16 %v4923, %v4922
      %v4943 = vpack.c.b16 %v4925, %v4924
      %v4944 = vpack.c.b16 %v4927, %v4926
      %v4945 = vpack.c.b16 %v4929, %v4928
      %4946 = vrot.lane.b32.xlu0 %v4930, 8
      %v4947 = vpop.permute.xlu0 %4946
      %4948 = vrot.lane.b32.xlu0 %v4931, 8
      %v4949 = vpop.permute.xlu0 %4948
      %4950 = vrot.lane.b32.xlu0 %v4932, 8
      %v4951 = vpop.permute.xlu0 %4950
      %4952 = vrot.lane.b32.xlu0 %v4933, 8
      %v4953 = vpop.permute.xlu0 %4952
      %4954 = vrot.lane.b32.xlu0 %v4934, 8
      %v4955 = vpop.permute.xlu0 %4954
      %4956 = vrot.lane.b32.xlu0 %v4935, 8
      %v4957 = vpop.permute.xlu0 %4956
      %4958 = vrot.lane.b32.xlu0 %v4936, 8
      %v4959 = vpop.permute.xlu0 %4958
      %4960 = vrot.lane.b32.xlu0 %v4937, 8
      %v4961 = vpop.permute.xlu0 %4960
      %4962 = vrot.lane.b32.xlu0 %v4938, 8
      %v4963 = vpop.permute.xlu0 %4962
      %4964 = vrot.lane.b32.xlu0 %v4939, 8
      %v4965 = vpop.permute.xlu0 %4964
      %4966 = vrot.lane.b32.xlu0 %v4940, 8
      %v4967 = vpop.permute.xlu0 %4966
      %4968 = vrot.lane.b32.xlu0 %v4941, 8
      %v4969 = vpop.permute.xlu0 %4968
      %4970 = vrot.lane.b32.xlu0 %v4942, 8
      %v4971 = vpop.permute.xlu0 %4970
      %4972 = vrot.lane.b32.xlu0 %v4943, 8
      %v4973 = vpop.permute.xlu0 %4972
      %4974 = vrot.lane.b32.xlu0 %v4944, 8
      %v4975 = vpop.permute.xlu0 %4974
      %4976 = vrot.lane.b32.xlu0 %v4945, 8
      %v4977 = vpop.permute.xlu0 %4976
      %v4978 = vunpack.c.l.b16 %v2305
      %v4979 = vunpack.c.l.b16 %v2353
      %v4980 = vunpack.c.l.b16 %v2308
      %v4981 = vunpack.c.l.b16 %v2356
      %v4982 = vunpack.c.l.b16 %v2311
      %v4983 = vunpack.c.l.b16 %v2359
      %v4984 = vunpack.c.l.b16 %v2314
      %v4985 = vunpack.c.l.b16 %v2362
      %v4986 = vunpack.c.l.b16 %v2317
      %v4987 = vunpack.c.l.b16 %v2365
      %v4988 = vunpack.c.l.b16 %v2320
      %v4989 = vunpack.c.l.b16 %v2368
      %v4990 = vunpack.c.l.b16 %v2323
      %v4991 = vunpack.c.l.b16 %v2371
      %v4992 = vunpack.c.l.b16 %v2326
      %v4993 = vunpack.c.l.b16 %v2374
      %v4994 = vunpack.c.l.b16 %v2329
      %v4995 = vunpack.c.l.b16 %v2377
      %v4996 = vunpack.c.l.b16 %v2332
      %v4997 = vunpack.c.l.b16 %v2380
      %v4998 = vunpack.c.l.b16 %v2335
      %v4999 = vunpack.c.l.b16 %v2383
      %v5000 = vunpack.c.l.b16 %v2338
      %v5001 = vunpack.c.l.b16 %v2386
      %v5002 = vunpack.c.l.b16 %v2341
      %v5003 = vunpack.c.l.b16 %v2389
      %v5004 = vunpack.c.l.b16 %v2344
      %v5005 = vunpack.c.l.b16 %v2392
      %v5006 = vunpack.c.l.b16 %v2347
      %v5007 = vunpack.c.l.b16 %v2395
      %v5008 = vunpack.c.l.b16 %v2350
      %v5009 = vunpack.c.l.b16 %v2398
      %v5010 = vpack.c.b16 %v4979, %v4978
      %v5011 = vpack.c.b16 %v4981, %v4980
      %v5012 = vpack.c.b16 %v4983, %v4982
      %v5013 = vpack.c.b16 %v4985, %v4984
      %v5014 = vpack.c.b16 %v4987, %v4986
      %v5015 = vpack.c.b16 %v4989, %v4988
      %v5016 = vpack.c.b16 %v4991, %v4990
      %v5017 = vpack.c.b16 %v4993, %v4992
      %v5018 = vpack.c.b16 %v4995, %v4994
      %v5019 = vpack.c.b16 %v4997, %v4996
      %v5020 = vpack.c.b16 %v4999, %v4998
      %v5021 = vpack.c.b16 %v5001, %v5000
      %v5022 = vpack.c.b16 %v5003, %v5002
      %v5023 = vpack.c.b16 %v5005, %v5004
      %v5024 = vpack.c.b16 %v5007, %v5006
      %v5025 = vpack.c.b16 %v5009, %v5008
      %5026 = vrot.lane.b32.xlu0 %v5010, 12
      %v5027 = vpop.permute.xlu0 %5026
      %5028 = vrot.lane.b32.xlu0 %v5011, 12
      %v5029 = vpop.permute.xlu0 %5028
      %5030 = vrot.lane.b32.xlu0 %v5012, 12
      %v5031 = vpop.permute.xlu0 %5030
      %5032 = vrot.lane.b32.xlu0 %v5013, 12
      %v5033 = vpop.permute.xlu0 %5032
      %5034 = vrot.lane.b32.xlu0 %v5014, 12
      %v5035 = vpop.permute.xlu0 %5034
      %5036 = vrot.lane.b32.xlu0 %v5015, 12
      %v5037 = vpop.permute.xlu0 %5036
      %5038 = vrot.lane.b32.xlu0 %v5016, 12
      %v5039 = vpop.permute.xlu0 %5038
      %5040 = vrot.lane.b32.xlu0 %v5017, 12
      %v5041 = vpop.permute.xlu0 %5040
      %5042 = vrot.lane.b32.xlu0 %v5018, 12
      %v5043 = vpop.permute.xlu0 %5042
      %5044 = vrot.lane.b32.xlu0 %v5019, 12
      %v5045 = vpop.permute.xlu0 %5044
      %5046 = vrot.lane.b32.xlu0 %v5020, 12
      %v5047 = vpop.permute.xlu0 %5046
      %5048 = vrot.lane.b32.xlu0 %v5021, 12
      %v5049 = vpop.permute.xlu0 %5048
      %5050 = vrot.lane.b32.xlu0 %v5022, 12
      %v5051 = vpop.permute.xlu0 %5050
      %5052 = vrot.lane.b32.xlu0 %v5023, 12
      %v5053 = vpop.permute.xlu0 %5052
      %5054 = vrot.lane.b32.xlu0 %v5024, 12
      %v5055 = vpop.permute.xlu0 %5054
      %5056 = vrot.lane.b32.xlu0 %v5025, 12
      %v5057 = vpop.permute.xlu0 %5056
      %v5058 = vunpack.c.l.b16 %v2769
      %v5059 = vunpack.c.l.b16 %v2817
      %v5060 = vunpack.c.l.b16 %v2772
      %v5061 = vunpack.c.l.b16 %v2820
      %v5062 = vunpack.c.l.b16 %v2775
      %v5063 = vunpack.c.l.b16 %v2823
      %v5064 = vunpack.c.l.b16 %v2778
      %v5065 = vunpack.c.l.b16 %v2826
      %v5066 = vunpack.c.l.b16 %v2781
      %v5067 = vunpack.c.l.b16 %v2829
      %v5068 = vunpack.c.l.b16 %v2784
      %v5069 = vunpack.c.l.b16 %v2832
      %v5070 = vunpack.c.l.b16 %v2787
      %v5071 = vunpack.c.l.b16 %v2835
      %v5072 = vunpack.c.l.b16 %v2790
      %v5073 = vunpack.c.l.b16 %v2838
      %v5074 = vunpack.c.l.b16 %v2793
      %v5075 = vunpack.c.l.b16 %v2841
      %v5076 = vunpack.c.l.b16 %v2796
      %v5077 = vunpack.c.l.b16 %v2844
      %v5078 = vunpack.c.l.b16 %v2799
      %v5079 = vunpack.c.l.b16 %v2847
      %v5080 = vunpack.c.l.b16 %v2802
      %v5081 = vunpack.c.l.b16 %v2850
      %v5082 = vunpack.c.l.b16 %v2805
      %v5083 = vunpack.c.l.b16 %v2853
      %v5084 = vunpack.c.l.b16 %v2808
      %v5085 = vunpack.c.l.b16 %v2856
      %v5086 = vunpack.c.l.b16 %v2811
      %v5087 = vunpack.c.l.b16 %v2859
      %v5088 = vunpack.c.l.b16 %v2814
      %v5089 = vunpack.c.l.b16 %v2862
      %v5090 = vpack.c.b16 %v5059, %v5058
      %v5091 = vpack.c.b16 %v5061, %v5060
      %v5092 = vpack.c.b16 %v5063, %v5062
      %v5093 = vpack.c.b16 %v5065, %v5064
      %v5094 = vpack.c.b16 %v5067, %v5066
      %v5095 = vpack.c.b16 %v5069, %v5068
      %v5096 = vpack.c.b16 %v5071, %v5070
      %v5097 = vpack.c.b16 %v5073, %v5072
      %v5098 = vpack.c.b16 %v5075, %v5074
      %v5099 = vpack.c.b16 %v5077, %v5076
      %v5100 = vpack.c.b16 %v5079, %v5078
      %v5101 = vpack.c.b16 %v5081, %v5080
      %v5102 = vpack.c.b16 %v5083, %v5082
      %v5103 = vpack.c.b16 %v5085, %v5084
      %v5104 = vpack.c.b16 %v5087, %v5086
      %v5105 = vpack.c.b16 %v5089, %v5088
      %5106 = vrot.lane.b32.xlu0 %v5090, 16
      %v5107 = vpop.permute.xlu0 %5106
      %5108 = vrot.lane.b32.xlu0 %v5091, 16
      %v5109 = vpop.permute.xlu0 %5108
      %5110 = vrot.lane.b32.xlu0 %v5092, 16
      %v5111 = vpop.permute.xlu0 %5110
      %5112 = vrot.lane.b32.xlu0 %v5093, 16
      %v5113 = vpop.permute.xlu0 %5112
      %5114 = vrot.lane.b32.xlu0 %v5094, 16
      %v5115 = vpop.permute.xlu0 %5114
      %5116 = vrot.lane.b32.xlu0 %v5095, 16
      %v5117 = vpop.permute.xlu0 %5116
      %5118 = vrot.lane.b32.xlu0 %v5096, 16
      %v5119 = vpop.permute.xlu0 %5118
      %5120 = vrot.lane.b32.xlu0 %v5097, 16
      %v5121 = vpop.permute.xlu0 %5120
      %5122 = vrot.lane.b32.xlu0 %v5098, 16
      %v5123 = vpop.permute.xlu0 %5122
      %5124 = vrot.lane.b32.xlu0 %v5099, 16
      %v5125 = vpop.permute.xlu0 %5124
      %5126 = vrot.lane.b32.xlu0 %v5100, 16
      %v5127 = vpop.permute.xlu0 %5126
      %5128 = vrot.lane.b32.xlu0 %v5101, 16
      %v5129 = vpop.permute.xlu0 %5128
      %5130 = vrot.lane.b32.xlu0 %v5102, 16
      %v5131 = vpop.permute.xlu0 %5130
      %5132 = vrot.lane.b32.xlu0 %v5103, 16
      %v5133 = vpop.permute.xlu0 %5132
      %5134 = vrot.lane.b32.xlu0 %v5104, 16
      %v5135 = vpop.permute.xlu0 %5134
      %5136 = vrot.lane.b32.xlu0 %v5105, 16
      %v5137 = vpop.permute.xlu0 %5136
      %v5138 = vunpack.c.l.b16 %v3233
      %v5139 = vunpack.c.l.b16 %v3281
      %v5140 = vunpack.c.l.b16 %v3236
      %v5141 = vunpack.c.l.b16 %v3284
      %v5142 = vunpack.c.l.b16 %v3239
      %v5143 = vunpack.c.l.b16 %v3287
      %v5144 = vunpack.c.l.b16 %v3242
      %v5145 = vunpack.c.l.b16 %v3290
      %v5146 = vunpack.c.l.b16 %v3245
      %v5147 = vunpack.c.l.b16 %v3293
      %v5148 = vunpack.c.l.b16 %v3248
      %v5149 = vunpack.c.l.b16 %v3296
      %v5150 = vunpack.c.l.b16 %v3251
      %v5151 = vunpack.c.l.b16 %v3299
      %v5152 = vunpack.c.l.b16 %v3254
      %v5153 = vunpack.c.l.b16 %v3302
      %v5154 = vunpack.c.l.b16 %v3257
      %v5155 = vunpack.c.l.b16 %v3305
      %v5156 = vunpack.c.l.b16 %v3260
      %v5157 = vunpack.c.l.b16 %v3308
      %v5158 = vunpack.c.l.b16 %v3263
      %v5159 = vunpack.c.l.b16 %v3311
      %v5160 = vunpack.c.l.b16 %v3266
      %v5161 = vunpack.c.l.b16 %v3314
      %v5162 = vunpack.c.l.b16 %v3269
      %v5163 = vunpack.c.l.b16 %v3317
      %v5164 = vunpack.c.l.b16 %v3272
      %v5165 = vunpack.c.l.b16 %v3320
      %v5166 = vunpack.c.l.b16 %v3275
      %v5167 = vunpack.c.l.b16 %v3323
      %v5168 = vunpack.c.l.b16 %v3278
      %v5169 = vunpack.c.l.b16 %v3326
      %v5170 = vpack.c.b16 %v5139, %v5138
      %v5171 = vpack.c.b16 %v5141, %v5140
      %v5172 = vpack.c.b16 %v5143, %v5142
      %v5173 = vpack.c.b16 %v5145, %v5144
      %v5174 = vpack.c.b16 %v5147, %v5146
      %v5175 = vpack.c.b16 %v5149, %v5148
      %v5176 = vpack.c.b16 %v5151, %v5150
      %v5177 = vpack.c.b16 %v5153, %v5152
      %v5178 = vpack.c.b16 %v5155, %v5154
      %v5179 = vpack.c.b16 %v5157, %v5156
      %v5180 = vpack.c.b16 %v5159, %v5158
      %v5181 = vpack.c.b16 %v5161, %v5160
      %v5182 = vpack.c.b16 %v5163, %v5162
      %v5183 = vpack.c.b16 %v5165, %v5164
      %v5184 = vpack.c.b16 %v5167, %v5166
      %v5185 = vpack.c.b16 %v5169, %v5168
      %5186 = vrot.lane.b32.xlu0 %v5170, 20
      %v5187 = vpop.permute.xlu0 %5186
      %5188 = vrot.lane.b32.xlu0 %v5171, 20
      %v5189 = vpop.permute.xlu0 %5188
      %5190 = vrot.lane.b32.xlu0 %v5172, 20
      %v5191 = vpop.permute.xlu0 %5190
      %5192 = vrot.lane.b32.xlu0 %v5173, 20
      %v5193 = vpop.permute.xlu0 %5192
      %5194 = vrot.lane.b32.xlu0 %v5174, 20
      %v5195 = vpop.permute.xlu0 %5194
      %5196 = vrot.lane.b32.xlu0 %v5175, 20
      %v5197 = vpop.permute.xlu0 %5196
      %5198 = vrot.lane.b32.xlu0 %v5176, 20
      %v5199 = vpop.permute.xlu0 %5198
      %5200 = vrot.lane.b32.xlu0 %v5177, 20
      %v5201 = vpop.permute.xlu0 %5200
      %5202 = vrot.lane.b32.xlu0 %v5178, 20
      %v5203 = vpop.permute.xlu0 %5202
      %5204 = vrot.lane.b32.xlu0 %v5179, 20
      %v5205 = vpop.permute.xlu0 %5204
      %5206 = vrot.lane.b32.xlu0 %v5180, 20
      %v5207 = vpop.permute.xlu0 %5206
      %5208 = vrot.lane.b32.xlu0 %v5181, 20
      %v5209 = vpop.permute.xlu0 %5208
      %5210 = vrot.lane.b32.xlu0 %v5182, 20
      %v5211 = vpop.permute.xlu0 %5210
      %5212 = vrot.lane.b32.xlu0 %v5183, 20
      %v5213 = vpop.permute.xlu0 %5212
      %5214 = vrot.lane.b32.xlu0 %v5184, 20
      %v5215 = vpop.permute.xlu0 %5214
      %5216 = vrot.lane.b32.xlu0 %v5185, 20
      %v5217 = vpop.permute.xlu0 %5216
      %v5218 = vunpack.c.l.b16 %v3748
      %v5219 = vunpack.c.l.b16 %v3796
      %v5220 = vunpack.c.l.b16 %v3751
      %v5221 = vunpack.c.l.b16 %v3799
      %v5222 = vunpack.c.l.b16 %v3754
      %v5223 = vunpack.c.l.b16 %v3802
      %v5224 = vunpack.c.l.b16 %v3757
      %v5225 = vunpack.c.l.b16 %v3805
      %v5226 = vunpack.c.l.b16 %v3760
      %v5227 = vunpack.c.l.b16 %v3808
      %v5228 = vunpack.c.l.b16 %v3763
      %v5229 = vunpack.c.l.b16 %v3811
      %v5230 = vunpack.c.l.b16 %v3766
      %v5231 = vunpack.c.l.b16 %v3814
      %v5232 = vunpack.c.l.b16 %v3769
      %v5233 = vunpack.c.l.b16 %v3817
      %v5234 = vunpack.c.l.b16 %v3772
      %v5235 = vunpack.c.l.b16 %v3820
      %v5236 = vunpack.c.l.b16 %v3775
      %v5237 = vunpack.c.l.b16 %v3823
      %v5238 = vunpack.c.l.b16 %v3778
      %v5239 = vunpack.c.l.b16 %v3826
      %v5240 = vunpack.c.l.b16 %v3781
      %v5241 = vunpack.c.l.b16 %v3829
      %v5242 = vunpack.c.l.b16 %v3784
      %v5243 = vunpack.c.l.b16 %v3832
      %v5244 = vunpack.c.l.b16 %v3787
      %v5245 = vunpack.c.l.b16 %v3835
      %v5246 = vunpack.c.l.b16 %v3790
      %v5247 = vunpack.c.l.b16 %v3838
      %v5248 = vunpack.c.l.b16 %v3793
      %v5249 = vunpack.c.l.b16 %v3841
      %v5250 = vpack.c.b16 %v5219, %v5218
      %v5251 = vpack.c.b16 %v5221, %v5220
      %v5252 = vpack.c.b16 %v5223, %v5222
      %v5253 = vpack.c.b16 %v5225, %v5224
      %v5254 = vpack.c.b16 %v5227, %v5226
      %v5255 = vpack.c.b16 %v5229, %v5228
      %v5256 = vpack.c.b16 %v5231, %v5230
      %v5257 = vpack.c.b16 %v5233, %v5232
      %v5258 = vpack.c.b16 %v5235, %v5234
      %v5259 = vpack.c.b16 %v5237, %v5236
      %v5260 = vpack.c.b16 %v5239, %v5238
      %v5261 = vpack.c.b16 %v5241, %v5240
      %v5262 = vpack.c.b16 %v5243, %v5242
      %v5263 = vpack.c.b16 %v5245, %v5244
      %v5264 = vpack.c.b16 %v5247, %v5246
      %v5265 = vpack.c.b16 %v5249, %v5248
      %5266 = vrot.lane.b32.xlu0 %v5250, 24
      %v5267 = vpop.permute.xlu0 %5266
      %5268 = vrot.lane.b32.xlu0 %v5251, 24
      %v5269 = vpop.permute.xlu0 %5268
      %5270 = vrot.lane.b32.xlu0 %v5252, 24
      %v5271 = vpop.permute.xlu0 %5270
      %5272 = vrot.lane.b32.xlu0 %v5253, 24
      %v5273 = vpop.permute.xlu0 %5272
      %5274 = vrot.lane.b32.xlu0 %v5254, 24
      %v5275 = vpop.permute.xlu0 %5274
      %5276 = vrot.lane.b32.xlu0 %v5255, 24
      %v5277 = vpop.permute.xlu0 %5276
      %5278 = vrot.lane.b32.xlu0 %v5256, 24
      %v5279 = vpop.permute.xlu0 %5278
      %5280 = vrot.lane.b32.xlu0 %v5257, 24
      %v5281 = vpop.permute.xlu0 %5280
      %5282 = vrot.lane.b32.xlu0 %v5258, 24
      %v5283 = vpop.permute.xlu0 %5282
      %5284 = vrot.lane.b32.xlu0 %v5259, 24
      %v5285 = vpop.permute.xlu0 %5284
      %5286 = vrot.lane.b32.xlu0 %v5260, 24
      %v5287 = vpop.permute.xlu0 %5286
      %5288 = vrot.lane.b32.xlu0 %v5261, 24
      %v5289 = vpop.permute.xlu0 %5288
      %5290 = vrot.lane.b32.xlu0 %v5262, 24
      %v5291 = vpop.permute.xlu0 %5290
      %5292 = vrot.lane.b32.xlu0 %v5263, 24
      %v5293 = vpop.permute.xlu0 %5292
      %5294 = vrot.lane.b32.xlu0 %v5264, 24
      %v5295 = vpop.permute.xlu0 %5294
      %5296 = vrot.lane.b32.xlu0 %v5265, 24
      %v5297 = vpop.permute.xlu0 %5296
      %v5298 = vunpack.c.l.b16 %v4212
      %v5299 = vunpack.c.l.b16 %v4260
      %v5300 = vunpack.c.l.b16 %v4215
      %v5301 = vunpack.c.l.b16 %v4263
      %v5302 = vunpack.c.l.b16 %v4218
      %v5303 = vunpack.c.l.b16 %v4266
      %v5304 = vunpack.c.l.b16 %v4221
      %v5305 = vunpack.c.l.b16 %v4269
      %v5306 = vunpack.c.l.b16 %v4224
      %v5307 = vunpack.c.l.b16 %v4272
      %v5308 = vunpack.c.l.b16 %v4227
      %v5309 = vunpack.c.l.b16 %v4275
      %v5310 = vunpack.c.l.b16 %v4230
      %v5311 = vunpack.c.l.b16 %v4278
      %v5312 = vunpack.c.l.b16 %v4233
      %v5313 = vunpack.c.l.b16 %v4281
      %v5314 = vunpack.c.l.b16 %v4236
      %v5315 = vunpack.c.l.b16 %v4284
      %v5316 = vunpack.c.l.b16 %v4239
      %v5317 = vunpack.c.l.b16 %v4287
      %v5318 = vunpack.c.l.b16 %v4242
      %v5319 = vunpack.c.l.b16 %v4290
      %v5320 = vunpack.c.l.b16 %v4245
      %v5321 = vunpack.c.l.b16 %v4293
      %v5322 = vunpack.c.l.b16 %v4248
      %v5323 = vunpack.c.l.b16 %v4296
      %v5324 = vunpack.c.l.b16 %v4251
      %v5325 = vunpack.c.l.b16 %v4299
      %v5326 = vunpack.c.l.b16 %v4254
      %v5327 = vunpack.c.l.b16 %v4302
      %v5328 = vunpack.c.l.b16 %v4257
      %v5329 = vunpack.c.l.b16 %v4305
      %v5330 = vpack.c.b16 %v5299, %v5298
      %v5331 = vpack.c.b16 %v5301, %v5300
      %v5332 = vpack.c.b16 %v5303, %v5302
      %v5333 = vpack.c.b16 %v5305, %v5304
      %v5334 = vpack.c.b16 %v5307, %v5306
      %v5335 = vpack.c.b16 %v5309, %v5308
      %v5336 = vpack.c.b16 %v5311, %v5310
      %v5337 = vpack.c.b16 %v5313, %v5312
      %v5338 = vpack.c.b16 %v5315, %v5314
      %v5339 = vpack.c.b16 %v5317, %v5316
      %v5340 = vpack.c.b16 %v5319, %v5318
      %v5341 = vpack.c.b16 %v5321, %v5320
      %v5342 = vpack.c.b16 %v5323, %v5322
      %v5343 = vpack.c.b16 %v5325, %v5324
      %v5344 = vpack.c.b16 %v5327, %v5326
      %v5345 = vpack.c.b16 %v5329, %v5328
      %5346 = vrot.lane.b32.xlu0 %v5330, 28
      %v5347 = vpop.permute.xlu0 %5346
      %5348 = vrot.lane.b32.xlu0 %v5331, 28
      %v5349 = vpop.permute.xlu0 %5348
      %5350 = vrot.lane.b32.xlu0 %v5332, 28
      %v5351 = vpop.permute.xlu0 %5350
      %5352 = vrot.lane.b32.xlu0 %v5333, 28
      %v5353 = vpop.permute.xlu0 %5352
      %5354 = vrot.lane.b32.xlu0 %v5334, 28
      %v5355 = vpop.permute.xlu0 %5354
      %5356 = vrot.lane.b32.xlu0 %v5335, 28
      %v5357 = vpop.permute.xlu0 %5356
      %5358 = vrot.lane.b32.xlu0 %v5336, 28
      %v5359 = vpop.permute.xlu0 %5358
      %5360 = vrot.lane.b32.xlu0 %v5337, 28
      %v5361 = vpop.permute.xlu0 %5360
      %5362 = vrot.lane.b32.xlu0 %v5338, 28
      %v5363 = vpop.permute.xlu0 %5362
      %5364 = vrot.lane.b32.xlu0 %v5339, 28
      %v5365 = vpop.permute.xlu0 %5364
      %5366 = vrot.lane.b32.xlu0 %v5340, 28
      %v5367 = vpop.permute.xlu0 %5366
      %5368 = vrot.lane.b32.xlu0 %v5341, 28
      %v5369 = vpop.permute.xlu0 %5368
      %5370 = vrot.lane.b32.xlu0 %v5342, 28
      %v5371 = vpop.permute.xlu0 %5370
      %5372 = vrot.lane.b32.xlu0 %v5343, 28
      %v5373 = vpop.permute.xlu0 %5372
      %5374 = vrot.lane.b32.xlu0 %v5344, 28
      %v5375 = vpop.permute.xlu0 %5374
      %5376 = vrot.lane.b32.xlu0 %v5345, 28
      %v5377 = vpop.permute.xlu0 %5376
      %v5378 = vunpack.c.l.b16 %v4676
      %v5379 = vunpack.c.l.b16 %v4724
      %v5380 = vunpack.c.l.b16 %v4679
      %v5381 = vunpack.c.l.b16 %v4727
      %v5382 = vunpack.c.l.b16 %v4682
      %v5383 = vunpack.c.l.b16 %v4730
      %v5384 = vunpack.c.l.b16 %v4685
      %v5385 = vunpack.c.l.b16 %v4733
      %v5386 = vunpack.c.l.b16 %v4688
      %v5387 = vunpack.c.l.b16 %v4736
      %v5388 = vunpack.c.l.b16 %v4691
      %v5389 = vunpack.c.l.b16 %v4739
      %v5390 = vunpack.c.l.b16 %v4694
      %v5391 = vunpack.c.l.b16 %v4742
      %v5392 = vunpack.c.l.b16 %v4697
      %v5393 = vunpack.c.l.b16 %v4745
      %v5394 = vunpack.c.l.b16 %v4700
      %v5395 = vunpack.c.l.b16 %v4748
      %v5396 = vunpack.c.l.b16 %v4703
      %v5397 = vunpack.c.l.b16 %v4751
      %v5398 = vunpack.c.l.b16 %v4706
      %v5399 = vunpack.c.l.b16 %v4754
      %v5400 = vunpack.c.l.b16 %v4709
      %v5401 = vunpack.c.l.b16 %v4757
      %v5402 = vunpack.c.l.b16 %v4712
      %v5403 = vunpack.c.l.b16 %v4760
      %v5404 = vunpack.c.l.b16 %v4715
      %v5405 = vunpack.c.l.b16 %v4763
      %v5406 = vunpack.c.l.b16 %v4718
      %v5407 = vunpack.c.l.b16 %v4766
      %v5408 = vunpack.c.l.b16 %v4721
      %v5409 = vunpack.c.l.b16 %v4769
      %v5410 = vpack.c.b16 %v5379, %v5378
      %v5411 = vpack.c.b16 %v5381, %v5380
      %v5412 = vpack.c.b16 %v5383, %v5382
      %v5413 = vpack.c.b16 %v5385, %v5384
      %v5414 = vpack.c.b16 %v5387, %v5386
      %v5415 = vpack.c.b16 %v5389, %v5388
      %v5416 = vpack.c.b16 %v5391, %v5390
      %v5417 = vpack.c.b16 %v5393, %v5392
      %v5418 = vpack.c.b16 %v5395, %v5394
      %v5419 = vpack.c.b16 %v5397, %v5396
      %v5420 = vpack.c.b16 %v5399, %v5398
      %v5421 = vpack.c.b16 %v5401, %v5400
      %v5422 = vpack.c.b16 %v5403, %v5402
      %v5423 = vpack.c.b16 %v5405, %v5404
      %v5424 = vpack.c.b16 %v5407, %v5406
      %v5425 = vpack.c.b16 %v5409, %v5408
      %5426 = vrot.lane.b32.xlu0 %v5410, 32
      %v5427 = vpop.permute.xlu0 %5426
      %5428 = vrot.lane.b32.xlu0 %v5411, 32
      %v5429 = vpop.permute.xlu0 %5428
      %5430 = vrot.lane.b32.xlu0 %v5412, 32
      %v5431 = vpop.permute.xlu0 %5430
      %5432 = vrot.lane.b32.xlu0 %v5413, 32
      %v5433 = vpop.permute.xlu0 %5432
      %5434 = vrot.lane.b32.xlu0 %v5414, 32
      %v5435 = vpop.permute.xlu0 %5434
      %5436 = vrot.lane.b32.xlu0 %v5415, 32
      %v5437 = vpop.permute.xlu0 %5436
      %5438 = vrot.lane.b32.xlu0 %v5416, 32
      %v5439 = vpop.permute.xlu0 %5438
      %5440 = vrot.lane.b32.xlu0 %v5417, 32
      %v5441 = vpop.permute.xlu0 %5440
      %5442 = vrot.lane.b32.xlu0 %v5418, 32
      %v5443 = vpop.permute.xlu0 %5442
      %5444 = vrot.lane.b32.xlu0 %v5419, 32
      %v5445 = vpop.permute.xlu0 %5444
      %5446 = vrot.lane.b32.xlu0 %v5420, 32
      %v5447 = vpop.permute.xlu0 %5446
      %5448 = vrot.lane.b32.xlu0 %v5421, 32
      %v5449 = vpop.permute.xlu0 %5448
      %5450 = vrot.lane.b32.xlu0 %v5422, 32
      %v5451 = vpop.permute.xlu0 %5450
      %5452 = vrot.lane.b32.xlu0 %v5423, 32
      %v5453 = vpop.permute.xlu0 %5452
      %5454 = vrot.lane.b32.xlu0 %v5424, 32
      %v5455 = vpop.permute.xlu0 %5454
      %5456 = vrot.lane.b32.xlu0 %v5425, 32
      %v5457 = vpop.permute.xlu0 %5456
      %vm5458 = vcmask 31744
      %v5461 = vsel %vm5458, %v4802, %v4867
      %v5464 = vsel %vm5458, %v4803, %v4869
      %v5467 = vsel %vm5458, %v4804, %v4871
      %v5470 = vsel %vm5458, %v4805, %v4873
      %v5473 = vsel %vm5458, %v4806, %v4875
      %v5476 = vsel %vm5458, %v4807, %v4877
      %v5479 = vsel %vm5458, %v4808, %v4879
      %v5482 = vsel %vm5458, %v4809, %v4881
      %v5485 = vsel %vm5458, %v4810, %v4883
      %v5488 = vsel %vm5458, %v4811, %v4885
      %v5491 = vsel %vm5458, %v4812, %v4887
      %v5494 = vsel %vm5458, %v4813, %v4889
      %v5497 = vsel %vm5458, %v4814, %v4891
      %v5500 = vsel %vm5458, %v4815, %v4893
      %v5503 = vsel %vm5458, %v4816, %v4895
      %v5506 = vsel %vm5458, %v4817, %v4897
      %vm5507 = vcmask 64512
      %v5509 = vsel %vm5507, %v5461, %v4947
      %v5511 = vsel %vm5507, %v5464, %v4949
      %v5513 = vsel %vm5507, %v5467, %v4951
      %v5515 = vsel %vm5507, %v5470, %v4953
      %v5517 = vsel %vm5507, %v5473, %v4955
      %v5519 = vsel %vm5507, %v5476, %v4957
      %v5521 = vsel %vm5507, %v5479, %v4959
      %v5523 = vsel %vm5507, %v5482, %v4961
      %v5525 = vsel %vm5507, %v5485, %v4963
      %v5527 = vsel %vm5507, %v5488, %v4965
      %v5529 = vsel %vm5507, %v5491, %v4967
      %v5531 = vsel %vm5507, %v5494, %v4969
      %v5533 = vsel %vm5507, %v5497, %v4971
      %v5535 = vsel %vm5507, %v5500, %v4973
      %v5537 = vsel %vm5507, %v5503, %v4975
      %v5539 = vsel %vm5507, %v5506, %v4977
      %vm5540 = vcmask 97280
      %v5542 = vsel %vm5540, %v5509, %v5027
      %v5544 = vsel %vm5540, %v5511, %v5029
      %v5546 = vsel %vm5540, %v5513, %v5031
      %v5548 = vsel %vm5540, %v5515, %v5033
      %v5550 = vsel %vm5540, %v5517, %v5035
      %v5552 = vsel %vm5540, %v5519, %v5037
      %v5554 = vsel %vm5540, %v5521, %v5039
      %v5556 = vsel %vm5540, %v5523, %v5041
      %v5558 = vsel %vm5540, %v5525, %v5043
      %v5560 = vsel %vm5540, %v5527, %v5045
      %v5562 = vsel %vm5540, %v5529, %v5047
      %v5564 = vsel %vm5540, %v5531, %v5049
      %v5566 = vsel %vm5540, %v5533, %v5051
      %v5568 = vsel %vm5540, %v5535, %v5053
      %v5570 = vsel %vm5540, %v5537, %v5055
      %v5572 = vsel %vm5540, %v5539, %v5057
      %vm5573 = vcmask 130048
      %v5575 = vsel %vm5573, %v5542, %v5107
      %v5577 = vsel %vm5573, %v5544, %v5109
      %v5579 = vsel %vm5573, %v5546, %v5111
      %v5581 = vsel %vm5573, %v5548, %v5113
      %v5583 = vsel %vm5573, %v5550, %v5115
      %v5585 = vsel %vm5573, %v5552, %v5117
      %v5587 = vsel %vm5573, %v5554, %v5119
      %v5589 = vsel %vm5573, %v5556, %v5121
      %v5591 = vsel %vm5573, %v5558, %v5123
      %v5593 = vsel %vm5573, %v5560, %v5125
      %v5595 = vsel %vm5573, %v5562, %v5127
      %v5597 = vsel %vm5573, %v5564, %v5129
      %v5599 = vsel %vm5573, %v5566, %v5131
      %v5601 = vsel %vm5573, %v5568, %v5133
      %v5603 = vsel %vm5573, %v5570, %v5135
      %v5605 = vsel %vm5573, %v5572, %v5137
      %vm5606 = vcmask 162816
      %v5608 = vsel %vm5606, %v5575, %v5187
      %v5610 = vsel %vm5606, %v5577, %v5189
      %v5612 = vsel %vm5606, %v5579, %v5191
      %v5614 = vsel %vm5606, %v5581, %v5193
      %v5616 = vsel %vm5606, %v5583, %v5195
      %v5618 = vsel %vm5606, %v5585, %v5197
      %v5620 = vsel %vm5606, %v5587, %v5199
      %v5622 = vsel %vm5606, %v5589, %v5201
      %v5624 = vsel %vm5606, %v5591, %v5203
      %v5626 = vsel %vm5606, %v5593, %v5205
      %v5628 = vsel %vm5606, %v5595, %v5207
      %v5630 = vsel %vm5606, %v5597, %v5209
      %v5632 = vsel %vm5606, %v5599, %v5211
      %v5634 = vsel %vm5606, %v5601, %v5213
      %v5636 = vsel %vm5606, %v5603, %v5215
      %v5638 = vsel %vm5606, %v5605, %v5217
      %vm5639 = vcmask 195584
      %v5641 = vsel %vm5639, %v5608, %v5267
      %v5643 = vsel %vm5639, %v5610, %v5269
      %v5645 = vsel %vm5639, %v5612, %v5271
      %v5647 = vsel %vm5639, %v5614, %v5273
      %v5649 = vsel %vm5639, %v5616, %v5275
      %v5651 = vsel %vm5639, %v5618, %v5277
      %v5653 = vsel %vm5639, %v5620, %v5279
      %v5655 = vsel %vm5639, %v5622, %v5281
      %v5657 = vsel %vm5639, %v5624, %v5283
      %v5659 = vsel %vm5639, %v5626, %v5285
      %v5661 = vsel %vm5639, %v5628, %v5287
      %v5663 = vsel %vm5639, %v5630, %v5289
      %v5665 = vsel %vm5639, %v5632, %v5291
      %v5667 = vsel %vm5639, %v5634, %v5293
      %v5669 = vsel %vm5639, %v5636, %v5295
      %v5671 = vsel %vm5639, %v5638, %v5297
      %vm5672 = vcmask 228352
      %v5674 = vsel %vm5672, %v5641, %v5347
      %v5676 = vsel %vm5672, %v5643, %v5349
      %v5678 = vsel %vm5672, %v5645, %v5351
      %v5680 = vsel %vm5672, %v5647, %v5353
      %v5682 = vsel %vm5672, %v5649, %v5355
      %v5684 = vsel %vm5672, %v5651, %v5357
      %v5686 = vsel %vm5672, %v5653, %v5359
      %v5688 = vsel %vm5672, %v5655, %v5361
      %v5690 = vsel %vm5672, %v5657, %v5363
      %v5692 = vsel %vm5672, %v5659, %v5365
      %v5694 = vsel %vm5672, %v5661, %v5367
      %v5696 = vsel %vm5672, %v5663, %v5369
      %v5698 = vsel %vm5672, %v5665, %v5371
      %v5700 = vsel %vm5672, %v5667, %v5373
      %v5702 = vsel %vm5672, %v5669, %v5375
      %v5704 = vsel %vm5672, %v5671, %v5377
      %vm5705 = vcmask 261120
      %v5707 = vsel %vm5705, %v5674, %v5427
      %v5709 = vsel %vm5705, %v5676, %v5429
      %v5711 = vsel %vm5705, %v5678, %v5431
      %v5713 = vsel %vm5705, %v5680, %v5433
      %v5715 = vsel %vm5705, %v5682, %v5435
      %v5717 = vsel %vm5705, %v5684, %v5437
      %v5719 = vsel %vm5705, %v5686, %v5439
      %v5721 = vsel %vm5705, %v5688, %v5441
      %v5723 = vsel %vm5705, %v5690, %v5443
      %v5725 = vsel %vm5705, %v5692, %v5445
      %v5727 = vsel %vm5705, %v5694, %v5447
      %v5729 = vsel %vm5705, %v5696, %v5449
      %v5731 = vsel %vm5705, %v5698, %v5451
      %v5733 = vsel %vm5705, %v5700, %v5453
      %v5735 = vsel %vm5705, %v5702, %v5455
      %v5737 = vsel %vm5705, %v5704, %v5457
      %v5738 = vld [vmem:[%s1] sm:$0xf]
      %v5739 = vld [vmem:[%s1 + $0x4] sm:$0xf]
      %v5740 = vld [vmem:[%s1 + $0x8] sm:$0xf]
      %v5741 = vld [vmem:[%s1 + $0xc] sm:$0xf]
      %v5742 = vld [vmem:[%s1 + $0x10] sm:$0x3]
      %v5743 = vld [vmem:[%s2] sm:$0x1]
      %v5745 = vlaneseq
      %v5746 = vshrl.u32 %v5745, 7
      %v5747 = vsub.s32 0, %v5746
      %v5748 = vrot.slane %v5743, %v5747
      %v5755 = vunpack.c.l.b16 %v5738
      %v5756 = vunpack.c.l.b16 %v5739
      %v5757 = vunpack.c.l.b16 %v5740
      %v5758 = vunpack.c.l.b16 %v5741
      %v5759 = vunpack.c.l.b16 %v5742
      %v5760 = vpack.c.b16 %v5756, %v5755
      %v5761 = vpack.c.b16 %v5758, %v5757
      %v5762 = vpack.c.b16 %v5759, %v5759
      %vm5765 = vcmask 293888
      %v5766 = vsel %vm5765, %v5707, 0
      %v5768 = vsel %vm5765, %v5709, 0
      %v5770 = vsel %vm5765, %v5711, 0
      %v5772 = vsel %vm5765, %v5713, 0
      %v5774 = vsel %vm5765, %v5715, 0
      %v5776 = vsel %vm5765, %v5717, 0
      %v5778 = vsel %vm5765, %v5719, 0
      %v5780 = vsel %vm5765, %v5721, 0
      %v5782 = vsel %vm5765, %v5723, 0
      %v5784 = vsel %vm5765, %v5725, 0
      %v5786 = vsel %vm5765, %v5727, 0
      %v5788 = vsel %vm5765, %v5729, 0
      %v5790 = vsel %vm5765, %v5731, 0
      %v5792 = vsel %vm5765, %v5733, 0
      %v5794 = vsel %vm5765, %v5735, 0
      %v5796 = vsel %vm5765, %v5737, 0
      %vm5798 = vcmask 1041408
      %v5800 = vsel %vm5798, %v5762, 0
      %5802 = vmatprep.subr.bf16.mxu0 0
      %5803 = vmatpush1.bf16.msra.mxu0 %v5760
      %5804 = vmatprep.subr.bf16.mxu0 0
      %5805 = vmatpush1.bf16.msra.mxu0 %v5761
      %5806 = vmatprep.subr.bf16.mxu0 0
      %5807 = vmatpush1.bf16.msra.mxu0 %v5800
      %5808 = vmatprep.subr.bf16.mxu0 0
      %5809 = vmatpush1.bf16.msra.mxu0 0
      %5810 = vmatprep.subr.bf16.mxu0 0
      %5811 = vmatpush1.bf16.msra.mxu0 0
      %5812 = vmatprep.subr.bf16.mxu0 0
      %5813 = vmatpush1.bf16.msra.mxu0 0
      %5814 = vmatprep.subr.bf16.mxu0 0
      %5815 = vmatpush1.bf16.msra.mxu0 0
      %5816 = vmatprep.subr.bf16.mxu0 0
      %5817 = vmatpush1.bf16.msra.mxu0 0
      %5818 = vmatprep.subr.bf16.mxu0 0
      %5819 = vmatpush1.bf16.msra.mxu0 0
      %5820 = vmatprep.subr.bf16.mxu0 0
      %5821 = vmatpush1.bf16.msra.mxu0 0
      %5822 = vmatprep.subr.bf16.mxu0 0
      %5823 = vmatpush1.bf16.msra.mxu0 0
      %5824 = vmatprep.subr.bf16.mxu0 0
      %5825 = vmatpush1.bf16.msra.mxu0 0
      %5826 = vmatprep.subr.bf16.mxu0 0
      %5827 = vmatpush1.bf16.msra.mxu0 0
      %5828 = vmatprep.subr.bf16.mxu0 0
      %5829 = vmatpush1.bf16.msra.mxu0 0
      %5830 = vmatprep.subr.bf16.mxu0 0
      %5831 = vmatpush1.bf16.msra.mxu0 0
      %5832 = vmatprep.subr.bf16.mxu0 0
      %5833 = vmatpush1.bf16.msra.mxu0 0
      %5834 = vmatprep.mubr.bf16.mxu0 0
      %5835 = vmatmul.mubr.bf16.gmra.mrb[0].mxu0 %v5766
      %v5836 = vpop.f32.mrb[0].mxu0
      %v5837 = vadd.f32 %v5748, %v5836
      %v5838 = vpop.f32.mrb[0].mxu0
      %v5839 = vpop.f32.mrb[0].mxu0
      %v5840 = vadd.f32 %v5748, %v5839
      %v5841 = vpop.f32.mrb[0].mxu0
      %5842 = vmatprep.mubr.bf16.mxu0 0
      %5843 = vmatmul.mubr.bf16.gmra.mrb[0].mxu0 %v5768
      %v5844 = vpop.f32.mrb[0].mxu0
      %v5845 = vadd.f32 %v5748, %v5844
      %v5846 = vpop.f32.mrb[0].mxu0
      %v5847 = vpop.f32.mrb[0].mxu0
      %v5848 = vadd.f32 %v5748, %v5847
      %v5849 = vpop.f32.mrb[0].mxu0
      %5850 = vmatprep.mubr.bf16.mxu0 0
      %5851 = vmatmul.mubr.bf16.gmra.mrb[0].mxu0 %v5770
      %v5852 = vpop.f32.mrb[0].mxu0
      %v5853 = vadd.f32 %v5748, %v5852
      %v5854 = vpop.f32.mrb[0].mxu0
      %v5855 = vpop.f32.mrb[0].mxu0
      %v5856 = vadd.f32 %v5748, %v5855
      %v5857 = vpop.f32.mrb[0].mxu0
      %5858 = vmatprep.mubr.bf16.mxu0 0
      %5859 = vmatmul.mubr.bf16.gmra.mrb[0].mxu0 %v5772
      %v5860 = vpop.f32.mrb[0].mxu0
      %v5861 = vadd.f32 %v5748, %v5860
      %v5862 = vpop.f32.mrb[0].mxu0
      %v5863 = vpop.f32.mrb[0].mxu0
      %v5864 = vadd.f32 %v5748, %v5863
      %v5865 = vpop.f32.mrb[0].mxu0
      %5866 = vmatprep.mubr.bf16.mxu0 0
      %5867 = vmatmul.mubr.bf16.gmra.mrb[0].mxu0 %v5774
      %v5868 = vpop.f32.mrb[0].mxu0
      %v5869 = vadd.f32 %v5748, %v5868
      %v5870 = vpop.f32.mrb[0].mxu0
      %v5871 = vpop.f32.mrb[0].mxu0
      %v5872 = vadd.f32 %v5748, %v5871
      %v5873 = vpop.f32.mrb[0].mxu0
      %5874 = vmatprep.mubr.bf16.mxu0 0
      %5875 = vmatmul.mubr.bf16.gmra.mrb[0].mxu0 %v5776
      %v5876 = vpop.f32.mrb[0].mxu0
      %v5877 = vadd.f32 %v5748, %v5876
      %v5878 = vpop.f32.mrb[0].mxu0
      %v5879 = vpop.f32.mrb[0].mxu0
      %v5880 = vadd.f32 %v5748, %v5879
      %v5881 = vpop.f32.mrb[0].mxu0
      %5882 = vmatprep.mubr.bf16.mxu0 0
      %5883 = vmatmul.mubr.bf16.gmra.mrb[0].mxu0 %v5778
      %v5884 = vpop.f32.mrb[0].mxu0
      %v5885 = vadd.f32 %v5748, %v5884
      %v5886 = vpop.f32.mrb[0].mxu0
      %v5887 = vpop.f32.mrb[0].mxu0
      %v5888 = vadd.f32 %v5748, %v5887
      %v5889 = vpop.f32.mrb[0].mxu0
      %5890 = vmatprep.mubr.bf16.mxu0 0
      %5891 = vmatmul.mubr.bf16.gmra.mrb[0].mxu0 %v5780
      %v5892 = vpop.f32.mrb[0].mxu0
      %v5893 = vadd.f32 %v5748, %v5892
      %v5894 = vpop.f32.mrb[0].mxu0
      %v5895 = vpop.f32.mrb[0].mxu0
      %v5896 = vadd.f32 %v5748, %v5895
      %v5897 = vpop.f32.mrb[0].mxu0
      %5898 = vmatprep.mubr.bf16.mxu0 0
      %5899 = vmatmul.mubr.bf16.gmra.mrb[0].mxu0 %v5782
      %v5900 = vpop.f32.mrb[0].mxu0
      %v5901 = vadd.f32 %v5748, %v5900
      %v5902 = vpop.f32.mrb[0].mxu0
      %v5903 = vpop.f32.mrb[0].mxu0
      %v5904 = vadd.f32 %v5748, %v5903
      %v5905 = vpop.f32.mrb[0].mxu0
      %5906 = vmatprep.mubr.bf16.mxu0 0
      %5907 = vmatmul.mubr.bf16.gmra.mrb[0].mxu0 %v5784
      %v5908 = vpop.f32.mrb[0].mxu0
      %v5909 = vadd.f32 %v5748, %v5908
      %v5910 = vpop.f32.mrb[0].mxu0
      %v5911 = vpop.f32.mrb[0].mxu0
      %v5912 = vadd.f32 %v5748, %v5911
      %v5913 = vpop.f32.mrb[0].mxu0
      %5914 = vmatprep.mubr.bf16.mxu0 0
      %5915 = vmatmul.mubr.bf16.gmra.mrb[0].mxu0 %v5786
      %v5916 = vpop.f32.mrb[0].mxu0
      %v5917 = vadd.f32 %v5748, %v5916
      %v5918 = vpop.f32.mrb[0].mxu0
      %v5919 = vpop.f32.mrb[0].mxu0
      %v5920 = vadd.f32 %v5748, %v5919
      %v5921 = vpop.f32.mrb[0].mxu0
      %5922 = vmatprep.mubr.bf16.mxu0 0
      %5923 = vmatmul.mubr.bf16.gmra.mrb[0].mxu0 %v5788
      %v5924 = vpop.f32.mrb[0].mxu0
      %v5925 = vadd.f32 %v5748, %v5924
      %v5926 = vpop.f32.mrb[0].mxu0
      %v5927 = vpop.f32.mrb[0].mxu0
      %v5928 = vadd.f32 %v5748, %v5927
      %v5929 = vpop.f32.mrb[0].mxu0
      %5930 = vmatprep.mubr.bf16.mxu0 0
      %5931 = vmatmul.mubr.bf16.gmra.mrb[0].mxu0 %v5790
      %v5932 = vpop.f32.mrb[0].mxu0
      %v5933 = vadd.f32 %v5748, %v5932
      %v5934 = vpop.f32.mrb[0].mxu0
      %v5935 = vpop.f32.mrb[0].mxu0
      %v5936 = vadd.f32 %v5748, %v5935
      %v5937 = vpop.f32.mrb[0].mxu0
      %5938 = vmatprep.mubr.bf16.mxu0 0
      %5939 = vmatmul.mubr.bf16.gmra.mrb[0].mxu0 %v5792
      %v5940 = vpop.f32.mrb[0].mxu0
      %v5941 = vadd.f32 %v5748, %v5940
      %v5942 = vpop.f32.mrb[0].mxu0
      %v5943 = vpop.f32.mrb[0].mxu0
      %v5944 = vadd.f32 %v5748, %v5943
      %v5945 = vpop.f32.mrb[0].mxu0
      %5946 = vmatprep.mubr.bf16.mxu0 0
      %5947 = vmatmul.mubr.bf16.gmra.mrb[0].mxu0 %v5794
      %v5948 = vpop.f32.mrb[0].mxu0
      %v5949 = vadd.f32 %v5748, %v5948
      %v5950 = vpop.f32.mrb[0].mxu0
      %v5951 = vpop.f32.mrb[0].mxu0
      %v5952 = vadd.f32 %v5748, %v5951
      %v5953 = vpop.f32.mrb[0].mxu0
      %5954 = vmatprep.mubr.bf16.mxu0 0
      %5955 = vmatmul.mubr.bf16.gmra.mrb[0].mxu0 %v5796
      %v5956 = vpop.f32.mrb[0].mxu0
      %v5957 = vadd.f32 %v5748, %v5956
      %v5958 = vpop.f32.mrb[0].mxu0
      %v5959 = vpop.f32.mrb[0].mxu0
      %v5960 = vadd.f32 %v5748, %v5959
      %v5961 = vpop.f32.mrb[0].mxu0
      %5962 = vdwg.mxu0
      %v5963 = vmul.f32 %v5837, 0.1
      %v5964 = vmul.f32 %v5840, 0.1
      %v5965 = vmul.f32 %v5845, 0.1
      %v5966 = vmul.f32 %v5848, 0.1
      %v5967 = vmul.f32 %v5853, 0.1
      %v5968 = vmul.f32 %v5856, 0.1
      %v5969 = vmul.f32 %v5861, 0.1
      %v5970 = vmul.f32 %v5864, 0.1
      %v5971 = vmul.f32 %v5869, 0.1
      %v5972 = vmul.f32 %v5872, 0.1
      %v5973 = vmul.f32 %v5877, 0.1
      %v5974 = vmul.f32 %v5880, 0.1
      %v5975 = vmul.f32 %v5885, 0.1
      %v5976 = vmul.f32 %v5888, 0.1
      %v5977 = vmul.f32 %v5893, 0.1
      %v5978 = vmul.f32 %v5896, 0.1
      %v5979 = vmul.f32 %v5901, 0.1
      %v5980 = vmul.f32 %v5904, 0.1
      %v5981 = vmul.f32 %v5909, 0.1
      %v5982 = vmul.f32 %v5912, 0.1
      %v5983 = vmul.f32 %v5917, 0.1
      %v5984 = vmul.f32 %v5920, 0.1
      %v5985 = vmul.f32 %v5925, 0.1
      %v5986 = vmul.f32 %v5928, 0.1
      %v5987 = vmul.f32 %v5933, 0.1
      %v5988 = vmul.f32 %v5936, 0.1
      %v5989 = vmul.f32 %v5941, 0.1
      %v5990 = vmul.f32 %v5944, 0.1
      %v5991 = vmul.f32 %v5949, 0.1
      %v5992 = vmul.f32 %v5952, 0.1
      %v5993 = vmul.f32 %v5957, 0.1
      %v5994 = vmul.f32 %v5960, 0.1
      %v5995 = vmax.f32 %v5837, %v5963
      %v5996 = vmax.f32 %v5840, %v5964
      %v5997 = vmax.f32 %v5845, %v5965
      %v5998 = vmax.f32 %v5848, %v5966
      %v5999 = vmax.f32 %v5853, %v5967
      %v6000 = vmax.f32 %v5856, %v5968
      %v6001 = vmax.f32 %v5861, %v5969
      %v6002 = vmax.f32 %v5864, %v5970
      %v6003 = vmax.f32 %v5869, %v5971
      %v6004 = vmax.f32 %v5872, %v5972
      %v6005 = vmax.f32 %v5877, %v5973
      %v6006 = vmax.f32 %v5880, %v5974
      %v6007 = vmax.f32 %v5885, %v5975
      %v6008 = vmax.f32 %v5888, %v5976
      %v6009 = vmax.f32 %v5893, %v5977
      %v6010 = vmax.f32 %v5896, %v5978
      %v6011 = vmax.f32 %v5901, %v5979
      %v6012 = vmax.f32 %v5904, %v5980
      %v6013 = vmax.f32 %v5909, %v5981
      %v6014 = vmax.f32 %v5912, %v5982
      %v6015 = vmax.f32 %v5917, %v5983
      %v6016 = vmax.f32 %v5920, %v5984
      %v6017 = vmax.f32 %v5925, %v5985
      %v6018 = vmax.f32 %v5928, %v5986
      %v6019 = vmax.f32 %v5933, %v5987
      %v6020 = vmax.f32 %v5936, %v5988
      %v6021 = vmax.f32 %v5941, %v5989
      %v6022 = vmax.f32 %v5944, %v5990
      %v6023 = vmax.f32 %v5949, %v5991
      %v6024 = vmax.f32 %v5952, %v5992
      %v6025 = vmax.f32 %v5957, %v5993
      %v6026 = vmax.f32 %v5960, %v5994
      %6027 = vst [vmem:[%s194] sm:$0xff] %v5995
      %6028 = vst [vmem:[%s194 + $0x8] sm:$0xff] %v5996
      %6029 = vst [vmem:[%s194 + $0x10] sm:$0xff] %v5997
      %6030 = vst [vmem:[%s194 + $0x18] sm:$0xff] %v5998
      %6031 = vst [vmem:[%s194 + $0x20] sm:$0xff] %v5999
      %6032 = vst [vmem:[%s194 + $0x28] sm:$0xff] %v6000
      %6033 = vst [vmem:[%s194 + $0x30] sm:$0xff] %v6001
      %6034 = vst [vmem:[%s194 + $0x38] sm:$0xff] %v6002
      %6035 = vst [vmem:[%s194 + $0x40] sm:$0xff] %v6003
      %6036 = vst [vmem:[%s194 + $0x48] sm:$0xff] %v6004
      %6037 = vst [vmem:[%s194 + $0x50] sm:$0xff] %v6005
      %6038 = vst [vmem:[%s194 + $0x58] sm:$0xff] %v6006
      %6039 = vst [vmem:[%s194 + $0x60] sm:$0xff] %v6007
      %6040 = vst [vmem:[%s194 + $0x68] sm:$0xff] %v6008
      %6041 = vst [vmem:[%s194 + $0x70] sm:$0xff] %v6009
      %6042 = vst [vmem:[%s194 + $0x78] sm:$0xff] %v6010
      %6043 = vst [vmem:[%s194 + $0x80] sm:$0xff] %v6011
      %6044 = vst [vmem:[%s194 + $0x88] sm:$0xff] %v6012
      %6045 = vst [vmem:[%s194 + $0x90] sm:$0xff] %v6013
      %6046 = vst [vmem:[%s194 + $0x98] sm:$0xff] %v6014
      %6047 = vst [vmem:[%s194 + $0xa0] sm:$0xff] %v6015
      %6048 = vst [vmem:[%s194 + $0xa8] sm:$0xff] %v6016
      %6049 = vst [vmem:[%s194 + $0xb0] sm:$0xff] %v6017
      %6050 = vst [vmem:[%s194 + $0xb8] sm:$0xff] %v6018
      %6051 = vst [vmem:[%s194 + $0xc0] sm:$0xff] %v6019
      %6052 = vst [vmem:[%s194 + $0xc8] sm:$0xff] %v6020
      %6053 = vst [vmem:[%s194 + $0xd0] sm:$0xff] %v6021
      %6054 = vst [vmem:[%s194 + $0xd8] sm:$0xff] %v6022
      %6055 = vst [vmem:[%s194 + $0xe0] sm:$0xff] %v6023
      %6056 = vst [vmem:[%s194 + $0xe8] sm:$0xff] %v6024
      %6057 = vst [vmem:[%s194 + $0xf0] sm:$0xff] %v6025
      %6058 = vst [vmem:[%s194 + $0xf8] sm:$0xff] %v6026
      %s6059 = smul.u32 16, %s19
      %p6060 = scmp.lt.s32.totalorder %s18, 1
      %s6061 = scalar_select %p6060, %s18, 1
      %p6062 = scmp.lt.s32.totalorder %s6059, 15
      %s6063 = scalar_select %p6062, %s6059, 15
      %s6064 = smul.addr %s6063, 2
      %s6065 = smul.addr %s6061, 32
      %s6066 = sadd.s32 %s6064, %s6065
      %s6067 = smul.addr %s6066, 8
      %s6068 = scalar_lea.vmem %s3, %s6067
      // Predicated region
      $region33: #{cnn_block_forward.1} parent=31 // pred_check
        %p6069 = pneg %p114
      $region34: #{cnn_block_forward.1} parent=31 // pred_check_branch
        %6071 = sbr.rel (%p6069) target = $region36
      $region35: #{cnn_block_forward.1} parent=31 // pred_region
        %s6072 = smul.u32 16, %s19
      $region36: #{cnn_block_forward.1} parent=31 // pred_fallthru
        _
    $region32: #{cnn_block_forward.1} parent=5 // pred_fallthru
      _
    %p6073 = scmp.le.s32.totalorder 2, %s9
    // Predicated region
    $region37: #{cnn_block_forward.1} parent=5 // pred_check
      %p6074 = pneg %p6073
    $region38: #{cnn_block_forward.1} parent=5 // pred_check_branch
      %6076 = sbr.rel (%p6074) target = $region40
    $region39: #{cnn_block_forward.1} parent=5 // pred_region
      %s6077 = ssub.s32 %s9, 2
      // Predicated region
      $region41: #{cnn_block_forward.1} parent=39 // pred_check
        %p6078 = pneg %p120
      $region42: #{cnn_block_forward.1} parent=39 // pred_check_branch
        %6080 = sbr.rel (%p6078) target = $region44
      $region43: #{cnn_block_forward.1} parent=39 // pred_region
        %s6081 = smul.u32 16, %s21
        %p6082 = scmp.lt.s32.totalorder %s20, 1
        %s6083 = scalar_select %p6082, %s20, 1
        %p6084 = scmp.lt.s32.totalorder %s6081, 15
        %s6085 = scalar_select %p6084, %s6081, 15
        %s6086 = smul.addr %s6085, 2
        %s6087 = smul.addr %s6083, 32
        %s6088 = sadd.s32 %s6086, %s6087
        %s6089 = smul.addr %s6088, 8
        %s6090 = scalar_lea.vmem %s3, %s6089
      $region44: #{cnn_block_forward.1} parent=39 // pred_fallthru
        _
    $region40: #{cnn_block_forward.1} parent=5 // pred_fallthru
      _
  $region6: #{cnn_block_forward.1} parent=0 // loop_footer
    %s13 = sadd.s32 1, %s9
  $region7: #{cnn_block_forward.1} parent=0 // loop_footer_branch
    %8 = sbr.rel target = $region3
  $region8: #{cnn_block_forward.1} parent=0 // loop_exit
    _

</llo_original>
